<compile_context>
chip_gen: v7x
topology: tpu7x:2x2x1
jax: 0.10.0
libtpu: 0.0.40
codegen_flags: <defaults>
</compile_context>

<pallas_src>
import functools
import math

import jax
import jax.numpy as jnp
from jax import lax
from jax.experimental import pallas as pl
from jax.experimental.pallas import tpu as pltpu


# ----------------------------------------------------------------------------
# helpers
# ----------------------------------------------------------------------------
def _layer_norm_f32(h, gamma, beta, eps=1e-12):
    mean = jnp.mean(h, axis=-1, keepdims=True)
    cen = h - mean
    var = jnp.mean(cen * cen, axis=-1, keepdims=True)
    return cen * lax.rsqrt(var + jnp.float32(eps)) * gamma + beta


def _vmem_limit(bytes_needed):
    # Honest per-step footprint + headroom, capped below v7x physical VMEM
    # (64 MiB / TC) so the compiler keeps scratch headroom on every generation.
    return int(min(56 * 1024 * 1024,
                   max(32 * 1024 * 1024, int(bytes_needed) + (4 << 20))))


def _seq_block(s, preferred=(256, 128)):
    # Largest preferred tile that divides the sequence length; otherwise keep
    # the whole (typically short for LXMERT) sequence in one block.
    for b in preferred:
        if s % b == 0:
            return b
    return s


def _row_block(rows, cap=256):
    # Small R: single grid step (the FFN is weight-streaming bound anyway).
    # Large R: `cap`-row tiles (>=128 rows keeps the MXU M dim filled); the
    # wrapper pads R up to a tile multiple.  v6e users may raise cap to 512.
    if rows <= cap:
        return rows
    return cap


# ----------------------------------------------------------------------------
# fused attention block kernel (flash-tiled over the key axis):
#   y = LayerNorm( dense( MHA(x, ctx, mask) ) + x )
# grid = (batch, q_tiles, k_tiles);  k_tiles is the reduction ("arbitrary") axis
# ----------------------------------------------------------------------------
def _attention_kernel(x_ref, ctx_ref, mask_ref,
                      wq_ref, bq_ref, wk_ref, bk_ref, wv_ref, bv_ref,
                      wo_ref, bo_ref, g_ref, beta_ref,
                      o_ref,
                      q_scr, kh_scr, vh_scr, m_scr, l_scr, acc_scr,
                      *, num_heads, approx_recip):
    ki = pl.program_id(2)
    nk = pl.num_programs(2)
    cdt = wq_ref.dtype                      # matmul operand dtype (f32 / bf16)
    tq, hidden = x_ref.shape                # (q-tile, H)
    tk = ctx_ref.shape[0]                   # k-tile
    dh = hidden // num_heads
    scale = jnp.float32(1.0 / math.sqrt(dh))

    @pl.when(ki == 0)
    def _init():
        # Q projection once per (batch, q-tile); store head-major in scratch.
        q = jnp.dot(x_ref[...].astype(cdt), wq_ref[...],
                    preferred_element_type=jnp.float32) + bq_ref[...]
        for h in range(num_heads):
            q_scr[h] = q[:, h * dh:(h + 1) * dh].astype(q_scr.dtype)
        m_scr[...] = jnp.full(m_scr.shape, -jnp.inf, dtype=m_scr.dtype)
        l_scr[...] = jnp.zeros(l_scr.shape, dtype=l_scr.dtype)
        acc_scr[...] = jnp.zeros(acc_scr.shape, dtype=acc_scr.dtype)

    # K/V projections for this key tile (f32 accumulation), head-major scratch.
    c = ctx_ref[...].astype(cdt)
    k = jnp.dot(c, wk_ref[...], preferred_element_type=jnp.float32) + bk_ref[...]
    v = jnp.dot(c, wv_ref[...], preferred_element_type=jnp.float32) + bv_ref[...]
    for h in range(num_heads):
        kh_scr[h] = k[:, h * dh:(h + 1) * dh].astype(kh_scr.dtype)
        vh_scr[h] = v[:, h * dh:(h + 1) * dh].astype(vh_scr.dtype)

    # One batched QK^T over all heads: (nh, tq, dh) x (nh, tk, dh) -> (nh, tq, tk)
    s = lax.dot_general(q_scr[...], kh_scr[...],
                        (((2,), (2,)), ((0,), (0,))),
                        preferred_element_type=jnp.float32)
    s = s * scale + mask_ref[...][None]              # additive mask (1,1,tk)

    # Online-softmax (flash) update; normalization deferred to the finalize.
    m_prev = m_scr[...]
    m_new = jnp.maximum(m_prev, jnp.max(s, axis=-1, keepdims=True))
    alpha = jnp.exp(m_prev - m_new)
    p = jnp.exp(s - m_new)
    l_scr[...] = alpha * l_scr[...] + jnp.sum(p, axis=-1, keepdims=True)
    pv = lax.dot_general(p.astype(cdt), vh_scr[...],
                         (((2,), (1,)), ((0,), (0,))),
                         preferred_element_type=jnp.float32)
    acc_scr[...] = alpha * acc_scr[...] + pv
    m_scr[...] = m_new

    @pl.when(ki == nk - 1)
    def _finalize():
        # Normalize per head (reciprocal on the EUP), regroup heads on the lane
        # axis, output dense + residual + LayerNorm, all in f32.
        parts = []
        for h in range(num_heads):
            inv_l = pl.reciprocal(l_scr[h], approx=approx_recip)   # (tq, 1)
            parts.append(acc_scr[h] * inv_l)                       # (tq, dh) f32
        ctx_all = jnp.concatenate(parts, axis=-1)                  # (tq, H)
        attn = jnp.dot(ctx_all.astype(cdt), wo_ref[...],
                       preferred_element_type=jnp.float32) + bo_ref[...]
        h_res = attn + x_ref[...].astype(jnp.float32)
        o_ref[...] = _layer_norm_f32(h_res, g_ref[...],
                                     beta_ref[...]).astype(o_ref.dtype)


def attention_block(x, ctx, mask, p, *, num_heads, compute_dtype=jnp.bfloat16):
    """x: (B,Sq,H) query/residual input (f32); ctx: (B,Sk,H); mask: (B,1,Sk)."""
    B, Sq, H = x.shape
    Sk = ctx.shape[1]
    assert H % num_heads == 0
    dh = H // num_heads
    cdt = jnp.dtype(compute_dtype)
    wsz = cdt.itemsize
    approx = bool(cdt != jnp.dtype(jnp.float32))

    tq = _seq_block(Sq, preferred=(256, 128))
    tk = _seq_block(Sk, preferred=(512, 256, 128))
    nq, nk = Sq // tq, Sk // tk

    kernel = functools.partial(_attention_kernel, num_heads=num_heads,
                               approx_recip=approx)

    vmem_bytes = (
        4 * (2 * tq * H + 2 * tk * H + 2 * tk + 2 * tq * H)       # x/ctx/mask/out (x2 buf)
        + 2 * wsz * 4 * H * H + 2 * 4 * 6 * H                     # dense weights + bias/LN
        + wsz * num_heads * (tq + 2 * tk) * dh                    # q/k/v head-major scratch
        + 4 * num_heads * tq * (dh + 2)                           # acc + m + l scratch
        + 4 * (2 * num_heads * tq * tk + 2 * tk * H + tq * H)     # scores/probs + f32 temps
        + wsz * num_heads * tq * tk)                              # probs cast copy
    flops = int(B * (2 * Sq * H * H + 4 * Sk * H * H
                     + 4 * num_heads * Sq * Sk * dh + 2 * Sq * H * H))
    cost = pl.CostEstimate(
        flops=flops,
        transcendentals=int(2 * B * num_heads * Sq * Sk),
        bytes_accessed=int(4 * (2 * B * Sq * H + B * Sk * H + B * Sk + 6 * H)
                           + wsz * 4 * H * H))

    return pl.pallas_call(
        kernel,
        out_shape=jax.ShapeDtypeStruct((B, Sq, H), jnp.float32),
        grid_spec=pltpu.PrefetchScalarGridSpec(
            num_scalar_prefetch=0,
            grid=(B, nq, nk),
            in_specs=[
                pl.BlockSpec((None, tq, H), lambda b, qi, ki: (b, qi, 0)),  # x
                pl.BlockSpec((None, tk, H), lambda b, qi, ki: (b, ki, 0)),  # ctx
                pl.BlockSpec((None, 1, tk), lambda b, qi, ki: (b, 0, ki)),  # mask
                pl.BlockSpec((H, H), lambda b, qi, ki: (0, 0)),             # wq
                pl.BlockSpec((1, H), lambda b, qi, ki: (0, 0)),             # bq
                pl.BlockSpec((H, H), lambda b, qi, ki: (0, 0)),             # wk
                pl.BlockSpec((1, H), lambda b, qi, ki: (0, 0)),             # bk
                pl.BlockSpec((H, H), lambda b, qi, ki: (0, 0)),             # wv
                pl.BlockSpec((1, H), lambda b, qi, ki: (0, 0)),             # bv
                pl.BlockSpec((H, H), lambda b, qi, ki: (0, 0)),             # wo
                pl.BlockSpec((1, H), lambda b, qi, ki: (0, 0)),             # bo
                pl.BlockSpec((1, H), lambda b, qi, ki: (0, 0)),             # LN gamma
                pl.BlockSpec((1, H), lambda b, qi, ki: (0, 0)),             # LN beta
            ],
            out_specs=pl.BlockSpec((None, tq, H), lambda b, qi, ki: (b, qi, 0)),
            scratch_shapes=[
                pltpu.VMEM((num_heads, tq, dh), cdt),          # Q (head-major)
                pltpu.VMEM((num_heads, tk, dh), cdt),          # K tile (head-major)
                pltpu.VMEM((num_heads, tk, dh), cdt),          # V tile (head-major)
                pltpu.VMEM((num_heads, tq, 1), jnp.float32),   # running max
                pltpu.VMEM((num_heads, tq, 1), jnp.float32),   # running sum
                pltpu.VMEM((num_heads, tq, dh), jnp.float32),  # PV accumulator
            ],
        ),
        compiler_params=pltpu.CompilerParams(
            dimension_semantics=("parallel", "parallel", "arbitrary"),
            vmem_limit_bytes=_vmem_limit(vmem_bytes)),
        cost_estimate=cost,
    )(x.astype(jnp.float32), ctx.astype(jnp.float32), mask.astype(jnp.float32),
      p["wq"].astype(cdt), p["bq"].astype(jnp.float32),
      p["wk"].astype(cdt), p["bk"].astype(jnp.float32),
      p["wv"].astype(cdt), p["bv"].astype(jnp.float32),
      p["wo"].astype(cdt), p["bo"].astype(jnp.float32),
      p["gamma"].astype(jnp.float32), p["beta"].astype(jnp.float32))


def cross_attention_pair(lang, lang_mask, visn, visn_mask, p, *, num_heads,
                         compute_dtype=jnp.bfloat16):
    """Shared-weight cross attention, both directions in a single launch:
    the cross weights are DMA'd once and the grid gets 2x the parallel work."""
    B, SL, _ = lang.shape
    SV = visn.shape[1]
    S = max(SL, SV)

    def pad_seq(a):
        return a if a.shape[1] == S else jnp.pad(
            a, ((0, 0), (0, S - a.shape[1]), (0, 0)))

    def pad_mask(m):
        return m if m.shape[2] == S else jnp.pad(
            m, ((0, 0), (0, 0), (0, S - m.shape[2])), constant_values=-10000.0)

    x = jnp.concatenate([pad_seq(lang), pad_seq(visn)], axis=0)       # queries
    c = jnp.concatenate([pad_seq(visn), pad_seq(lang)], axis=0)       # contexts
    m = jnp.concatenate([pad_mask(visn_mask), pad_mask(lang_mask)], axis=0)
    y = attention_block(x, c, m, p, num_heads=num_heads,
                        compute_dtype=compute_dtype)
    return y[:B, :SL], y[B:, :SV]


# ----------------------------------------------------------------------------
# fused FFN block kernel:
#   y = LayerNorm( GeLU(x @ Wi + bi) @ Wo + bo + x )
# ----------------------------------------------------------------------------
def _ffn_kernel(x_ref, wi_ref, bi_ref, wo_ref, bo_ref, g_ref, beta_ref, o_ref):
    cdt = wi_ref.dtype
    x = x_ref[...]                                              # (br, H) f32
    h = jnp.dot(x.astype(cdt), wi_ref[...],
                preferred_element_type=jnp.float32) + bi_ref[...]
    # erf-based GeLU (matches the torch gelu in the reference module)
    h = h * 0.5 * (1.0 + lax.erf(h * jnp.float32(1.0 / math.sqrt(2.0))))
    y = jnp.dot(h.astype(cdt), wo_ref[...],
                preferred_element_type=jnp.float32) + bo_ref[...]
    y = y + x
    o_ref[...] = _layer_norm_f32(y, g_ref[...], beta_ref[...]).astype(o_ref.dtype)


def ffn_block(x, p, *, compute_dtype=jnp.bfloat16, block_rows=None):
    """x: (B,S,H) f32.  BertIntermediate + BertOutput (residual + LayerNorm)."""
    B, S, H = x.shape
    inter = p["wi"].shape[1]
    R = B * S
    cdt = jnp.dtype(compute_dtype)
    wsz = cdt.itemsize

    br = block_rows if block_rows is not None else _row_block(R)
    xr = x.reshape(R, H).astype(jnp.float32)
    Rp = pl.cdiv(R, br) * br
    if Rp != R:                       # pad rows up to a tile multiple
        xr = jnp.pad(xr, ((0, Rp - R), (0, 0)))
    grid = (Rp // br,)

    vmem_bytes = (4 * (2 * br * H + 2 * br * H)                 # x/out tiles (x2 buf)
                  + 2 * wsz * 2 * H * inter + 2 * 4 * (inter + 3 * H)
                  + 4 * br * inter + wsz * br * (inter + H))    # GeLU + cast temps
    cost = pl.CostEstimate(
        flops=int(4 * R * H * inter),
        transcendentals=int(R * inter),
        bytes_accessed=int(4 * 2 * R * H + wsz * 2 * H * inter + 4 * (inter + 3 * H)))

    out = pl.pallas_call(
        _ffn_kernel,
        out_shape=jax.ShapeDtypeStruct((Rp, H), jnp.float32),
        grid_spec=pltpu.PrefetchScalarGridSpec(
            num_scalar_prefetch=0,
            grid=grid,
            in_specs=[
                pl.BlockSpec((br, H), lambda i: (i, 0)),        # x rows
                pl.BlockSpec((H, inter), lambda i: (0, 0)),     # wi
                pl.BlockSpec((1, inter), lambda i: (0, 0)),     # bi
                pl.BlockSpec((inter, H), lambda i: (0, 0)),     # wo
                pl.BlockSpec((1, H), lambda i: (0, 0)),         # bo
                pl.BlockSpec((1, H), lambda i: (0, 0)),         # gamma
                pl.BlockSpec((1, H), lambda i: (0, 0)),         # beta
            ],
            out_specs=pl.BlockSpec((br, H), lambda i: (i, 0)),
        ),
        compiler_params=pltpu.CompilerParams(
            dimension_semantics=("parallel",),
            vmem_limit_bytes=_vmem_limit(vmem_bytes)),
        cost_estimate=cost,
    )(xr, p["wi"].astype(cdt), p["bi"].astype(jnp.float32),
      p["wo"].astype(cdt), p["bo"].astype(jnp.float32),
      p["gamma"].astype(jnp.float32), p["beta"].astype(jnp.float32))
    return out[:R].reshape(B, S, H)


# ----------------------------------------------------------------------------
# full LXRTXLayer forward (inference: dropout = identity)
# ----------------------------------------------------------------------------
def lxrt_x_layer_forward(lang_feats, lang_attention_mask, visn_feats,
                         visn_attention_mask, params, *, num_heads,
                         compute_dtype=jnp.bfloat16):
    att = functools.partial(attention_block, num_heads=num_heads,
                            compute_dtype=compute_dtype)
    # cross attention: shared weights, both directions fused into one launch
    lang_att, visn_att = cross_attention_pair(
        lang_feats, lang_attention_mask, visn_feats, visn_attention_mask,
        params["cross"], num_heads=num_heads, compute_dtype=compute_dtype)
    # self attention
    lang_att = att(lang_att, lang_att, lang_attention_mask, params["lang_self"])
    visn_att = att(visn_att, visn_att, visn_attention_mask, params["visn_self"])
    # FFN (intermediate + output with residual + LN)
    lang_out = ffn_block(lang_att, params["lang_ffn"], compute_dtype=compute_dtype)
    visn_out = ffn_block(visn_att, params["visn_ffn"], compute_dtype=compute_dtype)
    return lang_out, visn_out


# ----------------------------------------------------------------------------
# parameters (stored as (in, out) so kernels compute x @ W; biases as (1, f))
# ----------------------------------------------------------------------------
def init_params(key, hidden, intermediate, dtype=jnp.float32):
    def linear(kk, din, dout):
        kw, kb = jax.random.split(kk)
        return (jax.random.normal(kw, (din, dout), dtype) * 0.05,
                jax.random.normal(kb, (1, dout), dtype) * 0.05)

    def att_params(kk):
        k1, k2, k3, k4 = jax.random.split(kk, 4)
        wq, bq = linear(k1, hidden, hidden)
        wk, bk = linear(k2, hidden, hidden)
        wv, bv = linear(k3, hidden, hidden)
        wo, bo = linear(k4, hidden, hidden)
        return dict(wq=wq, bq=bq, wk=wk, bk=bk, wv=wv, bv=bv, wo=wo, bo=bo,
                    gamma=jnp.ones((1, hidden), dtype),
                    beta=jnp.zeros((1, hidden), dtype))

    def ffn_params(kk):
        k1, k2 = jax.random.split(kk)
        wi, bi = linear(k1, hidden, intermediate)
        wo, bo = linear(k2, intermediate, hidden)
        return dict(wi=wi, bi=bi, wo=wo, bo=bo,
                    gamma=jnp.ones((1, hidden), dtype),
                    beta=jnp.zeros((1, hidden), dtype))

    k1, k2, k3, k4, k5 = jax.random.split(key, 5)
    return dict(cross=att_params(k1), lang_self=att_params(k2),
                visn_self=att_params(k3), lang_ffn=ffn_params(k4),
                visn_ffn=ffn_params(k5))


# ----------------------------------------------------------------------------
# pure-JAX f32 reference (mirrors the torch module exactly)
# ----------------------------------------------------------------------------
def _attention_ref(x, ctx, mask, p, num_heads):
    B, Sq, H = x.shape
    Sk = ctx.shape[1]
    dh = H // num_heads
    q = x @ p["wq"] + p["bq"]
    k = ctx @ p["wk"] + p["bk"]
    v = ctx @ p["wv"] + p["bv"]
    qh = q.reshape(B, Sq, num_heads, dh).transpose(0, 2, 1, 3)
    kh = k.reshape(B, Sk, num_heads, dh).transpose(0, 2, 1, 3)
    vh = v.reshape(B, Sk, num_heads, dh).transpose(0, 2, 1, 3)
    s = jnp.einsum("bhqd,bhkd->bhqk", qh, kh) / math.sqrt(dh)
    s = s + mask[:, :, None, :]
    a = jax.nn.softmax(s, axis=-1)
    c = jnp.einsum("bhqk,bhkd->bhqd", a, vh)
    c = c.transpose(0, 2, 1, 3).reshape(B, Sq, H)
    h = c @ p["wo"] + p["bo"] + x
    return _layer_norm_f32(h, p["gamma"], p["beta"])


def _ffn_ref(x, p):
    h = x @ p["wi"] + p["bi"]
    h = h * 0.5 * (1.0 + lax.erf(h / math.sqrt(2.0)))
    y = h @ p["wo"] + p["bo"] + x
    return _layer_norm_f32(y, p["gamma"], p["beta"])


def _reference(lang, lang_mask, visn, visn_mask, params, num_heads):
    la = _attention_ref(lang, visn, visn_mask, params["cross"], num_heads)
    va = _attention_ref(visn, lang, lang_mask, params["cross"], num_heads)
    la = _attention_ref(la, la, lang_mask, params["lang_self"], num_heads)
    va = _attention_ref(va, va, visn_mask, params["visn_self"], num_heads)
    return _ffn_ref(la, params["lang_ffn"]), _ffn_ref(va, params["visn_ffn"])


# ----------------------------------------------------------------------------
if __name__ == "__main__":
    key = jax.random.PRNGKey(0)
    B, S_L, S_V, HID, NH, INTER = 2, 8, 8, 32, 4, 64
    k0, k1, k2, k3, k4 = jax.random.split(key, 5)

    lang = jax.random.normal(k0, (B, S_L, HID), jnp.float32)
    visn = jax.random.normal(k1, (B, S_V, HID), jnp.float32)
    lang_mask = jnp.where(jax.random.uniform(k2, (B, 1, S_L)) < 0.85,
                          0.0, -10000.0).astype(jnp.float32)
    visn_mask = jnp.where(jax.random.uniform(k3, (B, 1, S_V)) < 0.85,
                          0.0, -10000.0).astype(jnp.float32)
    params = init_params(k4, HID, INTER)

    ref_l, ref_v = _reference(lang, lang_mask, visn, visn_mask, params, NH)

    # f32 path: strict correctness check against the pure-JAX reference.
    fwd_f32 = jax.jit(functools.partial(lxrt_x_layer_forward, num_heads=NH,
                                        compute_dtype=jnp.float32))
    lang_out, visn_out = jax.block_until_ready(
        fwd_f32(lang, lang_mask, visn, visn_mask, params))
    assert lang_out.shape == (B, S_L, HID) and visn_out.shape == (B, S_V, HID)
    assert jnp.allclose(lang_out, ref_l, atol=2e-3, rtol=2e-3)
    assert jnp.allclose(visn_out, ref_v, atol=2e-3, rtol=2e-3)

    # default fast path: bf16 matmul operands / weights, f32 residual + LN.
    fwd_bf16 = jax.jit(functools.partial(lxrt_x_layer_forward, num_heads=NH))
    l16, v16 = jax.block_until_ready(
        fwd_bf16(lang, lang_mask, visn, visn_mask, params))
    assert jnp.allclose(l16, ref_l, atol=0.1, rtol=0.05)
    assert jnp.allclose(v16, ref_v, atol=0.1, rtol=0.05)

    print("KERNEL_OK")
</pallas_src>

<mosaic_0001>
module attributes {stable_mosaic.version = 11 : i64} {
  func.func @_attention_kernel(%arg0: i32, %arg1: i32, %arg2: i32, %arg3: memref<1x8x32xf32, #tpu.memory_space<vmem>>, %arg4: memref<1x8x32xf32, #tpu.memory_space<vmem>>, %arg5: memref<1x1x8xf32, #tpu.memory_space<vmem>>, %arg6: memref<32x32xf32, #tpu.memory_space<vmem>>, %arg7: memref<1x32xf32, #tpu.memory_space<vmem>>, %arg8: memref<32x32xf32, #tpu.memory_space<vmem>>, %arg9: memref<1x32xf32, #tpu.memory_space<vmem>>, %arg10: memref<32x32xf32, #tpu.memory_space<vmem>>, %arg11: memref<1x32xf32, #tpu.memory_space<vmem>>, %arg12: memref<32x32xf32, #tpu.memory_space<vmem>>, %arg13: memref<1x32xf32, #tpu.memory_space<vmem>>, %arg14: memref<1x32xf32, #tpu.memory_space<vmem>>, %arg15: memref<1x32xf32, #tpu.memory_space<vmem>>, %arg16: memref<1x8x32xf32, #tpu.memory_space<vmem>>, %arg17: memref<4x8x8xf32, #tpu.memory_space<vmem>>, %arg18: memref<4x8x8xf32, #tpu.memory_space<vmem>>, %arg19: memref<4x8x8xf32, #tpu.memory_space<vmem>>, %arg20: memref<4x8x1xf32, #tpu.memory_space<vmem>>, %arg21: memref<4x8x1xf32, #tpu.memory_space<vmem>>, %arg22: memref<4x8x8xf32, #tpu.memory_space<vmem>>) attributes {dimension_semantics = [#tpu.dimension_semantics<parallel>, #tpu.dimension_semantics<parallel>, #tpu.dimension_semantics<arbitrary>], iteration_bounds = array<i64: 4, 1, 1>, scalar_prefetch = 0 : i64, scratch_operands = 6 : i64, tpu.core_type = #tpu.core_type<tc>, window_params = [{transform_indices = @transform_0, window_bounds = array<i64: 1, 8, 32>}, {transform_indices = @transform_1, window_bounds = array<i64: 1, 8, 32>}, {transform_indices = @transform_2, window_bounds = array<i64: 1, 1, 8>}, {pipeline_mode = #tpu.pipeline_mode<synchronous>, transform_indices = @transform_3, window_bounds = array<i64: 32, 32>}, {pipeline_mode = #tpu.pipeline_mode<synchronous>, transform_indices = @transform_4, window_bounds = array<i64: 1, 32>}, {pipeline_mode = #tpu.pipeline_mode<synchronous>, transform_indices = @transform_5, window_bounds = array<i64: 32, 32>}, {pipeline_mode = #tpu.pipeline_mode<synchronous>, transform_indices = @transform_6, window_bounds = array<i64: 1, 32>}, {pipeline_mode = #tpu.pipeline_mode<synchronous>, transform_indices = @transform_7, window_bounds = array<i64: 32, 32>}, {pipeline_mode = #tpu.pipeline_mode<synchronous>, transform_indices = @transform_8, window_bounds = array<i64: 1, 32>}, {pipeline_mode = #tpu.pipeline_mode<synchronous>, transform_indices = @transform_9, window_bounds = array<i64: 32, 32>}, {pipeline_mode = #tpu.pipeline_mode<synchronous>, transform_indices = @transform_10, window_bounds = array<i64: 1, 32>}, {pipeline_mode = #tpu.pipeline_mode<synchronous>, transform_indices = @transform_11, window_bounds = array<i64: 1, 32>}, {pipeline_mode = #tpu.pipeline_mode<synchronous>, transform_indices = @transform_12, window_bounds = array<i64: 1, 32>}, {transform_indices = @transform_13, window_bounds = array<i64: 1, 8, 32>}]} {
    %c0_i32 = arith.constant 0 : i32
    %0 = arith.cmpi eq, %arg2, %c0_i32 : i32
    %1 = arith.extui %0 : i1 to i32
    %c0_i32_0 = arith.constant 0 : i32
    %2 = arith.cmpi ne, %1, %c0_i32_0 : i32
    scf.if %2 {
      %c0_70 = arith.constant 0 : index
      %c0_71 = arith.constant 0 : index
      %c0_72 = arith.constant 0 : index
      %83 = vector.load %arg3[%c0_70, %c0_71, %c0_72] : memref<1x8x32xf32, #tpu.memory_space<vmem>>, vector<1x8x32xf32>
      %84 = vector.shape_cast %83 : vector<1x8x32xf32> to vector<8x32xf32>
      %c0_73 = arith.constant 0 : index
      %c0_74 = arith.constant 0 : index
      %85 = vector.load %arg6[%c0_73, %c0_74] : memref<32x32xf32, #tpu.memory_space<vmem>>, vector<32x32xf32>
      %cst_75 = arith.constant dense<0.000000e+00> : vector<8x32xf32>
      %86 = tpu.matmul %84, %85, %cst_75 {dimension_numbers = #tpu.dot_dimension_numbers<[1], [0], [0], [1], [0, 0, 1, 1], [], []>} : vector<8x32xf32>, vector<32x32xf32>, vector<8x32xf32> -> vector<8x32xf32>
      %c0_76 = arith.constant 0 : index
      %c0_77 = arith.constant 0 : index
      %87 = vector.load %arg7[%c0_76, %c0_77] : memref<1x32xf32, #tpu.memory_space<vmem>>, vector<1x32xf32>
      %88 = vector.broadcast %87 : vector<1x32xf32> to vector<8x32xf32>
      %89 = arith.addf %86, %88 : vector<8x32xf32>
      %90 = vector.extract_strided_slice %89 {offsets = [0, 0], sizes = [8, 8], strides = [1, 1]} : vector<8x32xf32> to vector<8x8xf32>
      %c0_78 = arith.constant 0 : index
      %c0_79 = arith.constant 0 : index
      %c0_80 = arith.constant 0 : index
      %91 = vector.load %arg17[%c0_78, %c0_79, %c0_80] : memref<4x8x8xf32, #tpu.memory_space<vmem>>, vector<1x8x8xf32>
      %92 = vector.shape_cast %91 : vector<1x8x8xf32> to vector<8x8xf32>
      %93 = vector.shape_cast %90 : vector<8x8xf32> to vector<1x8x8xf32>
      tpu.vector_store %arg17[%c0_78, %c0_79, %c0_80], %93 {strides = array<i32>} : memref<4x8x8xf32, #tpu.memory_space<vmem>>, vector<1x8x8xf32>,
      %94 = vector.extract_strided_slice %89 {offsets = [0, 8], sizes = [8, 8], strides = [1, 1]} : vector<8x32xf32> to vector<8x8xf32>
      %c1_81 = arith.constant 1 : index
      %c0_82 = arith.constant 0 : index
      %c0_83 = arith.constant 0 : index
      %95 = vector.load %arg17[%c1_81, %c0_82, %c0_83] : memref<4x8x8xf32, #tpu.memory_space<vmem>>, vector<1x8x8xf32>
      %96 = vector.shape_cast %95 : vector<1x8x8xf32> to vector<8x8xf32>
      %97 = vector.shape_cast %94 : vector<8x8xf32> to vector<1x8x8xf32>
      tpu.vector_store %arg17[%c1_81, %c0_82, %c0_83], %97 {strides = array<i32>} : memref<4x8x8xf32, #tpu.memory_space<vmem>>, vector<1x8x8xf32>,
      %98 = vector.extract_strided_slice %89 {offsets = [0, 16], sizes = [8, 8], strides = [1, 1]} : vector<8x32xf32> to vector<8x8xf32>
      %c2_84 = arith.constant 2 : index
      %c0_85 = arith.constant 0 : index
      %c0_86 = arith.constant 0 : index
      %99 = vector.load %arg17[%c2_84, %c0_85, %c0_86] : memref<4x8x8xf32, #tpu.memory_space<vmem>>, vector<1x8x8xf32>
      %100 = vector.shape_cast %99 : vector<1x8x8xf32> to vector<8x8xf32>
      %101 = vector.shape_cast %98 : vector<8x8xf32> to vector<1x8x8xf32>
      tpu.vector_store %arg17[%c2_84, %c0_85, %c0_86], %101 {strides = array<i32>} : memref<4x8x8xf32, #tpu.memory_space<vmem>>, vector<1x8x8xf32>,
      %102 = vector.extract_strided_slice %89 {offsets = [0, 24], sizes = [8, 8], strides = [1, 1]} : vector<8x32xf32> to vector<8x8xf32>
      %c3_87 = arith.constant 3 : index
      %c0_88 = arith.constant 0 : index
      %c0_89 = arith.constant 0 : index
      %103 = vector.load %arg17[%c3_87, %c0_88, %c0_89] : memref<4x8x8xf32, #tpu.memory_space<vmem>>, vector<1x8x8xf32>
      %104 = vector.shape_cast %103 : vector<1x8x8xf32> to vector<8x8xf32>
      %105 = vector.shape_cast %102 : vector<8x8xf32> to vector<1x8x8xf32>
      tpu.vector_store %arg17[%c3_87, %c0_88, %c0_89], %105 {strides = array<i32>} : memref<4x8x8xf32, #tpu.memory_space<vmem>>, vector<1x8x8xf32>,
      %cst_90 = arith.constant 0xFF800000 : f32
      %106 = vector.broadcast %cst_90 : f32 to vector<4x8x1xf32>
      %c0_91 = arith.constant 0 : index
      %c0_92 = arith.constant 0 : index
      %c0_93 = arith.constant 0 : index
      %107 = vector.load %arg20[%c0_91, %c0_92, %c0_93] : memref<4x8x1xf32, #tpu.memory_space<vmem>>, vector<4x8x1xf32>
      tpu.vector_store %arg20[%c0_91, %c0_92, %c0_93], %106 {strides = array<i32>} : memref<4x8x1xf32, #tpu.memory_space<vmem>>, vector<4x8x1xf32>,
      %cst_94 = arith.constant 0.000000e+00 : f32
      %108 = vector.broadcast %cst_94 : f32 to vector<4x8x1xf32>
      %c0_95 = arith.constant 0 : index
      %c0_96 = arith.constant 0 : index
      %c0_97 = arith.constant 0 : index
      %109 = vector.load %arg21[%c0_95, %c0_96, %c0_97] : memref<4x8x1xf32, #tpu.memory_space<vmem>>, vector<4x8x1xf32>
      tpu.vector_store %arg21[%c0_95, %c0_96, %c0_97], %108 {strides = array<i32>} : memref<4x8x1xf32, #tpu.memory_space<vmem>>, vector<4x8x1xf32>,
      %cst_98 = arith.constant 0.000000e+00 : f32
      %110 = vector.broadcast %cst_98 : f32 to vector<4x8x8xf32>
      %c0_99 = arith.constant 0 : index
      %c0_100 = arith.constant 0 : index
      %c0_101 = arith.constant 0 : index
      %111 = vector.load %arg22[%c0_99, %c0_100, %c0_101] : memref<4x8x8xf32, #tpu.memory_space<vmem>>, vector<4x8x8xf32>
      tpu.vector_store %arg22[%c0_99, %c0_100, %c0_101], %110 {strides = array<i32>} : memref<4x8x8xf32, #tpu.memory_space<vmem>>, vector<4x8x8xf32>,
    } else {
    }
    %c0 = arith.constant 0 : index
    %c0_1 = arith.constant 0 : index
    %c0_2 = arith.constant 0 : index
    %3 = vector.load %arg4[%c0, %c0_1, %c0_2] : memref<1x8x32xf32, #tpu.memory_space<vmem>>, vector<1x8x32xf32>
    %4 = vector.shape_cast %3 : vector<1x8x32xf32> to vector<8x32xf32>
    %c0_3 = arith.constant 0 : index
    %c0_4 = arith.constant 0 : index
    %5 = vector.load %arg8[%c0_3, %c0_4] : memref<32x32xf32, #tpu.memory_space<vmem>>, vector<32x32xf32>
    %cst = arith.constant dense<0.000000e+00> : vector<8x32xf32>
    %6 = tpu.matmul %4, %5, %cst {dimension_numbers = #tpu.dot_dimension_numbers<[1], [0], [0], [1], [0, 0, 1, 1], [], []>} : vector<8x32xf32>, vector<32x32xf32>, vector<8x32xf32> -> vector<8x32xf32>
    %c0_5 = arith.constant 0 : index
    %c0_6 = arith.constant 0 : index
    %7 = vector.load %arg9[%c0_5, %c0_6] : memref<1x32xf32, #tpu.memory_space<vmem>>, vector<1x32xf32>
    %8 = vector.broadcast %7 : vector<1x32xf32> to vector<8x32xf32>
    %9 = arith.addf %6, %8 : vector<8x32xf32>
    %c0_7 = arith.constant 0 : index
    %c0_8 = arith.constant 0 : index
    %10 = vector.load %arg10[%c0_7, %c0_8] : memref<32x32xf32, #tpu.memory_space<vmem>>, vector<32x32xf32>
    %cst_9 = arith.constant dense<0.000000e+00> : vector<8x32xf32>
    %11 = tpu.matmul %4, %10, %cst_9 {dimension_numbers = #tpu.dot_dimension_numbers<[1], [0], [0], [1], [0, 0, 1, 1], [], []>} : vector<8x32xf32>, vector<32x32xf32>, vector<8x32xf32> -> vector<8x32xf32>
    %c0_10 = arith.constant 0 : index
    %c0_11 = arith.constant 0 : index
    %12 = vector.load %arg11[%c0_10, %c0_11] : memref<1x32xf32, #tpu.memory_space<vmem>>, vector<1x32xf32>
    %13 = vector.broadcast %12 : vector<1x32xf32> to vector<8x32xf32>
    %14 = arith.addf %11, %13 : vector<8x32xf32>
    %15 = vector.extract_strided_slice %9 {offsets = [0, 0], sizes = [8, 8], strides = [1, 1]} : vector<8x32xf32> to vector<8x8xf32>
    %c0_12 = arith.constant 0 : index
    %c0_13 = arith.constant 0 : index
    %c0_14 = arith.constant 0 : index
    %16 = vector.load %arg18[%c0_12, %c0_13, %c0_14] : memref<4x8x8xf32, #tpu.memory_space<vmem>>, vector<1x8x8xf32>
    %17 = vector.shape_cast %16 : vector<1x8x8xf32> to vector<8x8xf32>
    %18 = vector.shape_cast %15 : vector<8x8xf32> to vector<1x8x8xf32>
    tpu.vector_store %arg18[%c0_12, %c0_13, %c0_14], %18 {strides = array<i32>} : memref<4x8x8xf32, #tpu.memory_space<vmem>>, vector<1x8x8xf32>,
    %19 = vector.extract_strided_slice %14 {offsets = [0, 0], sizes = [8, 8], strides = [1, 1]} : vector<8x32xf32> to vector<8x8xf32>
    %c0_15 = arith.constant 0 : index
    %c0_16 = arith.constant 0 : index
    %c0_17 = arith.constant 0 : index
    %20 = vector.load %arg19[%c0_15, %c0_16, %c0_17] : memref<4x8x8xf32, #tpu.memory_space<vmem>>, vector<1x8x8xf32>
    %21 = vector.shape_cast %20 : vector<1x8x8xf32> to vector<8x8xf32>
    %22 = vector.shape_cast %19 : vector<8x8xf32> to vector<1x8x8xf32>
    tpu.vector_store %arg19[%c0_15, %c0_16, %c0_17], %22 {strides = array<i32>} : memref<4x8x8xf32, #tpu.memory_space<vmem>>, vector<1x8x8xf32>,
    %23 = vector.extract_strided_slice %9 {offsets = [0, 8], sizes = [8, 8], strides = [1, 1]} : vector<8x32xf32> to vector<8x8xf32>
    %c1 = arith.constant 1 : index
    %c0_18 = arith.constant 0 : index
    %c0_19 = arith.constant 0 : index
    %24 = vector.load %arg18[%c1, %c0_18, %c0_19] : memref<4x8x8xf32, #tpu.memory_space<vmem>>, vector<1x8x8xf32>
    %25 = vector.shape_cast %24 : vector<1x8x8xf32> to vector<8x8xf32>
    %26 = vector.shape_cast %23 : vector<8x8xf32> to vector<1x8x8xf32>
    tpu.vector_store %arg18[%c1, %c0_18, %c0_19], %26 {strides = array<i32>} : memref<4x8x8xf32, #tpu.memory_space<vmem>>, vector<1x8x8xf32>,
    %27 = vector.extract_strided_slice %14 {offsets = [0, 8], sizes = [8, 8], strides = [1, 1]} : vector<8x32xf32> to vector<8x8xf32>
    %c1_20 = arith.constant 1 : index
    %c0_21 = arith.constant 0 : index
    %c0_22 = arith.constant 0 : index
    %28 = vector.load %arg19[%c1_20, %c0_21, %c0_22] : memref<4x8x8xf32, #tpu.memory_space<vmem>>, vector<1x8x8xf32>
    %29 = vector.shape_cast %28 : vector<1x8x8xf32> to vector<8x8xf32>
    %30 = vector.shape_cast %27 : vector<8x8xf32> to vector<1x8x8xf32>
    tpu.vector_store %arg19[%c1_20, %c0_21, %c0_22], %30 {strides = array<i32>} : memref<4x8x8xf32, #tpu.memory_space<vmem>>, vector<1x8x8xf32>,
    %31 = vector.extract_strided_slice %9 {offsets = [0, 16], sizes = [8, 8], strides = [1, 1]} : vector<8x32xf32> to vector<8x8xf32>
    %c2 = arith.constant 2 : index
    %c0_23 = arith.constant 0 : index
    %c0_24 = arith.constant 0 : index
    %32 = vector.load %arg18[%c2, %c0_23, %c0_24] : memref<4x8x8xf32, #tpu.memory_space<vmem>>, vector<1x8x8xf32>
    %33 = vector.shape_cast %32 : vector<1x8x8xf32> to vector<8x8xf32>
    %34 = vector.shape_cast %31 : vector<8x8xf32> to vector<1x8x8xf32>
    tpu.vector_store %arg18[%c2, %c0_23, %c0_24], %34 {strides = array<i32>} : memref<4x8x8xf32, #tpu.memory_space<vmem>>, vector<1x8x8xf32>,
    %35 = vector.extract_strided_slice %14 {offsets = [0, 16], sizes = [8, 8], strides = [1, 1]} : vector<8x32xf32> to vector<8x8xf32>
    %c2_25 = arith.constant 2 : index
    %c0_26 = arith.constant 0 : index
    %c0_27 = arith.constant 0 : index
    %36 = vector.load %arg19[%c2_25, %c0_26, %c0_27] : memref<4x8x8xf32, #tpu.memory_space<vmem>>, vector<1x8x8xf32>
    %37 = vector.shape_cast %36 : vector<1x8x8xf32> to vector<8x8xf32>
    %38 = vector.shape_cast %35 : vector<8x8xf32> to vector<1x8x8xf32>
    tpu.vector_store %arg19[%c2_25, %c0_26, %c0_27], %38 {strides = array<i32>} : memref<4x8x8xf32, #tpu.memory_space<vmem>>, vector<1x8x8xf32>,
    %39 = vector.extract_strided_slice %9 {offsets = [0, 24], sizes = [8, 8], strides = [1, 1]} : vector<8x32xf32> to vector<8x8xf32>
    %c3 = arith.constant 3 : index
    %c0_28 = arith.constant 0 : index
    %c0_29 = arith.constant 0 : index
    %40 = vector.load %arg18[%c3, %c0_28, %c0_29] : memref<4x8x8xf32, #tpu.memory_space<vmem>>, vector<1x8x8xf32>
    %41 = vector.shape_cast %40 : vector<1x8x8xf32> to vector<8x8xf32>
    %42 = vector.shape_cast %39 : vector<8x8xf32> to vector<1x8x8xf32>
    tpu.vector_store %arg18[%c3, %c0_28, %c0_29], %42 {strides = array<i32>} : memref<4x8x8xf32, #tpu.memory_space<vmem>>, vector<1x8x8xf32>,
    %43 = vector.extract_strided_slice %14 {offsets = [0, 24], sizes = [8, 8], strides = [1, 1]} : vector<8x32xf32> to vector<8x8xf32>
    %c3_30 = arith.constant 3 : index
    %c0_31 = arith.constant 0 : index
    %c0_32 = arith.constant 0 : index
    %44 = vector.load %arg19[%c3_30, %c0_31, %c0_32] : memref<4x8x8xf32, #tpu.memory_space<vmem>>, vector<1x8x8xf32>
    %45 = vector.shape_cast %44 : vector<1x8x8xf32> to vector<8x8xf32>
    %46 = vector.shape_cast %43 : vector<8x8xf32> to vector<1x8x8xf32>
    tpu.vector_store %arg19[%c3_30, %c0_31, %c0_32], %46 {strides = array<i32>} : memref<4x8x8xf32, #tpu.memory_space<vmem>>, vector<1x8x8xf32>,
    %c0_33 = arith.constant 0 : index
    %c0_34 = arith.constant 0 : index
    %c0_35 = arith.constant 0 : index
    %47 = vector.load %arg17[%c0_33, %c0_34, %c0_35] : memref<4x8x8xf32, #tpu.memory_space<vmem>>, vector<4x8x8xf32>
    %c0_36 = arith.constant 0 : index
    %c0_37 = arith.constant 0 : index
    %c0_38 = arith.constant 0 : index
    %48 = vector.load %arg18[%c0_36, %c0_37, %c0_38] : memref<4x8x8xf32, #tpu.memory_space<vmem>>, vector<4x8x8xf32>
    %cst_39 = arith.constant dense<0.000000e+00> : vector<4x8x8xf32>
    %49 = tpu.matmul %47, %48, %cst_39 {dimension_numbers = #tpu.dot_dimension_numbers<[2], [2], [1], [1], [0, 0, 0, 1, 1, 1], [0], [0]>} : vector<4x8x8xf32>, vector<4x8x8xf32>, vector<4x8x8xf32> -> vector<4x8x8xf32>
    %cst_40 = arith.constant 0.353553385 : f32
    %50 = vector.broadcast %cst_40 : f32 to vector<4x8x8xf32>
    %51 = arith.mulf %49, %50 : vector<4x8x8xf32>
    %c0_41 = arith.constant 0 : index
    %c0_42 = arith.constant 0 : index
    %c0_43 = arith.constant 0 : index
    %52 = vector.load %arg5[%c0_41, %c0_42, %c0_43] : memref<1x1x8xf32, #tpu.memory_space<vmem>>, vector<1x1x8xf32>
    %53 = vector.shape_cast %52 : vector<1x1x8xf32> to vector<1x8xf32>
    %54 = vector.shape_cast %53 : vector<1x8xf32> to vector<1x1x8xf32>
    %55 = vector.broadcast %54 : vector<1x1x8xf32> to vector<4x8x8xf32>
    %56 = arith.addf %51, %55 : vector<4x8x8xf32>
    %c0_44 = arith.constant 0 : index
    %c0_45 = arith.constant 0 : index
    %c0_46 = arith.constant 0 : index
    %57 = vector.load %arg20[%c0_44, %c0_45, %c0_46] : memref<4x8x1xf32, #tpu.memory_space<vmem>>, vector<4x8x1xf32>
    %cst_47 = arith.constant dense<0xFF800000> : vector<4x8xf32>
    %58 = vector.multi_reduction <maximumf>, %56, %cst_47 [2] : vector<4x8x8xf32> to vector<4x8xf32>
    %59 = vector.shape_cast %58 : vector<4x8xf32> to vector<4x8x1xf32>
    %60 = arith.maximumf %57, %59 : vector<4x8x1xf32>
    %61 = arith.subf %57, %60 : vector<4x8x1xf32>
    %62 = math.exp %61 : vector<4x8x1xf32>
    %63 = vector.broadcast %60 : vector<4x8x1xf32> to vector<4x8x8xf32>
    %64 = arith.subf %56, %63 : vector<4x8x8xf32>
    %65 = math.exp %64 : vector<4x8x8xf32>
    %c0_48 = arith.constant 0 : index
    %c0_49 = arith.constant 0 : index
    %c0_50 = arith.constant 0 : index
    %66 = vector.load %arg21[%c0_48, %c0_49, %c0_50] : memref<4x8x1xf32, #tpu.memory_space<vmem>>, vector<4x8x1xf32>
    %67 = arith.mulf %62, %66 : vector<4x8x1xf32>
    %cst_51 = arith.constant dense<0.000000e+00> : vector<4x8xf32>
    %68 = vector.multi_reduction <add>, %65, %cst_51 [2] : vector<4x8x8xf32> to vector<4x8xf32>
    %69 = vector.shape_cast %68 : vector<4x8xf32> to vector<4x8x1xf32>
    %70 = arith.addf %67, %69 : vector<4x8x1xf32>
    %c0_52 = arith.constant 0 : index
    %c0_53 = arith.constant 0 : index
    %c0_54 = arith.constant 0 : index
    %71 = vector.load %arg21[%c0_52, %c0_53, %c0_54] : memref<4x8x1xf32, #tpu.memory_space<vmem>>, vector<4x8x1xf32>
    tpu.vector_store %arg21[%c0_52, %c0_53, %c0_54], %70 {strides = array<i32>} : memref<4x8x1xf32, #tpu.memory_space<vmem>>, vector<4x8x1xf32>,
    %c0_55 = arith.constant 0 : index
    %c0_56 = arith.constant 0 : index
    %c0_57 = arith.constant 0 : index
    %72 = vector.load %arg19[%c0_55, %c0_56, %c0_57] : memref<4x8x8xf32, #tpu.memory_space<vmem>>, vector<4x8x8xf32>
    %cst_58 = arith.constant dense<0.000000e+00> : vector<4x8x8xf32>
    %73 = tpu.matmul %65, %72, %cst_58 {dimension_numbers = #tpu.dot_dimension_numbers<[2], [1], [1], [2], [0, 0, 0, 1, 1, 2], [0], [0]>} : vector<4x8x8xf32>, vector<4x8x8xf32>, vector<4x8x8xf32> -> vector<4x8x8xf32>
    %c0_59 = arith.constant 0 : index
    %c0_60 = arith.constant 0 : index
    %c0_61 = arith.constant 0 : index
    %74 = vector.load %arg22[%c0_59, %c0_60, %c0_61] : memref<4x8x8xf32, #tpu.memory_space<vmem>>, vector<4x8x8xf32>
    %75 = vector.broadcast %62 : vector<4x8x1xf32> to vector<4x8x8xf32>
    %76 = arith.mulf %75, %74 : vector<4x8x8xf32>
    %77 = arith.addf %76, %73 : vector<4x8x8xf32>
    %c0_62 = arith.constant 0 : index
    %c0_63 = arith.constant 0 : index
    %c0_64 = arith.constant 0 : index
    %78 = vector.load %arg22[%c0_62, %c0_63, %c0_64] : memref<4x8x8xf32, #tpu.memory_space<vmem>>, vector<4x8x8xf32>
    tpu.vector_store %arg22[%c0_62, %c0_63, %c0_64], %77 {strides = array<i32>} : memref<4x8x8xf32, #tpu.memory_space<vmem>>, vector<4x8x8xf32>,
    %c0_65 = arith.constant 0 : index
    %c0_66 = arith.constant 0 : index
    %c0_67 = arith.constant 0 : index
    %79 = vector.load %arg20[%c0_65, %c0_66, %c0_67] : memref<4x8x1xf32, #tpu.memory_space<vmem>>, vector<4x8x1xf32>
    tpu.vector_store %arg20[%c0_65, %c0_66, %c0_67], %60 {strides = array<i32>} : memref<4x8x1xf32, #tpu.memory_space<vmem>>, vector<4x8x1xf32>,
    %c0_i32_68 = arith.constant 0 : i32
    %80 = arith.cmpi eq, %arg2, %c0_i32_68 : i32
    %81 = arith.extui %80 : i1 to i32
    %c0_i32_69 = arith.constant 0 : i32
    %82 = arith.cmpi ne, %81, %c0_i32_69 : i32
    scf.if %82 {
      %c0_70 = arith.constant 0 : index
      %c0_71 = arith.constant 0 : index
      %c0_72 = arith.constant 0 : index
      %83 = vector.load %arg21[%c0_70, %c0_71, %c0_72] : memref<4x8x1xf32, #tpu.memory_space<vmem>>, vector<1x8x1xf32>
      %84 = vector.shape_cast %83 : vector<1x8x1xf32> to vector<8x1xf32>
      %85 = tpu.reciprocal %84 : vector<8x1xf32> -> vector<8x1xf32>
      %c0_73 = arith.constant 0 : index
      %c0_74 = arith.constant 0 : index
      %c0_75 = arith.constant 0 : index
      %86 = vector.load %arg22[%c0_73, %c0_74, %c0_75] : memref<4x8x8xf32, #tpu.memory_space<vmem>>, vector<1x8x8xf32>
      %87 = vector.shape_cast %86 : vector<1x8x8xf32> to vector<8x8xf32>
      %88 = vector.broadcast %85 : vector<8x1xf32> to vector<8x8xf32>
      %89 = arith.mulf %87, %88 : vector<8x8xf32>
      %c1_76 = arith.constant 1 : index
      %c0_77 = arith.constant 0 : index
      %c0_78 = arith.constant 0 : index
      %90 = vector.load %arg21[%c1_76, %c0_77, %c0_78] : memref<4x8x1xf32, #tpu.memory_space<vmem>>, vector<1x8x1xf32>
      %91 = vector.shape_cast %90 : vector<1x8x1xf32> to vector<8x1xf32>
      %92 = tpu.reciprocal %91 : vector<8x1xf32> -> vector<8x1xf32>
      %c1_79 = arith.constant 1 : index
      %c0_80 = arith.constant 0 : index
      %c0_81 = arith.constant 0 : index
      %93 = vector.load %arg22[%c1_79, %c0_80, %c0_81] : memref<4x8x8xf32, #tpu.memory_space<vmem>>, vector<1x8x8xf32>
      %94 = vector.shape_cast %93 : vector<1x8x8xf32> to vector<8x8xf32>
      %95 = vector.broadcast %92 : vector<8x1xf32> to vector<8x8xf32>
      %96 = arith.mulf %94, %95 : vector<8x8xf32>
      %c2_82 = arith.constant 2 : index
      %c0_83 = arith.constant 0 : index
      %c0_84 = arith.constant 0 : index
      %97 = vector.load %arg21[%c2_82, %c0_83, %c0_84] : memref<4x8x1xf32, #tpu.memory_space<vmem>>, vector<1x8x1xf32>
      %98 = vector.shape_cast %97 : vector<1x8x1xf32> to vector<8x1xf32>
      %99 = tpu.reciprocal %98 : vector<8x1xf32> -> vector<8x1xf32>
      %c2_85 = arith.constant 2 : index
      %c0_86 = arith.constant 0 : index
      %c0_87 = arith.constant 0 : index
      %100 = vector.load %arg22[%c2_85, %c0_86, %c0_87] : memref<4x8x8xf32, #tpu.memory_space<vmem>>, vector<1x8x8xf32>
      %101 = vector.shape_cast %100 : vector<1x8x8xf32> to vector<8x8xf32>
      %102 = vector.broadcast %99 : vector<8x1xf32> to vector<8x8xf32>
      %103 = arith.mulf %101, %102 : vector<8x8xf32>
      %c3_88 = arith.constant 3 : index
      %c0_89 = arith.constant 0 : index
      %c0_90 = arith.constant 0 : index
      %104 = vector.load %arg21[%c3_88, %c0_89, %c0_90] : memref<4x8x1xf32, #tpu.memory_space<vmem>>, vector<1x8x1xf32>
      %105 = vector.shape_cast %104 : vector<1x8x1xf32> to vector<8x1xf32>
      %106 = tpu.reciprocal %105 : vector<8x1xf32> -> vector<8x1xf32>
      %c3_91 = arith.constant 3 : index
      %c0_92 = arith.constant 0 : index
      %c0_93 = arith.constant 0 : index
      %107 = vector.load %arg22[%c3_91, %c0_92, %c0_93] : memref<4x8x8xf32, #tpu.memory_space<vmem>>, vector<1x8x8xf32>
      %108 = vector.shape_cast %107 : vector<1x8x8xf32> to vector<8x8xf32>
      %109 = vector.broadcast %106 : vector<8x1xf32> to vector<8x8xf32>
      %110 = arith.mulf %108, %109 : vector<8x8xf32>
      %111 = tpu.concatenate %89, %96, %103, %110 in 1 : vector<8x8xf32>, vector<8x8xf32>, vector<8x8xf32>, vector<8x8xf32> -> vector<8x32xf32>
      %c0_94 = arith.constant 0 : index
      %c0_95 = arith.constant 0 : index
      %112 = vector.load %arg12[%c0_94, %c0_95] : memref<32x32xf32, #tpu.memory_space<vmem>>, vector<32x32xf32>
      %cst_96 = arith.constant dense<0.000000e+00> : vector<8x32xf32>
      %113 = tpu.matmul %111, %112, %cst_96 {dimension_numbers = #tpu.dot_dimension_numbers<[1], [0], [0], [1], [0, 0, 1, 1], [], []>} : vector<8x32xf32>, vector<32x32xf32>, vector<8x32xf32> -> vector<8x32xf32>
      %c0_97 = arith.constant 0 : index
      %c0_98 = arith.constant 0 : index
      %114 = vector.load %arg13[%c0_97, %c0_98] : memref<1x32xf32, #tpu.memory_space<vmem>>, vector<1x32xf32>
      %115 = vector.broadcast %114 : vector<1x32xf32> to vector<8x32xf32>
      %116 = arith.addf %113, %115 : vector<8x32xf32>
      %c0_99 = arith.constant 0 : index
      %c0_100 = arith.constant 0 : index
      %c0_101 = arith.constant 0 : index
      %117 = vector.load %arg3[%c0_99, %c0_100, %c0_101] : memref<1x8x32xf32, #tpu.memory_space<vmem>>, vector<1x8x32xf32>
      %118 = vector.shape_cast %117 : vector<1x8x32xf32> to vector<8x32xf32>
      %119 = arith.addf %116, %118 : vector<8x32xf32>
      %c0_102 = arith.constant 0 : index
      %c0_103 = arith.constant 0 : index
      %120 = vector.load %arg14[%c0_102, %c0_103] : memref<1x32xf32, #tpu.memory_space<vmem>>, vector<1x32xf32>
      %c0_104 = arith.constant 0 : index
      %c0_105 = arith.constant 0 : index
      %121 = vector.load %arg15[%c0_104, %c0_105] : memref<1x32xf32, #tpu.memory_space<vmem>>, vector<1x32xf32>
      %cst_106 = arith.constant dense<0.000000e+00> : vector<8xf32>
      %122 = vector.multi_reduction <add>, %119, %cst_106 [1] : vector<8x32xf32> to vector<8xf32>
      %123 = vector.shape_cast %122 : vector<8xf32> to vector<8x1xf32>
      %cst_107 = arith.constant 3.200000e+01 : f32
      %124 = vector.broadcast %cst_107 : f32 to vector<8x1xf32>
      %125 = arith.divf %123, %124 : vector<8x1xf32>
      %126 = vector.broadcast %125 : vector<8x1xf32> to vector<8x32xf32>
      %127 = arith.subf %119, %126 : vector<8x32xf32>
      %128 = arith.mulf %127, %127 : vector<8x32xf32>
      %cst_108 = arith.constant dense<0.000000e+00> : vector<8xf32>
      %129 = vector.multi_reduction <add>, %128, %cst_108 [1] : vector<8x32xf32> to vector<8xf32>
      %130 = vector.shape_cast %129 : vector<8xf32> to vector<8x1xf32>
      %cst_109 = arith.constant 3.200000e+01 : f32
      %131 = vector.broadcast %cst_109 : f32 to vector<8x1xf32>
      %132 = arith.divf %130, %131 : vector<8x1xf32>
      %cst_110 = arith.constant 9.99999996E-13 : f32
      %133 = vector.broadcast %cst_110 : f32 to vector<8x1xf32>
      %134 = arith.addf %132, %133 : vector<8x1xf32>
      %135 = math.rsqrt %134 : vector<8x1xf32>
      %136 = vector.broadcast %135 : vector<8x1xf32> to vector<8x32xf32>
      %137 = arith.mulf %127, %136 : vector<8x32xf32>
      %138 = vector.broadcast %120 : vector<1x32xf32> to vector<8x32xf32>
      %139 = arith.mulf %137, %138 : vector<8x32xf32>
      %140 = vector.broadcast %121 : vector<1x32xf32> to vector<8x32xf32>
      %141 = arith.addf %139, %140 : vector<8x32xf32>
      %c0_111 = arith.constant 0 : index
      %c0_112 = arith.constant 0 : index
      %c0_113 = arith.constant 0 : index
      %142 = vector.load %arg16[%c0_111, %c0_112, %c0_113] : memref<1x8x32xf32, #tpu.memory_space<vmem>>, vector<1x8x32xf32>
      %143 = vector.shape_cast %142 : vector<1x8x32xf32> to vector<8x32xf32>
      %144 = vector.shape_cast %141 : vector<8x32xf32> to vector<1x8x32xf32>
      tpu.vector_store %arg16[%c0_111, %c0_112, %c0_113], %144 {strides = array<i32>} : memref<1x8x32xf32, #tpu.memory_space<vmem>>, vector<1x8x32xf32>,
    } else {
    }
    return
  }
  func.func @transform_0(%arg0: i32, %arg1: i32, %arg2: i32) -> (i32, i32, i32) {
    %c0_i32 = arith.constant 0 : i32
    %c0_i32_0 = arith.constant 0 : i32
    return %arg0, %arg1, %c0_i32 : i32, i32, i32
  }
  func.func @transform_1(%arg0: i32, %arg1: i32, %arg2: i32) -> (i32, i32, i32) {
    %c0_i32 = arith.constant 0 : i32
    %c0_i32_0 = arith.constant 0 : i32
    return %arg0, %arg2, %c0_i32 : i32, i32, i32
  }
  func.func @transform_2(%arg0: i32, %arg1: i32, %arg2: i32) -> (i32, i32, i32) {
    %c0_i32 = arith.constant 0 : i32
    %c0_i32_0 = arith.constant 0 : i32
    return %arg0, %c0_i32, %arg2 : i32, i32, i32
  }
  func.func @transform_3(%arg0: i32, %arg1: i32, %arg2: i32) -> (i32, i32) {
    %c0_i32 = arith.constant 0 : i32
    %c0_i32_0 = arith.constant 0 : i32
    %c0_i32_1 = arith.constant 0 : i32
    return %c0_i32, %c0_i32_0 : i32, i32
  }
  func.func @transform_4(%arg0: i32, %arg1: i32, %arg2: i32) -> (i32, i32) {
    %c0_i32 = arith.constant 0 : i32
    %c0_i32_0 = arith.constant 0 : i32
    %c0_i32_1 = arith.constant 0 : i32
    return %c0_i32, %c0_i32_0 : i32, i32
  }
  func.func @transform_5(%arg0: i32, %arg1: i32, %arg2: i32) -> (i32, i32) {
    %c0_i32 = arith.constant 0 : i32
    %c0_i32_0 = arith.constant 0 : i32
    %c0_i32_1 = arith.constant 0 : i32
    return %c0_i32, %c0_i32_0 : i32, i32
  }
  func.func @transform_6(%arg0: i32, %arg1: i32, %arg2: i32) -> (i32, i32) {
    %c0_i32 = arith.constant 0 : i32
    %c0_i32_0 = arith.constant 0 : i32
    %c0_i32_1 = arith.constant 0 : i32
    return %c0_i32, %c0_i32_0 : i32, i32
  }
  func.func @transform_7(%arg0: i32, %arg1: i32, %arg2: i32) -> (i32, i32) {
    %c0_i32 = arith.constant 0 : i32
    %c0_i32_0 = arith.constant 0 : i32
    %c0_i32_1 = arith.constant 0 : i32
    return %c0_i32, %c0_i32_0 : i32, i32
  }
  func.func @transform_8(%arg0: i32, %arg1: i32, %arg2: i32) -> (i32, i32) {
    %c0_i32 = arith.constant 0 : i32
    %c0_i32_0 = arith.constant 0 : i32
    %c0_i32_1 = arith.constant 0 : i32
    return %c0_i32, %c0_i32_0 : i32, i32
  }
  func.func @transform_9(%arg0: i32, %arg1: i32, %arg2: i32) -> (i32, i32) {
    %c0_i32 = arith.constant 0 : i32
    %c0_i32_0 = arith.constant 0 : i32
    %c0_i32_1 = arith.constant 0 : i32
    return %c0_i32, %c0_i32_0 : i32, i32
  }
  func.func @transform_10(%arg0: i32, %arg1: i32, %arg2: i32) -> (i32, i32) {
    %c0_i32 = arith.constant 0 : i32
    %c0_i32_0 = arith.constant 0 : i32
    %c0_i32_1 = arith.constant 0 : i32
    return %c0_i32, %c0_i32_0 : i32, i32
  }
  func.func @transform_11(%arg0: i32, %arg1: i32, %arg2: i32) -> (i32, i32) {
    %c0_i32 = arith.constant 0 : i32
    %c0_i32_0 = arith.constant 0 : i32
    %c0_i32_1 = arith.constant 0 : i32
    return %c0_i32, %c0_i32_0 : i32, i32
  }
  func.func @transform_12(%arg0: i32, %arg1: i32, %arg2: i32) -> (i32, i32) {
    %c0_i32 = arith.constant 0 : i32
    %c0_i32_0 = arith.constant 0 : i32
    %c0_i32_1 = arith.constant 0 : i32
    return %c0_i32, %c0_i32_0 : i32, i32
  }
  func.func @transform_13(%arg0: i32, %arg1: i32, %arg2: i32) -> (i32, i32, i32) {
    %c0_i32 = arith.constant 0 : i32
    %c0_i32_0 = arith.constant 0 : i32
    return %arg0, %arg1, %c0_i32 : i32, i32, i32
  }
}

module attributes {stable_mosaic.version = 11 : i64} {
  func.func @_ffn_kernel(%arg0: i32, %arg1: memref<16x32xf32, #tpu.memory_space<vmem>>, %arg2: memref<32x64xf32, #tpu.memory_space<vmem>>, %arg3: memref<1x64xf32, #tpu.memory_space<vmem>>, %arg4: memref<64x32xf32, #tpu.memory_space<vmem>>, %arg5: memref<1x32xf32, #tpu.memory_space<vmem>>, %arg6: memref<1x32xf32, #tpu.memory_space<vmem>>, %arg7: memref<1x32xf32, #tpu.memory_space<vmem>>, %arg8: memref<16x32xf32, #tpu.memory_space<vmem>>) attributes {dimension_semantics = [#tpu.dimension_semantics<parallel>], iteration_bounds = array<i64: 1>, scalar_prefetch = 0 : i64, scratch_operands = 0 : i64, tpu.core_type = #tpu.core_type<tc>, window_params = [{transform_indices = @transform_0, window_bounds = array<i64: 16, 32>}, {pipeline_mode = #tpu.pipeline_mode<synchronous>, transform_indices = @transform_1, window_bounds = array<i64: 32, 64>}, {pipeline_mode = #tpu.pipeline_mode<synchronous>, transform_indices = @transform_2, window_bounds = array<i64: 1, 64>}, {pipeline_mode = #tpu.pipeline_mode<synchronous>, transform_indices = @transform_3, window_bounds = array<i64: 64, 32>}, {pipeline_mode = #tpu.pipeline_mode<synchronous>, transform_indices = @transform_4, window_bounds = array<i64: 1, 32>}, {pipeline_mode = #tpu.pipeline_mode<synchronous>, transform_indices = @transform_5, window_bounds = array<i64: 1, 32>}, {pipeline_mode = #tpu.pipeline_mode<synchronous>, transform_indices = @transform_6, window_bounds = array<i64: 1, 32>}, {transform_indices = @transform_7, window_bounds = array<i64: 16, 32>}]} {
    %c0 = arith.constant 0 : index
    %c0_0 = arith.constant 0 : index
    %0 = vector.load %arg1[%c0, %c0_0] : memref<16x32xf32, #tpu.memory_space<vmem>>, vector<16x32xf32>
    %c0_1 = arith.constant 0 : index
    %c0_2 = arith.constant 0 : index
    %1 = vector.load %arg2[%c0_1, %c0_2] : memref<32x64xf32, #tpu.memory_space<vmem>>, vector<32x64xf32>
    %cst = arith.constant dense<0.000000e+00> : vector<16x64xf32>
    %2 = tpu.matmul %0, %1, %cst {dimension_numbers = #tpu.dot_dimension_numbers<[1], [0], [0], [1], [0, 0, 1, 1], [], []>} : vector<16x32xf32>, vector<32x64xf32>, vector<16x64xf32> -> vector<16x64xf32>
    %c0_3 = arith.constant 0 : index
    %c0_4 = arith.constant 0 : index
    %3 = vector.load %arg3[%c0_3, %c0_4] : memref<1x64xf32, #tpu.memory_space<vmem>>, vector<1x64xf32>
    %4 = vector.broadcast %3 : vector<1x64xf32> to vector<16x64xf32>
    %5 = arith.addf %2, %4 : vector<16x64xf32>
    %cst_5 = arith.constant 5.000000e-01 : f32
    %6 = vector.broadcast %cst_5 : f32 to vector<16x64xf32>
    %7 = arith.mulf %5, %6 : vector<16x64xf32>
    %cst_6 = arith.constant 0.707106769 : f32
    %8 = vector.broadcast %cst_6 : f32 to vector<16x64xf32>
    %9 = arith.mulf %5, %8 : vector<16x64xf32>
    %10 = math.erf %9 : vector<16x64xf32>
    %cst_7 = arith.constant 1.000000e+00 : f32
    %11 = vector.broadcast %cst_7 : f32 to vector<16x64xf32>
    %12 = arith.addf %11, %10 : vector<16x64xf32>
    %13 = arith.mulf %7, %12 : vector<16x64xf32>
    %c0_8 = arith.constant 0 : index
    %c0_9 = arith.constant 0 : index
    %14 = vector.load %arg4[%c0_8, %c0_9] : memref<64x32xf32, #tpu.memory_space<vmem>>, vector<64x32xf32>
    %cst_10 = arith.constant dense<0.000000e+00> : vector<16x32xf32>
    %15 = tpu.matmul %13, %14, %cst_10 {dimension_numbers = #tpu.dot_dimension_numbers<[1], [0], [0], [1], [0, 0, 1, 1], [], []>} : vector<16x64xf32>, vector<64x32xf32>, vector<16x32xf32> -> vector<16x32xf32>
    %c0_11 = arith.constant 0 : index
    %c0_12 = arith.constant 0 : index
    %16 = vector.load %arg5[%c0_11, %c0_12] : memref<1x32xf32, #tpu.memory_space<vmem>>, vector<1x32xf32>
    %17 = vector.broadcast %16 : vector<1x32xf32> to vector<16x32xf32>
    %18 = arith.addf %15, %17 : vector<16x32xf32>
    %19 = arith.addf %18, %0 : vector<16x32xf32>
    %c0_13 = arith.constant 0 : index
    %c0_14 = arith.constant 0 : index
    %20 = vector.load %arg6[%c0_13, %c0_14] : memref<1x32xf32, #tpu.memory_space<vmem>>, vector<1x32xf32>
    %c0_15 = arith.constant 0 : index
    %c0_16 = arith.constant 0 : index
    %21 = vector.load %arg7[%c0_15, %c0_16] : memref<1x32xf32, #tpu.memory_space<vmem>>, vector<1x32xf32>
    %cst_17 = arith.constant dense<0.000000e+00> : vector<16xf32>
    %22 = vector.multi_reduction <add>, %19, %cst_17 [1] : vector<16x32xf32> to vector<16xf32>
    %23 = vector.shape_cast %22 : vector<16xf32> to vector<16x1xf32>
    %cst_18 = arith.constant 3.200000e+01 : f32
    %24 = vector.broadcast %cst_18 : f32 to vector<16x1xf32>
    %25 = arith.divf %23, %24 : vector<16x1xf32>
    %26 = vector.broadcast %25 : vector<16x1xf32> to vector<16x32xf32>
    %27 = arith.subf %19, %26 : vector<16x32xf32>
    %28 = arith.mulf %27, %27 : vector<16x32xf32>
    %cst_19 = arith.constant dense<0.000000e+00> : vector<16xf32>
    %29 = vector.multi_reduction <add>, %28, %cst_19 [1] : vector<16x32xf32> to vector<16xf32>
    %30 = vector.shape_cast %29 : vector<16xf32> to vector<16x1xf32>
    %cst_20 = arith.constant 3.200000e+01 : f32
    %31 = vector.broadcast %cst_20 : f32 to vector<16x1xf32>
    %32 = arith.divf %30, %31 : vector<16x1xf32>
    %cst_21 = arith.constant 9.99999996E-13 : f32
    %33 = vector.broadcast %cst_21 : f32 to vector<16x1xf32>
    %34 = arith.addf %32, %33 : vector<16x1xf32>
    %35 = math.rsqrt %34 : vector<16x1xf32>
    %36 = vector.broadcast %35 : vector<16x1xf32> to vector<16x32xf32>
    %37 = arith.mulf %27, %36 : vector<16x32xf32>
    %38 = vector.broadcast %20 : vector<1x32xf32> to vector<16x32xf32>
    %39 = arith.mulf %37, %38 : vector<16x32xf32>
    %40 = vector.broadcast %21 : vector<1x32xf32> to vector<16x32xf32>
    %41 = arith.addf %39, %40 : vector<16x32xf32>
    %c0_22 = arith.constant 0 : index
    %c0_23 = arith.constant 0 : index
    %42 = vector.load %arg8[%c0_22, %c0_23] : memref<16x32xf32, #tpu.memory_space<vmem>>, vector<16x32xf32>
    tpu.vector_store %arg8[%c0_22, %c0_23], %41 {strides = array<i32>} : memref<16x32xf32, #tpu.memory_space<vmem>>, vector<16x32xf32>,
    return
  }
  func.func @transform_0(%arg0: i32) -> (i32, i32) {
    %c0_i32 = arith.constant 0 : i32
    %c0_i32_0 = arith.constant 0 : i32
    return %arg0, %c0_i32 : i32, i32
  }
  func.func @transform_1(%arg0: i32) -> (i32, i32) {
    %c0_i32 = arith.constant 0 : i32
    %c0_i32_0 = arith.constant 0 : i32
    %c0_i32_1 = arith.constant 0 : i32
    return %c0_i32, %c0_i32_0 : i32, i32
  }
  func.func @transform_2(%arg0: i32) -> (i32, i32) {
    %c0_i32 = arith.constant 0 : i32
    %c0_i32_0 = arith.constant 0 : i32
    %c0_i32_1 = arith.constant 0 : i32
    return %c0_i32, %c0_i32_0 : i32, i32
  }
  func.func @transform_3(%arg0: i32) -> (i32, i32) {
    %c0_i32 = arith.constant 0 : i32
    %c0_i32_0 = arith.constant 0 : i32
    %c0_i32_1 = arith.constant 0 : i32
    return %c0_i32, %c0_i32_0 : i32, i32
  }
  func.func @transform_4(%arg0: i32) -> (i32, i32) {
    %c0_i32 = arith.constant 0 : i32
    %c0_i32_0 = arith.constant 0 : i32
    %c0_i32_1 = arith.constant 0 : i32
    return %c0_i32, %c0_i32_0 : i32, i32
  }
  func.func @transform_5(%arg0: i32) -> (i32, i32) {
    %c0_i32 = arith.constant 0 : i32
    %c0_i32_0 = arith.constant 0 : i32
    %c0_i32_1 = arith.constant 0 : i32
    return %c0_i32, %c0_i32_0 : i32, i32
  }
  func.func @transform_6(%arg0: i32) -> (i32, i32) {
    %c0_i32 = arith.constant 0 : i32
    %c0_i32_0 = arith.constant 0 : i32
    %c0_i32_1 = arith.constant 0 : i32
    return %c0_i32, %c0_i32_0 : i32, i32
  }
  func.func @transform_7(%arg0: i32) -> (i32, i32) {
    %c0_i32 = arith.constant 0 : i32
    %c0_i32_0 = arith.constant 0 : i32
    return %arg0, %c0_i32 : i32, i32
  }
}

module attributes {stable_mosaic.version = 11 : i64} {
  func.func @_attention_kernel(%arg0: i32, %arg1: i32, %arg2: i32, %arg3: memref<1x8x32xf32, #tpu.memory_space<vmem>>, %arg4: memref<1x8x32xf32, #tpu.memory_space<vmem>>, %arg5: memref<1x1x8xf32, #tpu.memory_space<vmem>>, %arg6: memref<32x32xf32, #tpu.memory_space<vmem>>, %arg7: memref<1x32xf32, #tpu.memory_space<vmem>>, %arg8: memref<32x32xf32, #tpu.memory_space<vmem>>, %arg9: memref<1x32xf32, #tpu.memory_space<vmem>>, %arg10: memref<32x32xf32, #tpu.memory_space<vmem>>, %arg11: memref<1x32xf32, #tpu.memory_space<vmem>>, %arg12: memref<32x32xf32, #tpu.memory_space<vmem>>, %arg13: memref<1x32xf32, #tpu.memory_space<vmem>>, %arg14: memref<1x32xf32, #tpu.memory_space<vmem>>, %arg15: memref<1x32xf32, #tpu.memory_space<vmem>>, %arg16: memref<1x8x32xf32, #tpu.memory_space<vmem>>, %arg17: memref<4x8x8xf32, #tpu.memory_space<vmem>>, %arg18: memref<4x8x8xf32, #tpu.memory_space<vmem>>, %arg19: memref<4x8x8xf32, #tpu.memory_space<vmem>>, %arg20: memref<4x8x1xf32, #tpu.memory_space<vmem>>, %arg21: memref<4x8x1xf32, #tpu.memory_space<vmem>>, %arg22: memref<4x8x8xf32, #tpu.memory_space<vmem>>) attributes {dimension_semantics = [#tpu.dimension_semantics<parallel>, #tpu.dimension_semantics<parallel>, #tpu.dimension_semantics<arbitrary>], iteration_bounds = array<i64: 2, 1, 1>, scalar_prefetch = 0 : i64, scratch_operands = 6 : i64, tpu.core_type = #tpu.core_type<tc>, window_params = [{transform_indices = @transform_0, window_bounds = array<i64: 1, 8, 32>}, {transform_indices = @transform_1, window_bounds = array<i64: 1, 8, 32>}, {transform_indices = @transform_2, window_bounds = array<i64: 1, 1, 8>}, {pipeline_mode = #tpu.pipeline_mode<synchronous>, transform_indices = @transform_3, window_bounds = array<i64: 32, 32>}, {pipeline_mode = #tpu.pipeline_mode<synchronous>, transform_indices = @transform_4, window_bounds = array<i64: 1, 32>}, {pipeline_mode = #tpu.pipeline_mode<synchronous>, transform_indices = @transform_5, window_bounds = array<i64: 32, 32>}, {pipeline_mode = #tpu.pipeline_mode<synchronous>, transform_indices = @transform_6, window_bounds = array<i64: 1, 32>}, {pipeline_mode = #tpu.pipeline_mode<synchronous>, transform_indices = @transform_7, window_bounds = array<i64: 32, 32>}, {pipeline_mode = #tpu.pipeline_mode<synchronous>, transform_indices = @transform_8, window_bounds = array<i64: 1, 32>}, {pipeline_mode = #tpu.pipeline_mode<synchronous>, transform_indices = @transform_9, window_bounds = array<i64: 32, 32>}, {pipeline_mode = #tpu.pipeline_mode<synchronous>, transform_indices = @transform_10, window_bounds = array<i64: 1, 32>}, {pipeline_mode = #tpu.pipeline_mode<synchronous>, transform_indices = @transform_11, window_bounds = array<i64: 1, 32>}, {pipeline_mode = #tpu.pipeline_mode<synchronous>, transform_indices = @transform_12, window_bounds = array<i64: 1, 32>}, {transform_indices = @transform_13, window_bounds = array<i64: 1, 8, 32>}]} {
    %c0_i32 = arith.constant 0 : i32
    %0 = arith.cmpi eq, %arg2, %c0_i32 : i32
    %1 = arith.extui %0 : i1 to i32
    %c0_i32_0 = arith.constant 0 : i32
    %2 = arith.cmpi ne, %1, %c0_i32_0 : i32
    scf.if %2 {
      %c0_70 = arith.constant 0 : index
      %c0_71 = arith.constant 0 : index
      %c0_72 = arith.constant 0 : index
      %83 = vector.load %arg3[%c0_70, %c0_71, %c0_72] : memref<1x8x32xf32, #tpu.memory_space<vmem>>, vector<1x8x32xf32>
      %84 = vector.shape_cast %83 : vector<1x8x32xf32> to vector<8x32xf32>
      %c0_73 = arith.constant 0 : index
      %c0_74 = arith.constant 0 : index
      %85 = vector.load %arg6[%c0_73, %c0_74] : memref<32x32xf32, #tpu.memory_space<vmem>>, vector<32x32xf32>
      %cst_75 = arith.constant dense<0.000000e+00> : vector<8x32xf32>
      %86 = tpu.matmul %84, %85, %cst_75 {dimension_numbers = #tpu.dot_dimension_numbers<[1], [0], [0], [1], [0, 0, 1, 1], [], []>} : vector<8x32xf32>, vector<32x32xf32>, vector<8x32xf32> -> vector<8x32xf32>
      %c0_76 = arith.constant 0 : index
      %c0_77 = arith.constant 0 : index
      %87 = vector.load %arg7[%c0_76, %c0_77] : memref<1x32xf32, #tpu.memory_space<vmem>>, vector<1x32xf32>
      %88 = vector.broadcast %87 : vector<1x32xf32> to vector<8x32xf32>
      %89 = arith.addf %86, %88 : vector<8x32xf32>
      %90 = vector.extract_strided_slice %89 {offsets = [0, 0], sizes = [8, 8], strides = [1, 1]} : vector<8x32xf32> to vector<8x8xf32>
      %c0_78 = arith.constant 0 : index
      %c0_79 = arith.constant 0 : index
      %c0_80 = arith.constant 0 : index
      %91 = vector.load %arg17[%c0_78, %c0_79, %c0_80] : memref<4x8x8xf32, #tpu.memory_space<vmem>>, vector<1x8x8xf32>
      %92 = vector.shape_cast %91 : vector<1x8x8xf32> to vector<8x8xf32>
      %93 = vector.shape_cast %90 : vector<8x8xf32> to vector<1x8x8xf32>
      tpu.vector_store %arg17[%c0_78, %c0_79, %c0_80], %93 {strides = array<i32>} : memref<4x8x8xf32, #tpu.memory_space<vmem>>, vector<1x8x8xf32>,
      %94 = vector.extract_strided_slice %89 {offsets = [0, 8], sizes = [8, 8], strides = [1, 1]} : vector<8x32xf32> to vector<8x8xf32>
      %c1_81 = arith.constant 1 : index
      %c0_82 = arith.constant 0 : index
      %c0_83 = arith.constant 0 : index
      %95 = vector.load %arg17[%c1_81, %c0_82, %c0_83] : memref<4x8x8xf32, #tpu.memory_space<vmem>>, vector<1x8x8xf32>
      %96 = vector.shape_cast %95 : vector<1x8x8xf32> to vector<8x8xf32>
      %97 = vector.shape_cast %94 : vector<8x8xf32> to vector<1x8x8xf32>
      tpu.vector_store %arg17[%c1_81, %c0_82, %c0_83], %97 {strides = array<i32>} : memref<4x8x8xf32, #tpu.memory_space<vmem>>, vector<1x8x8xf32>,
      %98 = vector.extract_strided_slice %89 {offsets = [0, 16], sizes = [8, 8], strides = [1, 1]} : vector<8x32xf32> to vector<8x8xf32>
      %c2_84 = arith.constant 2 : index
      %c0_85 = arith.constant 0 : index
      %c0_86 = arith.constant 0 : index
      %99 = vector.load %arg17[%c2_84, %c0_85, %c0_86] : memref<4x8x8xf32, #tpu.memory_space<vmem>>, vector<1x8x8xf32>
      %100 = vector.shape_cast %99 : vector<1x8x8xf32> to vector<8x8xf32>
      %101 = vector.shape_cast %98 : vector<8x8xf32> to vector<1x8x8xf32>
      tpu.vector_store %arg17[%c2_84, %c0_85, %c0_86], %101 {strides = array<i32>} : memref<4x8x8xf32, #tpu.memory_space<vmem>>, vector<1x8x8xf32>,
      %102 = vector.extract_strided_slice %89 {offsets = [0, 24], sizes = [8, 8], strides = [1, 1]} : vector<8x32xf32> to vector<8x8xf32>
      %c3_87 = arith.constant 3 : index
      %c0_88 = arith.constant 0 : index
      %c0_89 = arith.constant 0 : index
      %103 = vector.load %arg17[%c3_87, %c0_88, %c0_89] : memref<4x8x8xf32, #tpu.memory_space<vmem>>, vector<1x8x8xf32>
      %104 = vector.shape_cast %103 : vector<1x8x8xf32> to vector<8x8xf32>
      %105 = vector.shape_cast %102 : vector<8x8xf32> to vector<1x8x8xf32>
      tpu.vector_store %arg17[%c3_87, %c0_88, %c0_89], %105 {strides = array<i32>} : memref<4x8x8xf32, #tpu.memory_space<vmem>>, vector<1x8x8xf32>,
      %cst_90 = arith.constant 0xFF800000 : f32
      %106 = vector.broadcast %cst_90 : f32 to vector<4x8x1xf32>
      %c0_91 = arith.constant 0 : index
      %c0_92 = arith.constant 0 : index
      %c0_93 = arith.constant 0 : index
      %107 = vector.load %arg20[%c0_91, %c0_92, %c0_93] : memref<4x8x1xf32, #tpu.memory_space<vmem>>, vector<4x8x1xf32>
      tpu.vector_store %arg20[%c0_91, %c0_92, %c0_93], %106 {strides = array<i32>} : memref<4x8x1xf32, #tpu.memory_space<vmem>>, vector<4x8x1xf32>,
      %cst_94 = arith.constant 0.000000e+00 : f32
      %108 = vector.broadcast %cst_94 : f32 to vector<4x8x1xf32>
      %c0_95 = arith.constant 0 : index
      %c0_96 = arith.constant 0 : index
      %c0_97 = arith.constant 0 : index
      %109 = vector.load %arg21[%c0_95, %c0_96, %c0_97] : memref<4x8x1xf32, #tpu.memory_space<vmem>>, vector<4x8x1xf32>
      tpu.vector_store %arg21[%c0_95, %c0_96, %c0_97], %108 {strides = array<i32>} : memref<4x8x1xf32, #tpu.memory_space<vmem>>, vector<4x8x1xf32>,
      %cst_98 = arith.constant 0.000000e+00 : f32
      %110 = vector.broadcast %cst_98 : f32 to vector<4x8x8xf32>
      %c0_99 = arith.constant 0 : index
      %c0_100 = arith.constant 0 : index
      %c0_101 = arith.constant 0 : index
      %111 = vector.load %arg22[%c0_99, %c0_100, %c0_101] : memref<4x8x8xf32, #tpu.memory_space<vmem>>, vector<4x8x8xf32>
      tpu.vector_store %arg22[%c0_99, %c0_100, %c0_101], %110 {strides = array<i32>} : memref<4x8x8xf32, #tpu.memory_space<vmem>>, vector<4x8x8xf32>,
    } else {
    }
    %c0 = arith.constant 0 : index
    %c0_1 = arith.constant 0 : index
    %c0_2 = arith.constant 0 : index
    %3 = vector.load %arg4[%c0, %c0_1, %c0_2] : memref<1x8x32xf32, #tpu.memory_space<vmem>>, vector<1x8x32xf32>
    %4 = vector.shape_cast %3 : vector<1x8x32xf32> to vector<8x32xf32>
    %c0_3 = arith.constant 0 : index
    %c0_4 = arith.constant 0 : index
    %5 = vector.load %arg8[%c0_3, %c0_4] : memref<32x32xf32, #tpu.memory_space<vmem>>, vector<32x32xf32>
    %cst = arith.constant dense<0.000000e+00> : vector<8x32xf32>
    %6 = tpu.matmul %4, %5, %cst {dimension_numbers = #tpu.dot_dimension_numbers<[1], [0], [0], [1], [0, 0, 1, 1], [], []>} : vector<8x32xf32>, vector<32x32xf32>, vector<8x32xf32> -> vector<8x32xf32>
    %c0_5 = arith.constant 0 : index
    %c0_6 = arith.constant 0 : index
    %7 = vector.load %arg9[%c0_5, %c0_6] : memref<1x32xf32, #tpu.memory_space<vmem>>, vector<1x32xf32>
    %8 = vector.broadcast %7 : vector<1x32xf32> to vector<8x32xf32>
    %9 = arith.addf %6, %8 : vector<8x32xf32>
    %c0_7 = arith.constant 0 : index
    %c0_8 = arith.constant 0 : index
    %10 = vector.load %arg10[%c0_7, %c0_8] : memref<32x32xf32, #tpu.memory_space<vmem>>, vector<32x32xf32>
    %cst_9 = arith.constant dense<0.000000e+00> : vector<8x32xf32>
    %11 = tpu.matmul %4, %10, %cst_9 {dimension_numbers = #tpu.dot_dimension_numbers<[1], [0], [0], [1], [0, 0, 1, 1], [], []>} : vector<8x32xf32>, vector<32x32xf32>, vector<8x32xf32> -> vector<8x32xf32>
    %c0_10 = arith.constant 0 : index
    %c0_11 = arith.constant 0 : index
    %12 = vector.load %arg11[%c0_10, %c0_11] : memref<1x32xf32, #tpu.memory_space<vmem>>, vector<1x32xf32>
    %13 = vector.broadcast %12 : vector<1x32xf32> to vector<8x32xf32>
    %14 = arith.addf %11, %13 : vector<8x32xf32>
    %15 = vector.extract_strided_slice %9 {offsets = [0, 0], sizes = [8, 8], strides = [1, 1]} : vector<8x32xf32> to vector<8x8xf32>
    %c0_12 = arith.constant 0 : index
    %c0_13 = arith.constant 0 : index
    %c0_14 = arith.constant 0 : index
    %16 = vector.load %arg18[%c0_12, %c0_13, %c0_14] : memref<4x8x8xf32, #tpu.memory_space<vmem>>, vector<1x8x8xf32>
    %17 = vector.shape_cast %16 : vector<1x8x8xf32> to vector<8x8xf32>
    %18 = vector.shape_cast %15 : vector<8x8xf32> to vector<1x8x8xf32>
    tpu.vector_store %arg18[%c0_12, %c0_13, %c0_14], %18 {strides = array<i32>} : memref<4x8x8xf32, #tpu.memory_space<vmem>>, vector<1x8x8xf32>,
    %19 = vector.extract_strided_slice %14 {offsets = [0, 0], sizes = [8, 8], strides = [1, 1]} : vector<8x32xf32> to vector<8x8xf32>
    %c0_15 = arith.constant 0 : index
    %c0_16 = arith.constant 0 : index
    %c0_17 = arith.constant 0 : index
    %20 = vector.load %arg19[%c0_15, %c0_16, %c0_17] : memref<4x8x8xf32, #tpu.memory_space<vmem>>, vector<1x8x8xf32>
    %21 = vector.shape_cast %20 : vector<1x8x8xf32> to vector<8x8xf32>
    %22 = vector.shape_cast %19 : vector<8x8xf32> to vector<1x8x8xf32>
    tpu.vector_store %arg19[%c0_15, %c0_16, %c0_17], %22 {strides = array<i32>} : memref<4x8x8xf32, #tpu.memory_space<vmem>>, vector<1x8x8xf32>,
    %23 = vector.extract_strided_slice %9 {offsets = [0, 8], sizes = [8, 8], strides = [1, 1]} : vector<8x32xf32> to vector<8x8xf32>
    %c1 = arith.constant 1 : index
    %c0_18 = arith.constant 0 : index
    %c0_19 = arith.constant 0 : index
    %24 = vector.load %arg18[%c1, %c0_18, %c0_19] : memref<4x8x8xf32, #tpu.memory_space<vmem>>, vector<1x8x8xf32>
    %25 = vector.shape_cast %24 : vector<1x8x8xf32> to vector<8x8xf32>
    %26 = vector.shape_cast %23 : vector<8x8xf32> to vector<1x8x8xf32>
    tpu.vector_store %arg18[%c1, %c0_18, %c0_19], %26 {strides = array<i32>} : memref<4x8x8xf32, #tpu.memory_space<vmem>>, vector<1x8x8xf32>,
    %27 = vector.extract_strided_slice %14 {offsets = [0, 8], sizes = [8, 8], strides = [1, 1]} : vector<8x32xf32> to vector<8x8xf32>
    %c1_20 = arith.constant 1 : index
    %c0_21 = arith.constant 0 : index
    %c0_22 = arith.constant 0 : index
    %28 = vector.load %arg19[%c1_20, %c0_21, %c0_22] : memref<4x8x8xf32, #tpu.memory_space<vmem>>, vector<1x8x8xf32>
    %29 = vector.shape_cast %28 : vector<1x8x8xf32> to vector<8x8xf32>
    %30 = vector.shape_cast %27 : vector<8x8xf32> to vector<1x8x8xf32>
    tpu.vector_store %arg19[%c1_20, %c0_21, %c0_22], %30 {strides = array<i32>} : memref<4x8x8xf32, #tpu.memory_space<vmem>>, vector<1x8x8xf32>,
    %31 = vector.extract_strided_slice %9 {offsets = [0, 16], sizes = [8, 8], strides = [1, 1]} : vector<8x32xf32> to vector<8x8xf32>
    %c2 = arith.constant 2 : index
    %c0_23 = arith.constant 0 : index
    %c0_24 = arith.constant 0 : index
    %32 = vector.load %arg18[%c2, %c0_23, %c0_24] : memref<4x8x8xf32, #tpu.memory_space<vmem>>, vector<1x8x8xf32>
    %33 = vector.shape_cast %32 : vector<1x8x8xf32> to vector<8x8xf32>
    %34 = vector.shape_cast %31 : vector<8x8xf32> to vector<1x8x8xf32>
    tpu.vector_store %arg18[%c2, %c0_23, %c0_24], %34 {strides = array<i32>} : memref<4x8x8xf32, #tpu.memory_space<vmem>>, vector<1x8x8xf32>,
    %35 = vector.extract_strided_slice %14 {offsets = [0, 16], sizes = [8, 8], strides = [1, 1]} : vector<8x32xf32> to vector<8x8xf32>
    %c2_25 = arith.constant 2 : index
    %c0_26 = arith.constant 0 : index
    %c0_27 = arith.constant 0 : index
    %36 = vector.load %arg19[%c2_25, %c0_26, %c0_27] : memref<4x8x8xf32, #tpu.memory_space<vmem>>, vector<1x8x8xf32>
    %37 = vector.shape_cast %36 : vector<1x8x8xf32> to vector<8x8xf32>
    %38 = vector.shape_cast %35 : vector<8x8xf32> to vector<1x8x8xf32>
    tpu.vector_store %arg19[%c2_25, %c0_26, %c0_27], %38 {strides = array<i32>} : memref<4x8x8xf32, #tpu.memory_space<vmem>>, vector<1x8x8xf32>,
    %39 = vector.extract_strided_slice %9 {offsets = [0, 24], sizes = [8, 8], strides = [1, 1]} : vector<8x32xf32> to vector<8x8xf32>
    %c3 = arith.constant 3 : index
    %c0_28 = arith.constant 0 : index
    %c0_29 = arith.constant 0 : index
    %40 = vector.load %arg18[%c3, %c0_28, %c0_29] : memref<4x8x8xf32, #tpu.memory_space<vmem>>, vector<1x8x8xf32>
    %41 = vector.shape_cast %40 : vector<1x8x8xf32> to vector<8x8xf32>
    %42 = vector.shape_cast %39 : vector<8x8xf32> to vector<1x8x8xf32>
    tpu.vector_store %arg18[%c3, %c0_28, %c0_29], %42 {strides = array<i32>} : memref<4x8x8xf32, #tpu.memory_space<vmem>>, vector<1x8x8xf32>,
    %43 = vector.extract_strided_slice %14 {offsets = [0, 24], sizes = [8, 8], strides = [1, 1]} : vector<8x32xf32> to vector<8x8xf32>
    %c3_30 = arith.constant 3 : index
    %c0_31 = arith.constant 0 : index
    %c0_32 = arith.constant 0 : index
    %44 = vector.load %arg19[%c3_30, %c0_31, %c0_32] : memref<4x8x8xf32, #tpu.memory_space<vmem>>, vector<1x8x8xf32>
    %45 = vector.shape_cast %44 : vector<1x8x8xf32> to vector<8x8xf32>
    %46 = vector.shape_cast %43 : vector<8x8xf32> to vector<1x8x8xf32>
    tpu.vector_store %arg19[%c3_30, %c0_31, %c0_32], %46 {strides = array<i32>} : memref<4x8x8xf32, #tpu.memory_space<vmem>>, vector<1x8x8xf32>,
    %c0_33 = arith.constant 0 : index
    %c0_34 = arith.constant 0 : index
    %c0_35 = arith.constant 0 : index
    %47 = vector.load %arg17[%c0_33, %c0_34, %c0_35] : memref<4x8x8xf32, #tpu.memory_space<vmem>>, vector<4x8x8xf32>
    %c0_36 = arith.constant 0 : index
    %c0_37 = arith.constant 0 : index
    %c0_38 = arith.constant 0 : index
    %48 = vector.load %arg18[%c0_36, %c0_37, %c0_38] : memref<4x8x8xf32, #tpu.memory_space<vmem>>, vector<4x8x8xf32>
    %cst_39 = arith.constant dense<0.000000e+00> : vector<4x8x8xf32>
    %49 = tpu.matmul %47, %48, %cst_39 {dimension_numbers = #tpu.dot_dimension_numbers<[2], [2], [1], [1], [0, 0, 0, 1, 1, 1], [0], [0]>} : vector<4x8x8xf32>, vector<4x8x8xf32>, vector<4x8x8xf32> -> vector<4x8x8xf32>
    %cst_40 = arith.constant 0.353553385 : f32
    %50 = vector.broadcast %cst_40 : f32 to vector<4x8x8xf32>
    %51 = arith.mulf %49, %50 : vector<4x8x8xf32>
    %c0_41 = arith.constant 0 : index
    %c0_42 = arith.constant 0 : index
    %c0_43 = arith.constant 0 : index
    %52 = vector.load %arg5[%c0_41, %c0_42, %c0_43] : memref<1x1x8xf32, #tpu.memory_space<vmem>>, vector<1x1x8xf32>
    %53 = vector.shape_cast %52 : vector<1x1x8xf32> to vector<1x8xf32>
    %54 = vector.shape_cast %53 : vector<1x8xf32> to vector<1x1x8xf32>
    %55 = vector.broadcast %54 : vector<1x1x8xf32> to vector<4x8x8xf32>
    %56 = arith.addf %51, %55 : vector<4x8x8xf32>
    %c0_44 = arith.constant 0 : index
    %c0_45 = arith.constant 0 : index
    %c0_46 = arith.constant 0 : index
    %57 = vector.load %arg20[%c0_44, %c0_45, %c0_46] : memref<4x8x1xf32, #tpu.memory_space<vmem>>, vector<4x8x1xf32>
    %cst_47 = arith.constant dense<0xFF800000> : vector<4x8xf32>
    %58 = vector.multi_reduction <maximumf>, %56, %cst_47 [2] : vector<4x8x8xf32> to vector<4x8xf32>
    %59 = vector.shape_cast %58 : vector<4x8xf32> to vector<4x8x1xf32>
    %60 = arith.maximumf %57, %59 : vector<4x8x1xf32>
    %61 = arith.subf %57, %60 : vector<4x8x1xf32>
    %62 = math.exp %61 : vector<4x8x1xf32>
    %63 = vector.broadcast %60 : vector<4x8x1xf32> to vector<4x8x8xf32>
    %64 = arith.subf %56, %63 : vector<4x8x8xf32>
    %65 = math.exp %64 : vector<4x8x8xf32>
    %c0_48 = arith.constant 0 : index
    %c0_49 = arith.constant 0 : index
    %c0_50 = arith.constant 0 : index
    %66 = vector.load %arg21[%c0_48, %c0_49, %c0_50] : memref<4x8x1xf32, #tpu.memory_space<vmem>>, vector<4x8x1xf32>
    %67 = arith.mulf %62, %66 : vector<4x8x1xf32>
    %cst_51 = arith.constant dense<0.000000e+00> : vector<4x8xf32>
    %68 = vector.multi_reduction <add>, %65, %cst_51 [2] : vector<4x8x8xf32> to vector<4x8xf32>
    %69 = vector.shape_cast %68 : vector<4x8xf32> to vector<4x8x1xf32>
    %70 = arith.addf %67, %69 : vector<4x8x1xf32>
    %c0_52 = arith.constant 0 : index
    %c0_53 = arith.constant 0 : index
    %c0_54 = arith.constant 0 : index
    %71 = vector.load %arg21[%c0_52, %c0_53, %c0_54] : memref<4x8x1xf32, #tpu.memory_space<vmem>>, vector<4x8x1xf32>
    tpu.vector_store %arg21[%c0_52, %c0_53, %c0_54], %70 {strides = array<i32>} : memref<4x8x1xf32, #tpu.memory_space<vmem>>, vector<4x8x1xf32>,
    %c0_55 = arith.constant 0 : index
    %c0_56 = arith.constant 0 : index
    %c0_57 = arith.constant 0 : index
    %72 = vector.load %arg19[%c0_55, %c0_56, %c0_57] : memref<4x8x8xf32, #tpu.memory_space<vmem>>, vector<4x8x8xf32>
    %cst_58 = arith.constant dense<0.000000e+00> : vector<4x8x8xf32>
    %73 = tpu.matmul %65, %72, %cst_58 {dimension_numbers = #tpu.dot_dimension_numbers<[2], [1], [1], [2], [0, 0, 0, 1, 1, 2], [0], [0]>} : vector<4x8x8xf32>, vector<4x8x8xf32>, vector<4x8x8xf32> -> vector<4x8x8xf32>
    %c0_59 = arith.constant 0 : index
    %c0_60 = arith.constant 0 : index
    %c0_61 = arith.constant 0 : index
    %74 = vector.load %arg22[%c0_59, %c0_60, %c0_61] : memref<4x8x8xf32, #tpu.memory_space<vmem>>, vector<4x8x8xf32>
    %75 = vector.broadcast %62 : vector<4x8x1xf32> to vector<4x8x8xf32>
    %76 = arith.mulf %75, %74 : vector<4x8x8xf32>
    %77 = arith.addf %76, %73 : vector<4x8x8xf32>
    %c0_62 = arith.constant 0 : index
    %c0_63 = arith.constant 0 : index
    %c0_64 = arith.constant 0 : index
    %78 = vector.load %arg22[%c0_62, %c0_63, %c0_64] : memref<4x8x8xf32, #tpu.memory_space<vmem>>, vector<4x8x8xf32>
    tpu.vector_store %arg22[%c0_62, %c0_63, %c0_64], %77 {strides = array<i32>} : memref<4x8x8xf32, #tpu.memory_space<vmem>>, vector<4x8x8xf32>,
    %c0_65 = arith.constant 0 : index
    %c0_66 = arith.constant 0 : index
    %c0_67 = arith.constant 0 : index
    %79 = vector.load %arg20[%c0_65, %c0_66, %c0_67] : memref<4x8x1xf32, #tpu.memory_space<vmem>>, vector<4x8x1xf32>
    tpu.vector_store %arg20[%c0_65, %c0_66, %c0_67], %60 {strides = array<i32>} : memref<4x8x1xf32, #tpu.memory_space<vmem>>, vector<4x8x1xf32>,
    %c0_i32_68 = arith.constant 0 : i32
    %80 = arith.cmpi eq, %arg2, %c0_i32_68 : i32
    %81 = arith.extui %80 : i1 to i32
    %c0_i32_69 = arith.constant 0 : i32
    %82 = arith.cmpi ne, %81, %c0_i32_69 : i32
    scf.if %82 {
      %c0_70 = arith.constant 0 : index
      %c0_71 = arith.constant 0 : index
      %c0_72 = arith.constant 0 : index
      %83 = vector.load %arg21[%c0_70, %c0_71, %c0_72] : memref<4x8x1xf32, #tpu.memory_space<vmem>>, vector<1x8x1xf32>
      %84 = vector.shape_cast %83 : vector<1x8x1xf32> to vector<8x1xf32>
      %85 = tpu.reciprocal %84 : vector<8x1xf32> -> vector<8x1xf32>
      %c0_73 = arith.constant 0 : index
      %c0_74 = arith.constant 0 : index
      %c0_75 = arith.constant 0 : index
      %86 = vector.load %arg22[%c0_73, %c0_74, %c0_75] : memref<4x8x8xf32, #tpu.memory_space<vmem>>, vector<1x8x8xf32>
      %87 = vector.shape_cast %86 : vector<1x8x8xf32> to vector<8x8xf32>
      %88 = vector.broadcast %85 : vector<8x1xf32> to vector<8x8xf32>
      %89 = arith.mulf %87, %88 : vector<8x8xf32>
      %c1_76 = arith.constant 1 : index
      %c0_77 = arith.constant 0 : index
      %c0_78 = arith.constant 0 : index
      %90 = vector.load %arg21[%c1_76, %c0_77, %c0_78] : memref<4x8x1xf32, #tpu.memory_space<vmem>>, vector<1x8x1xf32>
      %91 = vector.shape_cast %90 : vector<1x8x1xf32> to vector<8x1xf32>
      %92 = tpu.reciprocal %91 : vector<8x1xf32> -> vector<8x1xf32>
      %c1_79 = arith.constant 1 : index
      %c0_80 = arith.constant 0 : index
      %c0_81 = arith.constant 0 : index
      %93 = vector.load %arg22[%c1_79, %c0_80, %c0_81] : memref<4x8x8xf32, #tpu.memory_space<vmem>>, vector<1x8x8xf32>
      %94 = vector.shape_cast %93 : vector<1x8x8xf32> to vector<8x8xf32>
      %95 = vector.broadcast %92 : vector<8x1xf32> to vector<8x8xf32>
      %96 = arith.mulf %94, %95 : vector<8x8xf32>
      %c2_82 = arith.constant 2 : index
      %c0_83 = arith.constant 0 : index
      %c0_84 = arith.constant 0 : index
      %97 = vector.load %arg21[%c2_82, %c0_83, %c0_84] : memref<4x8x1xf32, #tpu.memory_space<vmem>>, vector<1x8x1xf32>
      %98 = vector.shape_cast %97 : vector<1x8x1xf32> to vector<8x1xf32>
      %99 = tpu.reciprocal %98 : vector<8x1xf32> -> vector<8x1xf32>
      %c2_85 = arith.constant 2 : index
      %c0_86 = arith.constant 0 : index
      %c0_87 = arith.constant 0 : index
      %100 = vector.load %arg22[%c2_85, %c0_86, %c0_87] : memref<4x8x8xf32, #tpu.memory_space<vmem>>, vector<1x8x8xf32>
      %101 = vector.shape_cast %100 : vector<1x8x8xf32> to vector<8x8xf32>
      %102 = vector.broadcast %99 : vector<8x1xf32> to vector<8x8xf32>
      %103 = arith.mulf %101, %102 : vector<8x8xf32>
      %c3_88 = arith.constant 3 : index
      %c0_89 = arith.constant 0 : index
      %c0_90 = arith.constant 0 : index
      %104 = vector.load %arg21[%c3_88, %c0_89, %c0_90] : memref<4x8x1xf32, #tpu.memory_space<vmem>>, vector<1x8x1xf32>
      %105 = vector.shape_cast %104 : vector<1x8x1xf32> to vector<8x1xf32>
      %106 = tpu.reciprocal %105 : vector<8x1xf32> -> vector<8x1xf32>
      %c3_91 = arith.constant 3 : index
      %c0_92 = arith.constant 0 : index
      %c0_93 = arith.constant 0 : index
      %107 = vector.load %arg22[%c3_91, %c0_92, %c0_93] : memref<4x8x8xf32, #tpu.memory_space<vmem>>, vector<1x8x8xf32>
      %108 = vector.shape_cast %107 : vector<1x8x8xf32> to vector<8x8xf32>
      %109 = vector.broadcast %106 : vector<8x1xf32> to vector<8x8xf32>
      %110 = arith.mulf %108, %109 : vector<8x8xf32>
      %111 = tpu.concatenate %89, %96, %103, %110 in 1 : vector<8x8xf32>, vector<8x8xf32>, vector<8x8xf32>, vector<8x8xf32> -> vector<8x32xf32>
      %c0_94 = arith.constant 0 : index
      %c0_95 = arith.constant 0 : index
      %112 = vector.load %arg12[%c0_94, %c0_95] : memref<32x32xf32, #tpu.memory_space<vmem>>, vector<32x32xf32>
      %cst_96 = arith.constant dense<0.000000e+00> : vector<8x32xf32>
      %113 = tpu.matmul %111, %112, %cst_96 {dimension_numbers = #tpu.dot_dimension_numbers<[1], [0], [0], [1], [0, 0, 1, 1], [], []>} : vector<8x32xf32>, vector<32x32xf32>, vector<8x32xf32> -> vector<8x32xf32>
      %c0_97 = arith.constant 0 : index
      %c0_98 = arith.constant 0 : index
      %114 = vector.load %arg13[%c0_97, %c0_98] : memref<1x32xf32, #tpu.memory_space<vmem>>, vector<1x32xf32>
      %115 = vector.broadcast %114 : vector<1x32xf32> to vector<8x32xf32>
      %116 = arith.addf %113, %115 : vector<8x32xf32>
      %c0_99 = arith.constant 0 : index
      %c0_100 = arith.constant 0 : index
      %c0_101 = arith.constant 0 : index
      %117 = vector.load %arg3[%c0_99, %c0_100, %c0_101] : memref<1x8x32xf32, #tpu.memory_space<vmem>>, vector<1x8x32xf32>
      %118 = vector.shape_cast %117 : vector<1x8x32xf32> to vector<8x32xf32>
      %119 = arith.addf %116, %118 : vector<8x32xf32>
      %c0_102 = arith.constant 0 : index
      %c0_103 = arith.constant 0 : index
      %120 = vector.load %arg14[%c0_102, %c0_103] : memref<1x32xf32, #tpu.memory_space<vmem>>, vector<1x32xf32>
      %c0_104 = arith.constant 0 : index
      %c0_105 = arith.constant 0 : index
      %121 = vector.load %arg15[%c0_104, %c0_105] : memref<1x32xf32, #tpu.memory_space<vmem>>, vector<1x32xf32>
      %cst_106 = arith.constant dense<0.000000e+00> : vector<8xf32>
      %122 = vector.multi_reduction <add>, %119, %cst_106 [1] : vector<8x32xf32> to vector<8xf32>
      %123 = vector.shape_cast %122 : vector<8xf32> to vector<8x1xf32>
      %cst_107 = arith.constant 3.200000e+01 : f32
      %124 = vector.broadcast %cst_107 : f32 to vector<8x1xf32>
      %125 = arith.divf %123, %124 : vector<8x1xf32>
      %126 = vector.broadcast %125 : vector<8x1xf32> to vector<8x32xf32>
      %127 = arith.subf %119, %126 : vector<8x32xf32>
      %128 = arith.mulf %127, %127 : vector<8x32xf32>
      %cst_108 = arith.constant dense<0.000000e+00> : vector<8xf32>
      %129 = vector.multi_reduction <add>, %128, %cst_108 [1] : vector<8x32xf32> to vector<8xf32>
      %130 = vector.shape_cast %129 : vector<8xf32> to vector<8x1xf32>
      %cst_109 = arith.constant 3.200000e+01 : f32
      %131 = vector.broadcast %cst_109 : f32 to vector<8x1xf32>
      %132 = arith.divf %130, %131 : vector<8x1xf32>
      %cst_110 = arith.constant 9.99999996E-13 : f32
      %133 = vector.broadcast %cst_110 : f32 to vector<8x1xf32>
      %134 = arith.addf %132, %133 : vector<8x1xf32>
      %135 = math.rsqrt %134 : vector<8x1xf32>
      %136 = vector.broadcast %135 : vector<8x1xf32> to vector<8x32xf32>
      %137 = arith.mulf %127, %136 : vector<8x32xf32>
      %138 = vector.broadcast %120 : vector<1x32xf32> to vector<8x32xf32>
      %139 = arith.mulf %137, %138 : vector<8x32xf32>
      %140 = vector.broadcast %121 : vector<1x32xf32> to vector<8x32xf32>
      %141 = arith.addf %139, %140 : vector<8x32xf32>
      %c0_111 = arith.constant 0 : index
      %c0_112 = arith.constant 0 : index
      %c0_113 = arith.constant 0 : index
      %142 = vector.load %arg16[%c0_111, %c0_112, %c0_113] : memref<1x8x32xf32, #tpu.memory_space<vmem>>, vector<1x8x32xf32>
      %143 = vector.shape_cast %142 : vector<1x8x32xf32> to vector<8x32xf32>
      %144 = vector.shape_cast %141 : vector<8x32xf32> to vector<1x8x32xf32>
      tpu.vector_store %arg16[%c0_111, %c0_112, %c0_113], %144 {strides = array<i32>} : memref<1x8x32xf32, #tpu.memory_space<vmem>>, vector<1x8x32xf32>,
    } else {
    }
    return
  }
  func.func @transform_0(%arg0: i32, %arg1: i32, %arg2: i32) -> (i32, i32, i32) {
    %c0_i32 = arith.constant 0 : i32
    %c0_i32_0 = arith.constant 0 : i32
    return %arg0, %arg1, %c0_i32 : i32, i32, i32
  }
  func.func @transform_1(%arg0: i32, %arg1: i32, %arg2: i32) -> (i32, i32, i32) {
    %c0_i32 = arith.constant 0 : i32
    %c0_i32_0 = arith.constant 0 : i32
    return %arg0, %arg2, %c0_i32 : i32, i32, i32
  }
  func.func @transform_2(%arg0: i32, %arg1: i32, %arg2: i32) -> (i32, i32, i32) {
    %c0_i32 = arith.constant 0 : i32
    %c0_i32_0 = arith.constant 0 : i32
    return %arg0, %c0_i32, %arg2 : i32, i32, i32
  }
  func.func @transform_3(%arg0: i32, %arg1: i32, %arg2: i32) -> (i32, i32) {
    %c0_i32 = arith.constant 0 : i32
    %c0_i32_0 = arith.constant 0 : i32
    %c0_i32_1 = arith.constant 0 : i32
    return %c0_i32, %c0_i32_0 : i32, i32
  }
  func.func @transform_4(%arg0: i32, %arg1: i32, %arg2: i32) -> (i32, i32) {
    %c0_i32 = arith.constant 0 : i32
    %c0_i32_0 = arith.constant 0 : i32
    %c0_i32_1 = arith.constant 0 : i32
    return %c0_i32, %c0_i32_0 : i32, i32
  }
  func.func @transform_5(%arg0: i32, %arg1: i32, %arg2: i32) -> (i32, i32) {
    %c0_i32 = arith.constant 0 : i32
    %c0_i32_0 = arith.constant 0 : i32
    %c0_i32_1 = arith.constant 0 : i32
    return %c0_i32, %c0_i32_0 : i32, i32
  }
  func.func @transform_6(%arg0: i32, %arg1: i32, %arg2: i32) -> (i32, i32) {
    %c0_i32 = arith.constant 0 : i32
    %c0_i32_0 = arith.constant 0 : i32
    %c0_i32_1 = arith.constant 0 : i32
    return %c0_i32, %c0_i32_0 : i32, i32
  }
  func.func @transform_7(%arg0: i32, %arg1: i32, %arg2: i32) -> (i32, i32) {
    %c0_i32 = arith.constant 0 : i32
    %c0_i32_0 = arith.constant 0 : i32
    %c0_i32_1 = arith.constant 0 : i32
    return %c0_i32, %c0_i32_0 : i32, i32
  }
  func.func @transform_8(%arg0: i32, %arg1: i32, %arg2: i32) -> (i32, i32) {
    %c0_i32 = arith.constant 0 : i32
    %c0_i32_0 = arith.constant 0 : i32
    %c0_i32_1 = arith.constant 0 : i32
    return %c0_i32, %c0_i32_0 : i32, i32
  }
  func.func @transform_9(%arg0: i32, %arg1: i32, %arg2: i32) -> (i32, i32) {
    %c0_i32 = arith.constant 0 : i32
    %c0_i32_0 = arith.constant 0 : i32
    %c0_i32_1 = arith.constant 0 : i32
    return %c0_i32, %c0_i32_0 : i32, i32
  }
  func.func @transform_10(%arg0: i32, %arg1: i32, %arg2: i32) -> (i32, i32) {
    %c0_i32 = arith.constant 0 : i32
    %c0_i32_0 = arith.constant 0 : i32
    %c0_i32_1 = arith.constant 0 : i32
    return %c0_i32, %c0_i32_0 : i32, i32
  }
  func.func @transform_11(%arg0: i32, %arg1: i32, %arg2: i32) -> (i32, i32) {
    %c0_i32 = arith.constant 0 : i32
    %c0_i32_0 = arith.constant 0 : i32
    %c0_i32_1 = arith.constant 0 : i32
    return %c0_i32, %c0_i32_0 : i32, i32
  }
  func.func @transform_12(%arg0: i32, %arg1: i32, %arg2: i32) -> (i32, i32) {
    %c0_i32 = arith.constant 0 : i32
    %c0_i32_0 = arith.constant 0 : i32
    %c0_i32_1 = arith.constant 0 : i32
    return %c0_i32, %c0_i32_0 : i32, i32
  }
  func.func @transform_13(%arg0: i32, %arg1: i32, %arg2: i32) -> (i32, i32, i32) {
    %c0_i32 = arith.constant 0 : i32
    %c0_i32_0 = arith.constant 0 : i32
    return %arg0, %arg1, %c0_i32 : i32, i32, i32
  }
}

</mosaic_0001>

<llo_original>
// kernel: lxrt_x_layer_forward.8
$region0: #{lxrt_x_layer_forward.8}
  #allocation0 [shape = 'u32[]', space=smem, size = 0x4, offset = 0x4, fixed_abs, tag = 'smem constant byte address 0x4 - core index']
  #allocation1 [shape = 'u32[144,128]{1,0:T(1,128)}', space=vmem, size = 0x12000, scoped, tag = 'internal scratch']
  %s0 = inlined_call_operand.vmem [shape: f32[16,32], index: 0, kind: input, shape index: {}]
  %s1 = inlined_call_operand.vmem [shape: f32[32,64], index: 1, kind: input, shape index: {}]
  %s2 = inlined_call_operand.vmem [shape: f32[1,64], index: 2, kind: input, shape index: {}]
  %s3 = inlined_call_operand.vmem [shape: f32[64,32], index: 3, kind: input, shape index: {}]
  %s4 = inlined_call_operand.vmem [shape: f32[1,32], index: 4, kind: input, shape index: {}]
  %s5 = inlined_call_operand.vmem [shape: f32[1,32], index: 5, kind: input, shape index: {}]
  %s6 = inlined_call_operand.vmem [shape: f32[1,32], index: 6, kind: input, shape index: {}]
  %s7 = inlined_call_operand.hbm [shape: f32[16,32], index: 7, kind: output, shape index: {}]
  %s8 = sld [smem:[#allocation0]]
  $region38: #{lxrt_x_layer_forward.8} parent=0
    _
  %s10 = ssub.s32 1, %s8
  %s11 = scalar_select 0, %s10, %s8
  $region1: #{lxrt_x_layer_forward.8} parent=0
    #allocation2 [shape = 'u8[8192]{0}', space=vmem, size = 0x2000, scoped, tag = 'output window, operand 0, single buffered']
    #allocation3 [shape = 's32[1]{0}', space=sflag, size = 0x4, scoped, tag = 'scoped memory for lxrt_x_layer_forward.8']
    %12 = vsyncpa [#allocation3], 0
    // Predicated region
    $region2: #{lxrt_x_layer_forward.8} parent=1 // pred_check
      _
    $region3: #{lxrt_x_layer_forward.8} parent=1 // pred_check_branch
      %14 = sbr.rel (0) target = $region5
    $region4: #{lxrt_x_layer_forward.8} parent=1 // pred_region
      _
    $region5: #{lxrt_x_layer_forward.8} parent=1 // pred_fallthru
      _
    // Predicated region
    $region6: #{lxrt_x_layer_forward.8} parent=1 // pred_check
      _
    $region7: #{lxrt_x_layer_forward.8} parent=1 // pred_check_branch
      %16 = sbr.rel (0) target = $region9
    $region8: #{lxrt_x_layer_forward.8} parent=1 // pred_region
      _
    $region9: #{lxrt_x_layer_forward.8} parent=1 // pred_fallthru
      _
    // Predicated region
    $region10: #{lxrt_x_layer_forward.8} parent=1 // pred_check
      _
    $region11: #{lxrt_x_layer_forward.8} parent=1 // pred_check_branch
      %18 = sbr.rel (0) target = $region13
    $region12: #{lxrt_x_layer_forward.8} parent=1 // pred_region
      _
    $region13: #{lxrt_x_layer_forward.8} parent=1 // pred_fallthru
      _
    // Predicated region
    $region14: #{lxrt_x_layer_forward.8} parent=1 // pred_check
      _
    $region15: #{lxrt_x_layer_forward.8} parent=1 // pred_check_branch
      %20 = sbr.rel (0) target = $region17
    $region16: #{lxrt_x_layer_forward.8} parent=1 // pred_region
      _
    $region17: #{lxrt_x_layer_forward.8} parent=1 // pred_fallthru
      _
    // Predicated region
    $region18: #{lxrt_x_layer_forward.8} parent=1 // pred_check
      _
    $region19: #{lxrt_x_layer_forward.8} parent=1 // pred_check_branch
      %22 = sbr.rel (0) target = $region21
    $region20: #{lxrt_x_layer_forward.8} parent=1 // pred_region
      _
    $region21: #{lxrt_x_layer_forward.8} parent=1 // pred_fallthru
      _
    // Predicated region
    $region22: #{lxrt_x_layer_forward.8} parent=1 // pred_check
      _
    $region23: #{lxrt_x_layer_forward.8} parent=1 // pred_check_branch
      %24 = sbr.rel (0) target = $region25
    $region24: #{lxrt_x_layer_forward.8} parent=1 // pred_region
      _
    $region25: #{lxrt_x_layer_forward.8} parent=1 // pred_fallthru
      _
    // Predicated region
    $region26: #{lxrt_x_layer_forward.8} parent=1 // pred_check
      _
    $region27: #{lxrt_x_layer_forward.8} parent=1 // pred_check_branch
      %26 = sbr.rel (0) target = $region29
    $region28: #{lxrt_x_layer_forward.8} parent=1 // pred_region
      _
    $region29: #{lxrt_x_layer_forward.8} parent=1 // pred_fallthru
      _
    %v27 = vld [vmem:[%s0] sm:$0xff]
    %v28 = vld [vmem:[%s0 + $0x8] sm:$0xff]
    %v29 = vld [vmem:[%s1] sm:$0xff]
    %v30 = vld [vmem:[%s1 + $0x8] sm:$0xff]
    %v31 = vld [vmem:[%s1 + $0x10] sm:$0xff]
    %v32 = vld [vmem:[%s1 + $0x18] sm:$0xff]
    %v33 = vld [vmem:[%s2] sm:$0x1]
    %v35 = vlaneseq
    %v36 = vshrl.u32 %v35, 7
    %v37 = vsub.s32 0, %v36
    %v38 = vrot.slane %v33, %v37
    %vm40 = vcmask 261120
    %v42 = vsel %vm40, %v27, 0
    %v45 = vsel %vm40, %v28, 0
    %47 = vmatprep.subr.mxu0 0.0
    %48 = vmatpush1.msra.mxu0 %v29
    %49 = vmatprep.subr.mxu0 0.0
    %50 = vmatpush1.msra.mxu0 %v30
    %51 = vmatprep.subr.mxu0 0.0
    %52 = vmatpush1.msra.mxu0 %v31
    %53 = vmatprep.subr.mxu0 0.0
    %54 = vmatpush1.msra.mxu0 %v32
    %55 = vmatprep.subr.mxu0 0.0
    %56 = vmatpush1.msra.mxu0 0.0
    %57 = vmatprep.subr.mxu0 0.0
    %58 = vmatpush1.msra.mxu0 0.0
    %59 = vmatprep.subr.mxu0 0.0
    %60 = vmatpush1.msra.mxu0 0.0
    %61 = vmatprep.subr.mxu0 0.0
    %62 = vmatpush1.msra.mxu0 0.0
    %63 = vmatprep.subr.mxu0 0.0
    %64 = vmatpush1.msra.mxu0 0.0
    %65 = vmatprep.subr.mxu0 0.0
    %66 = vmatpush1.msra.mxu0 0.0
    %67 = vmatprep.subr.mxu0 0.0
    %68 = vmatpush1.msra.mxu0 0.0
    %69 = vmatprep.subr.mxu0 0.0
    %70 = vmatpush1.msra.mxu0 0.0
    %71 = vmatprep.subr.mxu0 0.0
    %72 = vmatpush1.msra.mxu0 0.0
    %73 = vmatprep.subr.mxu0 0.0
    %74 = vmatpush1.msra.mxu0 0.0
    %75 = vmatprep.subr.mxu0 0.0
    %76 = vmatpush1.msra.mxu0 0.0
    %77 = vmatprep.subr.mxu0 0.0
    %78 = vmatpush1.msra.mxu0 0.0
    %79 = vmatprep.subr.mxu0 0.0
    %80 = vmatpush1.msra.mxu0 0.0
    %81 = vmatprep.subr.mxu0 0.0
    %82 = vmatpush1.msra.mxu0 0.0
    %83 = vmatprep.subr.mxu0 0.0
    %84 = vmatpush1.msra.mxu0 0.0
    %85 = vmatprep.subr.mxu0 0.0
    %86 = vmatpush1.msra.mxu0 0.0
    %87 = vmatprep.subr.mxu0 0.0
    %88 = vmatpush1.msra.mxu0 0.0
    %89 = vmatprep.subr.mxu0 0.0
    %90 = vmatpush1.msra.mxu0 0.0
    %91 = vmatprep.subr.mxu0 0.0
    %92 = vmatpush1.msra.mxu0 0.0
    %93 = vmatprep.subr.mxu0 0.0
    %94 = vmatpush1.msra.mxu0 0.0
    %95 = vmatprep.subr.mxu0 0.0
    %96 = vmatpush1.msra.mxu0 0.0
    %97 = vmatprep.subr.mxu0 0.0
    %98 = vmatpush1.msra.mxu0 0.0
    %99 = vmatprep.subr.mxu0 0.0
    %100 = vmatpush1.msra.mxu0 0.0
    %101 = vmatprep.subr.mxu0 0.0
    %102 = vmatpush1.msra.mxu0 0.0
    %103 = vmatprep.subr.mxu0 0.0
    %104 = vmatpush1.msra.mxu0 0.0
    %105 = vmatprep.subr.mxu0 0.0
    %106 = vmatpush1.msra.mxu0 0.0
    %107 = vmatprep.subr.mxu0 0.0
    %108 = vmatpush1.msra.mxu0 0.0
    %109 = vmatprep.subr.mxu0 0.0
    %110 = vmatpush1.msra.mxu0 0.0
    %111 = vmatprep.mubr.f32.mxu0 0.0
    %112 = vmatmul.mubr.f32.gmra.mrb[0].mxu0 %v42
    %v113 = vpop.f32.mrb[0].mxu0
    %v114 = vadd.f32 %v38, %v113
    %v115 = vpop.f32.mrb[0].mxu0
    %116 = vmatprep.mubr.f32.mxu0 0.0
    %117 = vmatmul.mubr.f32.gmra.mrb[0].mxu0 %v45
    %v118 = vpop.f32.mrb[0].mxu0
    %v119 = vadd.f32 %v38, %v118
    %v120 = vpop.f32.mrb[0].mxu0
    %121 = vdwg.mxu0
    %v122 = vmul.f32 %v114, 0.5
    %v123 = vmul.f32 %v119, 0.5
    %v124 = vmul.f32 %v114, 0.70710677
    %v125 = vmul.f32 %v119, 0.70710677
    %v126 = verf.f32.pop %v124
    %v127 = verf.f32.pop %v125
    %v128 = vadd.f32 %v126, 1.0
    %v129 = vadd.f32 %v127, 1.0
    %v130 = vmul.f32 %v122, %v128
    %v131 = vmul.f32 %v123, %v129
    %v132 = vld [vmem:[%s3] sm:$0xff]
    %v133 = vld [vmem:[%s3 + $0x8] sm:$0xff]
    %v134 = vld [vmem:[%s3 + $0x10] sm:$0xff]
    %v135 = vld [vmem:[%s3 + $0x18] sm:$0xff]
    %v136 = vld [vmem:[%s3 + $0x20] sm:$0xff]
    %v137 = vld [vmem:[%s3 + $0x28] sm:$0xff]
    %v138 = vld [vmem:[%s3 + $0x30] sm:$0xff]
    %v139 = vld [vmem:[%s3 + $0x38] sm:$0xff]
    %v140 = vld [vmem:[%s4] sm:$0x1]
    %v142 = vlaneseq
    %v143 = vshrl.u32 %v142, 7
    %v144 = vsub.s32 0, %v143
    %v145 = vrot.slane %v140, %v144
    %vm147 = vcmask 523264
    %v149 = vsel %vm147, %v130, 0
    %v152 = vsel %vm147, %v131, 0
    %154 = vmatprep.subr.mxu0 0.0
    %155 = vmatpush1.msra.mxu0 %v132
    %156 = vmatprep.subr.mxu0 0.0
    %157 = vmatpush1.msra.mxu0 %v133
    %158 = vmatprep.subr.mxu0 0.0
    %159 = vmatpush1.msra.mxu0 %v134
    %160 = vmatprep.subr.mxu0 0.0
    %161 = vmatpush1.msra.mxu0 %v135
    %162 = vmatprep.subr.mxu0 0.0
    %163 = vmatpush1.msra.mxu0 %v136
    %164 = vmatprep.subr.mxu0 0.0
    %165 = vmatpush1.msra.mxu0 %v137
    %166 = vmatprep.subr.mxu0 0.0
    %167 = vmatpush1.msra.mxu0 %v138
    %168 = vmatprep.subr.mxu0 0.0
    %169 = vmatpush1.msra.mxu0 %v139
    %170 = vmatprep.subr.mxu0 0.0
    %171 = vmatpush1.msra.mxu0 0.0
    %172 = vmatprep.subr.mxu0 0.0
    %173 = vmatpush1.msra.mxu0 0.0
    %174 = vmatprep.subr.mxu0 0.0
    %175 = vmatpush1.msra.mxu0 0.0
    %176 = vmatprep.subr.mxu0 0.0
    %177 = vmatpush1.msra.mxu0 0.0
    %178 = vmatprep.subr.mxu0 0.0
    %179 = vmatpush1.msra.mxu0 0.0
    %180 = vmatprep.subr.mxu0 0.0
    %181 = vmatpush1.msra.mxu0 0.0
    %182 = vmatprep.subr.mxu0 0.0
    %183 = vmatpush1.msra.mxu0 0.0
    %184 = vmatprep.subr.mxu0 0.0
    %185 = vmatpush1.msra.mxu0 0.0
    %186 = vmatprep.subr.mxu0 0.0
    %187 = vmatpush1.msra.mxu0 0.0
    %188 = vmatprep.subr.mxu0 0.0
    %189 = vmatpush1.msra.mxu0 0.0
    %190 = vmatprep.subr.mxu0 0.0
    %191 = vmatpush1.msra.mxu0 0.0
    %192 = vmatprep.subr.mxu0 0.0
    %193 = vmatpush1.msra.mxu0 0.0
    %194 = vmatprep.subr.mxu0 0.0
    %195 = vmatpush1.msra.mxu0 0.0
    %196 = vmatprep.subr.mxu0 0.0
    %197 = vmatpush1.msra.mxu0 0.0
    %198 = vmatprep.subr.mxu0 0.0
    %199 = vmatpush1.msra.mxu0 0.0
    %200 = vmatprep.subr.mxu0 0.0
    %201 = vmatpush1.msra.mxu0 0.0
    %202 = vmatprep.subr.mxu0 0.0
    %203 = vmatpush1.msra.mxu0 0.0
    %204 = vmatprep.subr.mxu0 0.0
    %205 = vmatpush1.msra.mxu0 0.0
    %206 = vmatprep.subr.mxu0 0.0
    %207 = vmatpush1.msra.mxu0 0.0
    %208 = vmatprep.subr.mxu0 0.0
    %209 = vmatpush1.msra.mxu0 0.0
    %210 = vmatprep.subr.mxu0 0.0
    %211 = vmatpush1.msra.mxu0 0.0
    %212 = vmatprep.subr.mxu0 0.0
    %213 = vmatpush1.msra.mxu0 0.0
    %214 = vmatprep.subr.mxu0 0.0
    %215 = vmatpush1.msra.mxu0 0.0
    %216 = vmatprep.subr.mxu0 0.0
    %217 = vmatpush1.msra.mxu0 0.0
    %218 = vmatprep.mubr.f32.mxu0 0.0
    %219 = vmatmul.mubr.f32.gmra.mrb[0].mxu0 %v149
    %v220 = vpop.f32.mrb[0].mxu0
    %v221 = vadd.f32 %v145, %v220
    %v222 = vpop.f32.mrb[0].mxu0
    %223 = vmatprep.mubr.f32.mxu0 0.0
    %224 = vmatmul.mubr.f32.gmra.mrb[0].mxu0 %v152
    %v225 = vpop.f32.mrb[0].mxu0
    %v226 = vadd.f32 %v145, %v225
    %v227 = vpop.f32.mrb[0].mxu0
    %228 = vdwg.mxu0
    %v229 = vadd.f32 %v221, %v27
    %v230 = vadd.f32 %v226, %v28
    %v231 = vld [vmem:[%s5] sm:$0x1]
    %v232 = vld [vmem:[%s6] sm:$0x1]
    %v233 = vsel %vm40, %v229, 0.0
    %234 = vadd.xlane.f32.xlu0 %v233
    %v235 = vpop.xlane.xlu0 %234
    %v236 = vsel %vm40, %v230, 0.0
    %237 = vadd.xlane.f32.xlu0 %v236
    %v238 = vpop.xlane.xlu0 %237
    %v239 = vrcp.pop 32.0
    %v240 = vmul.f32 %v235, %v239
    %v241 = vmul.f32 %v238, %v239
    %v242 = vsub.f32 %v229, %v240
    %v243 = vsub.f32 %v230, %v241
    %v244 = vmul.f32 %v242, %v242
    %v245 = vmul.f32 %v243, %v243
    %v246 = vsel %vm40, %v244, 0.0
    %247 = vadd.xlane.f32.xlu0 %v246
    %v248 = vpop.xlane.xlu0 %247
    %v249 = vsel %vm40, %v245, 0.0
    %250 = vadd.xlane.f32.xlu0 %v249
    %v251 = vpop.xlane.xlu0 %250
    %v252 = vmul.f32 %v248, %v239
    %v253 = vmul.f32 %v251, %v239
    %v254 = vadd.f32 %v252, 1e-12
    %v255 = vadd.f32 %v253, 1e-12
    %v256 = vrsqrt.pop %v254
    %v257 = vrsqrt.pop %v255
    %v258 = vmul.f32 %v242, %v256
    %v259 = vmul.f32 %v243, %v257
    %v261 = vlaneseq
    %v262 = vshrl.u32 %v261, 7
    %v263 = vsub.s32 0, %v262
    %v264 = vrot.slane %v231, %v263
    %v266 = vmul.f32 %v258, %v264
    %v267 = vmul.f32 %v259, %v264
    %v269 = vlaneseq
    %v270 = vshrl.u32 %v269, 7
    %v271 = vsub.s32 0, %v270
    %v272 = vrot.slane %v232, %v271
    %v274 = vadd.f32 %v266, %v272
    %v275 = vadd.f32 %v267, %v272
    %276 = vst.msk [vmem:[#allocation2] sm:$0xff] %vm40, %v274
    %277 = vst.msk [vmem:[#allocation2 + $0x8] sm:$0xff] %vm40, %v275
    // Predicated region
    $region30: #{lxrt_x_layer_forward.8} parent=1 // pred_check
      _
    $region31: #{lxrt_x_layer_forward.8} parent=1 // pred_check_branch
      %279 = sbr.rel (0) target = $region33
    $region32: #{lxrt_x_layer_forward.8} parent=1 // pred_region
      %s281 = ssub.s32 256, 256
      %282 = vsyncadd [#allocation3], %s281
      %s283 = sshll.u32 [#allocation2], 4
      %s284 = int_to_ptr.vmem [resolvable:$true] %s283
      %289 = dma.vmem_to_hbm [thread:$0]  %s284, 256, %s7, [#allocation3], 128, 128, 8
    $region33: #{lxrt_x_layer_forward.8} parent=1 // pred_fallthru
      _
    // Predicated region
    $region34: #{lxrt_x_layer_forward.8} parent=1 // pred_check
      _
    $region35: #{lxrt_x_layer_forward.8} parent=1 // pred_check_branch
      %291 = sbr.rel (0) target = $region37
    $region36: #{lxrt_x_layer_forward.8} parent=1 // pred_region
      %292 = dma.done [#allocation3], 256
    $region37: #{lxrt_x_layer_forward.8} parent=1 // pred_fallthru
      _
    %293 = vsyncpa [#allocation3], 1

// kernel: lxrt_x_layer_forward.5
$region0: #{lxrt_x_layer_forward.5}
  #allocation0 [shape = 'u32[]', space=smem, size = 0x4, offset = 0x4, fixed_abs, tag = 'smem constant byte address 0x4 - core index']
  #allocation1 [shape = 'u32[144,128]{1,0:T(1,128)}', space=vmem, size = 0x12000, scoped, tag = 'internal scratch']
  #allocation2 [shape = 'f32[4,8,8]{2,1,0:T(8,128)}', space=vmem, size = 0x4000, scoped, tag = 'scratch operand']
  #allocation3 [shape = 'f32[4,8,8]{2,1,0:T(8,128)}', space=vmem, size = 0x4000, scoped, tag = 'scratch operand']
  #allocation4 [shape = 'f32[4,8,8]{2,1,0:T(8,128)}', space=vmem, size = 0x4000, scoped, tag = 'scratch operand']
  #allocation5 [shape = 'f32[4,8,1]{2,1,0:T(8,128)}', space=vmem, size = 0x4000, scoped, tag = 'scratch operand']
  #allocation6 [shape = 'f32[4,8,1]{2,1,0:T(8,128)}', space=vmem, size = 0x4000, scoped, tag = 'scratch operand']
  #allocation7 [shape = 'f32[4,8,8]{2,1,0:T(8,128)}', space=vmem, size = 0x4000, scoped, tag = 'scratch operand']
  %s0 = inlined_call_operand.vmem [shape: f32[4,8,32], index: 0, kind: input, shape index: {}]
  %s1 = inlined_call_operand.vmem [shape: f32[4,8,32], index: 1, kind: input, shape index: {}]
  %s2 = inlined_call_operand.vmem [shape: f32[4,1,8], index: 2, kind: input, shape index: {}]
  %s3 = inlined_call_operand.vmem [shape: f32[32,32], index: 3, kind: input, shape index: {}]
  %s4 = inlined_call_operand.vmem [shape: f32[1,32], index: 4, kind: input, shape index: {}]
  %s5 = inlined_call_operand.vmem [shape: f32[32,32], index: 5, kind: input, shape index: {}]
  %s6 = inlined_call_operand.vmem [shape: f32[1,32], index: 6, kind: input, shape index: {}]
  %s7 = inlined_call_operand.vmem [shape: f32[32,32], index: 7, kind: input, shape index: {}]
  %s8 = inlined_call_operand.vmem [shape: f32[1,32], index: 8, kind: input, shape index: {}]
  %s9 = inlined_call_operand.vmem [shape: f32[32,32], index: 9, kind: input, shape index: {}]
  %s10 = inlined_call_operand.vmem [shape: f32[1,32], index: 10, kind: input, shape index: {}]
  %s11 = inlined_call_operand.vmem [shape: f32[1,32], index: 11, kind: input, shape index: {}]
  %s12 = inlined_call_operand.vmem [shape: f32[1,32], index: 12, kind: input, shape index: {}]
  %s13 = inlined_call_operand.vmem [shape: f32[4,8,32], index: 13, kind: output, shape index: {}]
  %s14 = sld [smem:[#allocation0]]
  $region93: #{lxrt_x_layer_forward.5} parent=0
    _
  %s16 = ssub.s32 1, %s14
  %s17 = scalar_select 0, %s16, %s14
  loop: start=0, step=1, limit=6
  $region2: #{lxrt_x_layer_forward.5} parent=0 // loop_pre_header
    _
  $region3: #{lxrt_x_layer_forward.5} parent=0 // loop_header
    %s19 = sphi 0, %s23
    %p20 = scmp.ge.s32.totalorder %s19, 6
    %s26 = sphi 0, %s45
    %s27 = sphi 0, %s41
    %s28 = sphi 0, %s37
    %s29 = sphi 0, %s26
    %s30 = sphi 0, %s27
    %s31 = sphi 0, %s28
    %s32 = sphi 0, %s29
    %s33 = sphi 0, %s30
    %s34 = sphi 0, %s31
    %s50 = sphi 0, %s52
    %s53 = sphi 0, %s50
    %s54 = sphi 0, %s53
    %s70 = sphi 0, %s54
    %s78 = sphi 0, %s80
    %s81 = sphi 0, %s78
    %s82 = sphi 0, %s81
    %s98 = sphi 0, %s82
    %s106 = sphi 0, %s108
    %s109 = sphi 0, %s106
    %s110 = sphi 0, %s109
    %s126 = sphi 0, %s110
    %s130 = sphi 0, %s130
    %s132 = sphi 0, %s130
    %s133 = sphi 0, %s132
    %s147 = sphi 0, %s133
    %s151 = sphi 0, %s151
    %s153 = sphi 0, %s151
    %s154 = sphi 0, %s153
    %s168 = sphi 0, %s154
    %s172 = sphi 0, %s172
    %s174 = sphi 0, %s172
    %s175 = sphi 0, %s174
    %s189 = sphi 0, %s175
    %s193 = sphi 0, %s193
    %s195 = sphi 0, %s193
    %s196 = sphi 0, %s195
    %s210 = sphi 0, %s196
    %s214 = sphi 0, %s214
    %s216 = sphi 0, %s214
    %s217 = sphi 0, %s216
    %s231 = sphi 0, %s217
    %s235 = sphi 0, %s235
    %s237 = sphi 0, %s235
    %s238 = sphi 0, %s237
    %s252 = sphi 0, %s238
    %s256 = sphi 0, %s256
    %s258 = sphi 0, %s256
    %s259 = sphi 0, %s258
    %s273 = sphi 0, %s259
    %s277 = sphi 0, %s277
    %s279 = sphi 0, %s277
    %s280 = sphi 0, %s279
    %s294 = sphi 0, %s280
    %s298 = sphi 0, %s298
    %s300 = sphi 0, %s298
    %s301 = sphi 0, %s300
    %s315 = sphi 0, %s301
    %s319 = sphi 0, %s319
    %s321 = sphi 0, %s319
    %s322 = sphi 0, %s321
    %s336 = sphi 0, %s322
    %s344 = sphi 0, %s346
    %s347 = sphi 0, %s344
    %s348 = sphi 0, %s347
    %s364 = sphi 0, %s348
  $region4: #{lxrt_x_layer_forward.5} parent=0 // loop_header_branch
    %22 = sbr.rel (%p20) target = $region8
  $region5: #{lxrt_x_layer_forward.5} parent=0 // loop_body
    %s24 = ssub.s32 %s19, 1
    %s25 = ssub.s32 %s19, 2
    %s35 = sadd.s32 1, %s28
    %p36 = scmp.ge.s32.totalorder %s35, 1
    %s37 = scalar_select %p36, 0, %s35
    %s38 = sadd.s32 1, %s27
    %s39 = scalar_select %p36, %s38, %s27
    %p40 = scmp.ge.s32.totalorder %s39, 1
    %s41 = scalar_select %p40, 0, %s39
    %s42 = sadd.s32 1, %s26
    %s43 = scalar_select %p40, %s42, %s26
    %p44 = scmp.ge.s32.totalorder %s43, 4
    %s45 = scalar_select %p44, 0, %s43
    %s46 = ssub.s32 %s26, %s45
    %s47 = ssub.s32 %s27, %s41
    %s48 = sor.u32 %s46, %s47
    %p49 = scmp.eq.s32.totalorder %s48, 0
    %s51 = sadd.s32 %s50, 1
    %s52 = scalar_select %p49, %s50, %s51
    %p55 = pneg %p49
    %p56 = scmp.eq.s32.totalorder %s19, 3
    %p57 = por %p55, %p56
    %p58 = scmp.ne.s32.totalorder %s50, %s53
    %p59 = scmp.eq.s32.totalorder %s19, 0
    %p60 = por %p58, %p59
    %p61 = scmp.ne.s32.totalorder %s50, %s53
    %p62 = scmp.eq.s32.totalorder %s24, 3
    %p63 = por %p61, %p62
    %p64 = scmp.ne.s32.totalorder %s53, %s54
    %p65 = scmp.eq.s32.totalorder %s24, 0
    %p66 = por %p64, %p65
    %p67 = scmp.ne.s32.totalorder %s53, %s54
    %p68 = scmp.eq.s32.totalorder %s25, 3
    %p69 = por %p67, %p68
    %p71 = scmp.ne.s32.totalorder %s54, %s70
    %p72 = scmp.eq.s32.totalorder %s25, 0
    %p73 = por %p71, %p72
    %s74 = ssub.s32 %s26, %s45
    %s75 = ssub.s32 %s28, %s37
    %s76 = sor.u32 %s74, %s75
    %p77 = scmp.eq.s32.totalorder %s76, 0
    %s79 = sadd.s32 %s78, 1
    %s80 = scalar_select %p77, %s78, %s79
    %p83 = pneg %p77
    %p84 = scmp.eq.s32.totalorder %s19, 3
    %p85 = por %p83, %p84
    %p86 = scmp.ne.s32.totalorder %s78, %s81
    %p87 = scmp.eq.s32.totalorder %s19, 0
    %p88 = por %p86, %p87
    %p89 = scmp.ne.s32.totalorder %s78, %s81
    %p90 = scmp.eq.s32.totalorder %s24, 3
    %p91 = por %p89, %p90
    %p92 = scmp.ne.s32.totalorder %s81, %s82
    %p93 = scmp.eq.s32.totalorder %s24, 0
    %p94 = por %p92, %p93
    %p95 = scmp.ne.s32.totalorder %s81, %s82
    %p96 = scmp.eq.s32.totalorder %s25, 3
    %p97 = por %p95, %p96
    %p99 = scmp.ne.s32.totalorder %s82, %s98
    %p100 = scmp.eq.s32.totalorder %s25, 0
    %p101 = por %p99, %p100
    %s102 = ssub.s32 %s26, %s45
    %s103 = ssub.s32 %s28, %s37
    %s104 = sor.u32 %s102, %s103
    %p105 = scmp.eq.s32.totalorder %s104, 0
    %s107 = sadd.s32 %s106, 1
    %s108 = scalar_select %p105, %s106, %s107
    %p111 = pneg %p105
    %p112 = scmp.eq.s32.totalorder %s19, 3
    %p113 = por %p111, %p112
    %p114 = scmp.ne.s32.totalorder %s106, %s109
    %p115 = scmp.eq.s32.totalorder %s19, 0
    %p116 = por %p114, %p115
    %p117 = scmp.ne.s32.totalorder %s106, %s109
    %p118 = scmp.eq.s32.totalorder %s24, 3
    %p119 = por %p117, %p118
    %p120 = scmp.ne.s32.totalorder %s109, %s110
    %p121 = scmp.eq.s32.totalorder %s24, 0
    %p122 = por %p120, %p121
    %p123 = scmp.ne.s32.totalorder %s109, %s110
    %p124 = scmp.eq.s32.totalorder %s25, 3
    %p125 = por %p123, %p124
    %p127 = scmp.ne.s32.totalorder %s110, %s126
    %p128 = scmp.eq.s32.totalorder %s25, 0
    %p129 = por %p127, %p128
    %s131 = sadd.s32 %s130, 1
    %p134 = scmp.eq.s32.totalorder %s19, 3
    %p135 = scmp.ne.s32.totalorder %s130, %s132
    %p136 = scmp.eq.s32.totalorder %s19, 0
    %p137 = por %p135, %p136
    %p138 = scmp.ne.s32.totalorder %s130, %s132
    %p139 = scmp.eq.s32.totalorder %s24, 3
    %p140 = por %p138, %p139
    %p141 = scmp.ne.s32.totalorder %s132, %s133
    %p142 = scmp.eq.s32.totalorder %s24, 0
    %p143 = por %p141, %p142
    %p144 = scmp.ne.s32.totalorder %s132, %s133
    %p145 = scmp.eq.s32.totalorder %s25, 3
    %p146 = por %p144, %p145
    %p148 = scmp.ne.s32.totalorder %s133, %s147
    %p149 = scmp.eq.s32.totalorder %s25, 0
    %p150 = por %p148, %p149
    %s152 = sadd.s32 %s151, 1
    %p155 = scmp.eq.s32.totalorder %s19, 3
    %p156 = scmp.ne.s32.totalorder %s151, %s153
    %p157 = scmp.eq.s32.totalorder %s19, 0
    %p158 = por %p156, %p157
    %p159 = scmp.ne.s32.totalorder %s151, %s153
    %p160 = scmp.eq.s32.totalorder %s24, 3
    %p161 = por %p159, %p160
    %p162 = scmp.ne.s32.totalorder %s153, %s154
    %p163 = scmp.eq.s32.totalorder %s24, 0
    %p164 = por %p162, %p163
    %p165 = scmp.ne.s32.totalorder %s153, %s154
    %p166 = scmp.eq.s32.totalorder %s25, 3
    %p167 = por %p165, %p166
    %p169 = scmp.ne.s32.totalorder %s154, %s168
    %p170 = scmp.eq.s32.totalorder %s25, 0
    %p171 = por %p169, %p170
    %s173 = sadd.s32 %s172, 1
    %p176 = scmp.eq.s32.totalorder %s19, 3
    %p177 = scmp.ne.s32.totalorder %s172, %s174
    %p178 = scmp.eq.s32.totalorder %s19, 0
    %p179 = por %p177, %p178
    %p180 = scmp.ne.s32.totalorder %s172, %s174
    %p181 = scmp.eq.s32.totalorder %s24, 3
    %p182 = por %p180, %p181
    %p183 = scmp.ne.s32.totalorder %s174, %s175
    %p184 = scmp.eq.s32.totalorder %s24, 0
    %p185 = por %p183, %p184
    %p186 = scmp.ne.s32.totalorder %s174, %s175
    %p187 = scmp.eq.s32.totalorder %s25, 3
    %p188 = por %p186, %p187
    %p190 = scmp.ne.s32.totalorder %s175, %s189
    %p191 = scmp.eq.s32.totalorder %s25, 0
    %p192 = por %p190, %p191
    %s194 = sadd.s32 %s193, 1
    %p197 = scmp.eq.s32.totalorder %s19, 3
    %p198 = scmp.ne.s32.totalorder %s193, %s195
    %p199 = scmp.eq.s32.totalorder %s19, 0
    %p200 = por %p198, %p199
    %p201 = scmp.ne.s32.totalorder %s193, %s195
    %p202 = scmp.eq.s32.totalorder %s24, 3
    %p203 = por %p201, %p202
    %p204 = scmp.ne.s32.totalorder %s195, %s196
    %p205 = scmp.eq.s32.totalorder %s24, 0
    %p206 = por %p204, %p205
    %p207 = scmp.ne.s32.totalorder %s195, %s196
    %p208 = scmp.eq.s32.totalorder %s25, 3
    %p209 = por %p207, %p208
    %p211 = scmp.ne.s32.totalorder %s196, %s210
    %p212 = scmp.eq.s32.totalorder %s25, 0
    %p213 = por %p211, %p212
    %s215 = sadd.s32 %s214, 1
    %p218 = scmp.eq.s32.totalorder %s19, 3
    %p219 = scmp.ne.s32.totalorder %s214, %s216
    %p220 = scmp.eq.s32.totalorder %s19, 0
    %p221 = por %p219, %p220
    %p222 = scmp.ne.s32.totalorder %s214, %s216
    %p223 = scmp.eq.s32.totalorder %s24, 3
    %p224 = por %p222, %p223
    %p225 = scmp.ne.s32.totalorder %s216, %s217
    %p226 = scmp.eq.s32.totalorder %s24, 0
    %p227 = por %p225, %p226
    %p228 = scmp.ne.s32.totalorder %s216, %s217
    %p229 = scmp.eq.s32.totalorder %s25, 3
    %p230 = por %p228, %p229
    %p232 = scmp.ne.s32.totalorder %s217, %s231
    %p233 = scmp.eq.s32.totalorder %s25, 0
    %p234 = por %p232, %p233
    %s236 = sadd.s32 %s235, 1
    %p239 = scmp.eq.s32.totalorder %s19, 3
    %p240 = scmp.ne.s32.totalorder %s235, %s237
    %p241 = scmp.eq.s32.totalorder %s19, 0
    %p242 = por %p240, %p241
    %p243 = scmp.ne.s32.totalorder %s235, %s237
    %p244 = scmp.eq.s32.totalorder %s24, 3
    %p245 = por %p243, %p244
    %p246 = scmp.ne.s32.totalorder %s237, %s238
    %p247 = scmp.eq.s32.totalorder %s24, 0
    %p248 = por %p246, %p247
    %p249 = scmp.ne.s32.totalorder %s237, %s238
    %p250 = scmp.eq.s32.totalorder %s25, 3
    %p251 = por %p249, %p250
    %p253 = scmp.ne.s32.totalorder %s238, %s252
    %p254 = scmp.eq.s32.totalorder %s25, 0
    %p255 = por %p253, %p254
    %s257 = sadd.s32 %s256, 1
    %p260 = scmp.eq.s32.totalorder %s19, 3
    %p261 = scmp.ne.s32.totalorder %s256, %s258
    %p262 = scmp.eq.s32.totalorder %s19, 0
    %p263 = por %p261, %p262
    %p264 = scmp.ne.s32.totalorder %s256, %s258
    %p265 = scmp.eq.s32.totalorder %s24, 3
    %p266 = por %p264, %p265
    %p267 = scmp.ne.s32.totalorder %s258, %s259
    %p268 = scmp.eq.s32.totalorder %s24, 0
    %p269 = por %p267, %p268
    %p270 = scmp.ne.s32.totalorder %s258, %s259
    %p271 = scmp.eq.s32.totalorder %s25, 3
    %p272 = por %p270, %p271
    %p274 = scmp.ne.s32.totalorder %s259, %s273
    %p275 = scmp.eq.s32.totalorder %s25, 0
    %p276 = por %p274, %p275
    %s278 = sadd.s32 %s277, 1
    %p281 = scmp.eq.s32.totalorder %s19, 3
    %p282 = scmp.ne.s32.totalorder %s277, %s279
    %p283 = scmp.eq.s32.totalorder %s19, 0
    %p284 = por %p282, %p283
    %p285 = scmp.ne.s32.totalorder %s277, %s279
    %p286 = scmp.eq.s32.totalorder %s24, 3
    %p287 = por %p285, %p286
    %p288 = scmp.ne.s32.totalorder %s279, %s280
    %p289 = scmp.eq.s32.totalorder %s24, 0
    %p290 = por %p288, %p289
    %p291 = scmp.ne.s32.totalorder %s279, %s280
    %p292 = scmp.eq.s32.totalorder %s25, 3
    %p293 = por %p291, %p292
    %p295 = scmp.ne.s32.totalorder %s280, %s294
    %p296 = scmp.eq.s32.totalorder %s25, 0
    %p297 = por %p295, %p296
    %s299 = sadd.s32 %s298, 1
    %p302 = scmp.eq.s32.totalorder %s19, 3
    %p303 = scmp.ne.s32.totalorder %s298, %s300
    %p304 = scmp.eq.s32.totalorder %s19, 0
    %p305 = por %p303, %p304
    %p306 = scmp.ne.s32.totalorder %s298, %s300
    %p307 = scmp.eq.s32.totalorder %s24, 3
    %p308 = por %p306, %p307
    %p309 = scmp.ne.s32.totalorder %s300, %s301
    %p310 = scmp.eq.s32.totalorder %s24, 0
    %p311 = por %p309, %p310
    %p312 = scmp.ne.s32.totalorder %s300, %s301
    %p313 = scmp.eq.s32.totalorder %s25, 3
    %p314 = por %p312, %p313
    %p316 = scmp.ne.s32.totalorder %s301, %s315
    %p317 = scmp.eq.s32.totalorder %s25, 0
    %p318 = por %p316, %p317
    %s320 = sadd.s32 %s319, 1
    %p323 = scmp.eq.s32.totalorder %s19, 3
    %p324 = scmp.ne.s32.totalorder %s319, %s321
    %p325 = scmp.eq.s32.totalorder %s19, 0
    %p326 = por %p324, %p325
    %p327 = scmp.ne.s32.totalorder %s319, %s321
    %p328 = scmp.eq.s32.totalorder %s24, 3
    %p329 = por %p327, %p328
    %p330 = scmp.ne.s32.totalorder %s321, %s322
    %p331 = scmp.eq.s32.totalorder %s24, 0
    %p332 = por %p330, %p331
    %p333 = scmp.ne.s32.totalorder %s321, %s322
    %p334 = scmp.eq.s32.totalorder %s25, 3
    %p335 = por %p333, %p334
    %p337 = scmp.ne.s32.totalorder %s322, %s336
    %p338 = scmp.eq.s32.totalorder %s25, 0
    %p339 = por %p337, %p338
    %s340 = ssub.s32 %s26, %s45
    %s341 = ssub.s32 %s27, %s41
    %s342 = sor.u32 %s340, %s341
    %p343 = scmp.eq.s32.totalorder %s342, 0
    %s345 = sadd.s32 %s344, 1
    %s346 = scalar_select %p343, %s344, %s345
    %p349 = pneg %p343
    %p350 = scmp.eq.s32.totalorder %s19, 3
    %p351 = por %p349, %p350
    %p352 = scmp.ne.s32.totalorder %s344, %s347
    %p353 = scmp.eq.s32.totalorder %s19, 0
    %p354 = por %p352, %p353
    %p355 = scmp.ne.s32.totalorder %s344, %s347
    %p356 = scmp.eq.s32.totalorder %s24, 3
    %p357 = por %p355, %p356
    %p358 = scmp.ne.s32.totalorder %s347, %s348
    %p359 = scmp.eq.s32.totalorder %s24, 0
    %p360 = por %p358, %p359
    %p361 = scmp.ne.s32.totalorder %s347, %s348
    %p362 = scmp.eq.s32.totalorder %s25, 3
    %p363 = por %p361, %p362
    %p365 = scmp.ne.s32.totalorder %s348, %s364
    %p366 = scmp.eq.s32.totalorder %s25, 0
    %p367 = por %p365, %p366
    %p368 = scmp.le.s32.totalorder 1, %s19
    %p369 = scmp.lt.s32.totalorder %s19, 5
    %p370 = pnand %p368, %p369
    %p371 = pneg %p370
    // Predicated region
    $region9: #{lxrt_x_layer_forward.5} parent=5 // pred_check
      _
    $region10: #{lxrt_x_layer_forward.5} parent=5 // pred_check_branch
      %373 = sbr.rel (%p370) target = $region12
    $region11: #{lxrt_x_layer_forward.5} parent=5 // pred_region
      %s374 = ssub.s32 %s19, 1
      // Predicated region
      $region13: #{lxrt_x_layer_forward.5} parent=11 // pred_check
        %p375 = pneg %p143
      $region14: #{lxrt_x_layer_forward.5} parent=11 // pred_check_branch
        %377 = sbr.rel (%p375) target = $region16
      $region15: #{lxrt_x_layer_forward.5} parent=11 // pred_region
        _
      $region16: #{lxrt_x_layer_forward.5} parent=11 // pred_fallthru
        _
      // Predicated region
      $region17: #{lxrt_x_layer_forward.5} parent=11 // pred_check
        %p378 = pneg %p164
      $region18: #{lxrt_x_layer_forward.5} parent=11 // pred_check_branch
        %380 = sbr.rel (%p378) target = $region20
      $region19: #{lxrt_x_layer_forward.5} parent=11 // pred_region
        _
      $region20: #{lxrt_x_layer_forward.5} parent=11 // pred_fallthru
        _
      // Predicated region
      $region21: #{lxrt_x_layer_forward.5} parent=11 // pred_check
        %p381 = pneg %p185
      $region22: #{lxrt_x_layer_forward.5} parent=11 // pred_check_branch
        %383 = sbr.rel (%p381) target = $region24
      $region23: #{lxrt_x_layer_forward.5} parent=11 // pred_region
        _
      $region24: #{lxrt_x_layer_forward.5} parent=11 // pred_fallthru
        _
      // Predicated region
      $region25: #{lxrt_x_layer_forward.5} parent=11 // pred_check
        %p384 = pneg %p206
      $region26: #{lxrt_x_layer_forward.5} parent=11 // pred_check_branch
        %386 = sbr.rel (%p384) target = $region28
      $region27: #{lxrt_x_layer_forward.5} parent=11 // pred_region
        _
      $region28: #{lxrt_x_layer_forward.5} parent=11 // pred_fallthru
        _
      // Predicated region
      $region29: #{lxrt_x_layer_forward.5} parent=11 // pred_check
        %p387 = pneg %p227
      $region30: #{lxrt_x_layer_forward.5} parent=11 // pred_check_branch
        %389 = sbr.rel (%p387) target = $region32
      $region31: #{lxrt_x_layer_forward.5} parent=11 // pred_region
        _
      $region32: #{lxrt_x_layer_forward.5} parent=11 // pred_fallthru
        _
      // Predicated region
      $region33: #{lxrt_x_layer_forward.5} parent=11 // pred_check
        %p390 = pneg %p248
      $region34: #{lxrt_x_layer_forward.5} parent=11 // pred_check_branch
        %392 = sbr.rel (%p390) target = $region36
      $region35: #{lxrt_x_layer_forward.5} parent=11 // pred_region
        _
      $region36: #{lxrt_x_layer_forward.5} parent=11 // pred_fallthru
        _
      // Predicated region
      $region37: #{lxrt_x_layer_forward.5} parent=11 // pred_check
        %p393 = pneg %p269
      $region38: #{lxrt_x_layer_forward.5} parent=11 // pred_check_branch
        %395 = sbr.rel (%p393) target = $region40
      $region39: #{lxrt_x_layer_forward.5} parent=11 // pred_region
        _
      $region40: #{lxrt_x_layer_forward.5} parent=11 // pred_fallthru
        _
      // Predicated region
      $region41: #{lxrt_x_layer_forward.5} parent=11 // pred_check
        %p396 = pneg %p290
      $region42: #{lxrt_x_layer_forward.5} parent=11 // pred_check_branch
        %398 = sbr.rel (%p396) target = $region44
      $region43: #{lxrt_x_layer_forward.5} parent=11 // pred_region
        _
      $region44: #{lxrt_x_layer_forward.5} parent=11 // pred_fallthru
        _
      // Predicated region
      $region45: #{lxrt_x_layer_forward.5} parent=11 // pred_check
        %p399 = pneg %p311
      $region46: #{lxrt_x_layer_forward.5} parent=11 // pred_check_branch
        %401 = sbr.rel (%p399) target = $region48
      $region47: #{lxrt_x_layer_forward.5} parent=11 // pred_region
        _
      $region48: #{lxrt_x_layer_forward.5} parent=11 // pred_fallthru
        _
      // Predicated region
      $region49: #{lxrt_x_layer_forward.5} parent=11 // pred_check
        %p402 = pneg %p332
      $region50: #{lxrt_x_layer_forward.5} parent=11 // pred_check_branch
        %404 = sbr.rel (%p402) target = $region52
      $region51: #{lxrt_x_layer_forward.5} parent=11 // pred_region
        _
      $region52: #{lxrt_x_layer_forward.5} parent=11 // pred_fallthru
        _
    $region12: #{lxrt_x_layer_forward.5} parent=5 // pred_fallthru
      _
    %p405 = scmp.lt.s32.totalorder %s19, 4
    // Predicated region
    $region53: #{lxrt_x_layer_forward.5} parent=5 // pred_check
      %p406 = pneg %p405
    $region54: #{lxrt_x_layer_forward.5} parent=5 // pred_check_branch
      %408 = sbr.rel (%p406) target = $region56
    $region55: #{lxrt_x_layer_forward.5} parent=5 // pred_region
      // Predicated region
      $region57: #{lxrt_x_layer_forward.5} parent=55 // pred_check
        %p409 = pneg %p60
      $region58: #{lxrt_x_layer_forward.5} parent=55 // pred_check_branch
        %411 = sbr.rel (%p409) target = $region60
      $region59: #{lxrt_x_layer_forward.5} parent=55 // pred_region
        %p412 = scmp.lt.s32.totalorder %s26, 3
        %s413 = scalar_select %p412, %s26, 3
        %p414 = scmp.lt.s32.totalorder %s27, 0
        %s415 = scalar_select %p414, %s27, 0
        %s416 = sadd.s32 %s415, %s413
        %s417 = smul.addr %s416, 8
        %s418 = scalar_lea.vmem %s0, %s417
      $region60: #{lxrt_x_layer_forward.5} parent=55 // pred_fallthru
        _
      // Predicated region
      $region61: #{lxrt_x_layer_forward.5} parent=55 // pred_check
        %p419 = pneg %p88
      $region62: #{lxrt_x_layer_forward.5} parent=55 // pred_check_branch
        %421 = sbr.rel (%p419) target = $region64
      $region63: #{lxrt_x_layer_forward.5} parent=55 // pred_region
        %p422 = scmp.lt.s32.totalorder %s26, 3
        %s423 = scalar_select %p422, %s26, 3
        %p424 = scmp.lt.s32.totalorder %s28, 0
        %s425 = scalar_select %p424, %s28, 0
        %s426 = sadd.s32 %s425, %s423
        %s427 = smul.addr %s426, 8
        %s428 = scalar_lea.vmem %s1, %s427
      $region64: #{lxrt_x_layer_forward.5} parent=55 // pred_fallthru
        _
      // Predicated region
      $region65: #{lxrt_x_layer_forward.5} parent=55 // pred_check
        %p429 = pneg %p116
      $region66: #{lxrt_x_layer_forward.5} parent=55 // pred_check_branch
        %431 = sbr.rel (%p429) target = $region68
      $region67: #{lxrt_x_layer_forward.5} parent=55 // pred_region
        %p432 = scmp.lt.s32.totalorder %s26, 3
        %s433 = scalar_select %p432, %s26, 3
        %p434 = scmp.lt.s32.totalorder %s28, 0
        %s435 = scalar_select %p434, %s28, 0
        %s436 = sadd.s32 %s435, %s433
        %s437 = scalar_lea.vmem %s2, %s436
      $region68: #{lxrt_x_layer_forward.5} parent=55 // pred_fallthru
        _
    $region56: #{lxrt_x_layer_forward.5} parent=5 // pred_fallthru
      _
    %p438 = scmp.le.s32.totalorder 1, %s19
    %p439 = scmp.lt.s32.totalorder %s19, 5
    %p440 = pnand %p438, %p439
    %p441 = pneg %p440
    // Predicated region
    $region69: #{lxrt_x_layer_forward.5} parent=5 // pred_check
      _
    $region70: #{lxrt_x_layer_forward.5} parent=5 // pred_check_branch
      %443 = sbr.rel (%p440) target = $region72
    $region71: #{lxrt_x_layer_forward.5} parent=5 // pred_region
      %s444 = ssub.s32 %s19, 1
      %p445 = scmp.lt.s32.totalorder %s29, 3
      %s446 = scalar_select %p445, %s29, 3
      %p447 = scmp.lt.s32.totalorder %s30, 0
      %s448 = scalar_select %p447, %s30, 0
      %s449 = sadd.s32 %s448, %s446
      %s450 = smul.addr %s449, 8
      %s451 = scalar_lea.vmem %s0, %s450
      %p452 = pneg %p66
      %p453 = pneg %p63
      %p454 = scmp.lt.s32.totalorder %s29, 3
      %s455 = scalar_select %p454, %s29, 3
      %p456 = scmp.lt.s32.totalorder %s31, 0
      %s457 = scalar_select %p456, %s31, 0
      %s458 = sadd.s32 %s457, %s455
      %s459 = smul.addr %s458, 8
      %s460 = scalar_lea.vmem %s1, %s459
      %p461 = pneg %p94
      %p462 = pneg %p91
      %p463 = scmp.lt.s32.totalorder %s29, 3
      %s464 = scalar_select %p463, %s29, 3
      %p465 = scmp.lt.s32.totalorder %s31, 0
      %s466 = scalar_select %p465, %s31, 0
      %s467 = sadd.s32 %s466, %s464
      %s468 = scalar_lea.vmem %s2, %s467
      %p469 = pneg %p122
      %p470 = pneg %p119
      %p471 = pneg %p143
      %p472 = pneg %p140
      %p473 = pneg %p164
      %p474 = pneg %p161
      %p475 = pneg %p185
      %p476 = pneg %p182
      %p477 = pneg %p206
      %p478 = pneg %p203
      %p479 = pneg %p227
      %p480 = pneg %p224
      %p481 = pneg %p248
      %p482 = pneg %p245
      %p483 = pneg %p269
      %p484 = pneg %p266
      %p485 = pneg %p290
      %p486 = pneg %p287
      %p487 = pneg %p311
      %p488 = pneg %p308
      %p489 = pneg %p332
      %p490 = pneg %p329
      %p491 = pneg %p360
      %p492 = pneg %p357
      %p493 = scmp.lt.s32.totalorder %s29, 3
      %s494 = scalar_select %p493, %s29, 3
      %p495 = scmp.lt.s32.totalorder %s30, 0
      %s496 = scalar_select %p495, %s30, 0
      %s497 = sadd.s32 %s496, %s494
      %s498 = smul.addr %s497, 8
      %s499 = scalar_lea.vmem %s13, %s498
      %p500 = scmp.lt.s32.totalorder %s29, 3
      %s501 = scalar_select %p500, %s29, 3
      %p502 = scmp.lt.s32.totalorder %s30, 0
      %s503 = scalar_select %p502, %s30, 0
      %s504 = sadd.s32 %s503, %s501
      %s505 = smul.addr %s504, 8
      %s506 = scalar_lea.vmem %s0, %s505
      %p507 = scmp.lt.s32.totalorder %s29, 3
      %s508 = scalar_select %p507, %s29, 3
      %p509 = scmp.lt.s32.totalorder %s31, 0
      %s510 = scalar_select %p509, %s31, 0
      %s511 = sadd.s32 %s510, %s508
      %s512 = smul.addr %s511, 8
      %s513 = scalar_lea.vmem %s1, %s512
      %p514 = scmp.lt.s32.totalorder %s29, 3
      %s515 = scalar_select %p514, %s29, 3
      %p516 = scmp.lt.s32.totalorder %s31, 0
      %s517 = scalar_select %p516, %s31, 0
      %s518 = sadd.s32 %s517, %s515
      %s519 = scalar_lea.vmem %s2, %s518
      %p520 = scmp.lt.s32.totalorder %s29, 3
      %s521 = scalar_select %p520, %s29, 3
      %p522 = scmp.lt.s32.totalorder %s30, 0
      %s523 = scalar_select %p522, %s30, 0
      %s524 = sadd.s32 %s523, %s521
      %s525 = smul.addr %s524, 8
      %s526 = scalar_lea.vmem %s13, %s525
      %p527 = scmp.eq.s32.totalorder %s31, 0
      // Predicated region
      $region73: #{lxrt_x_layer_forward.5} parent=71 // pred_check
        %p528 = pneg %p527
      $region74: #{lxrt_x_layer_forward.5} parent=71 // pred_check_branch
        %530 = sbr.rel (%p528) target = $region76
      $region75: #{lxrt_x_layer_forward.5} parent=71 // pred_region
        %v531 = vld [vmem:[%s506] sm:$0xff]
        %v532 = vld [vmem:[%s3] sm:$0xff]
        %v533 = vld [vmem:[%s3 + $0x8] sm:$0xff]
        %v534 = vld [vmem:[%s3 + $0x10] sm:$0xff]
        %v535 = vld [vmem:[%s3 + $0x18] sm:$0xff]
        %v536 = vld [vmem:[%s4] sm:$0x1]
        %v538 = vlaneseq
        %v539 = vshrl.u32 %v538, 7
        %v540 = vsub.s32 0, %v539
        %v541 = vrot.slane %v536, %v540
        %vm543 = vcmask 261120
        %v545 = vsel %vm543, %v531, 0
        %547 = vmatprep.subr.mxu0 0.0
        %548 = vmatpush1.msra.mxu0 %v532
        %549 = vmatprep.subr.mxu0 0.0
        %550 = vmatpush1.msra.mxu0 %v533
        %551 = vmatprep.subr.mxu0 0.0
        %552 = vmatpush1.msra.mxu0 %v534
        %553 = vmatprep.subr.mxu0 0.0
        %554 = vmatpush1.msra.mxu0 %v535
        %555 = vmatprep.subr.mxu0 0.0
        %556 = vmatpush1.msra.mxu0 0.0
        %557 = vmatprep.subr.mxu0 0.0
        %558 = vmatpush1.msra.mxu0 0.0
        %559 = vmatprep.subr.mxu0 0.0
        %560 = vmatpush1.msra.mxu0 0.0
        %561 = vmatprep.subr.mxu0 0.0
        %562 = vmatpush1.msra.mxu0 0.0
        %563 = vmatprep.subr.mxu0 0.0
        %564 = vmatpush1.msra.mxu0 0.0
        %565 = vmatprep.subr.mxu0 0.0
        %566 = vmatpush1.msra.mxu0 0.0
        %567 = vmatprep.subr.mxu0 0.0
        %568 = vmatpush1.msra.mxu0 0.0
        %569 = vmatprep.subr.mxu0 0.0
        %570 = vmatpush1.msra.mxu0 0.0
        %571 = vmatprep.subr.mxu0 0.0
        %572 = vmatpush1.msra.mxu0 0.0
        %573 = vmatprep.subr.mxu0 0.0
        %574 = vmatpush1.msra.mxu0 0.0
        %575 = vmatprep.subr.mxu0 0.0
        %576 = vmatpush1.msra.mxu0 0.0
        %577 = vmatprep.subr.mxu0 0.0
        %578 = vmatpush1.msra.mxu0 0.0
        %579 = vmatprep.subr.mxu0 0.0
        %580 = vmatpush1.msra.mxu0 0.0
        %581 = vmatprep.subr.mxu0 0.0
        %582 = vmatpush1.msra.mxu0 0.0
        %583 = vmatprep.subr.mxu0 0.0
        %584 = vmatpush1.msra.mxu0 0.0
        %585 = vmatprep.subr.mxu0 0.0
        %586 = vmatpush1.msra.mxu0 0.0
        %587 = vmatprep.subr.mxu0 0.0
        %588 = vmatpush1.msra.mxu0 0.0
        %589 = vmatprep.subr.mxu0 0.0
        %590 = vmatpush1.msra.mxu0 0.0
        %591 = vmatprep.subr.mxu0 0.0
        %592 = vmatpush1.msra.mxu0 0.0
        %593 = vmatprep.subr.mxu0 0.0
        %594 = vmatpush1.msra.mxu0 0.0
        %595 = vmatprep.subr.mxu0 0.0
        %596 = vmatpush1.msra.mxu0 0.0
        %597 = vmatprep.subr.mxu0 0.0
        %598 = vmatpush1.msra.mxu0 0.0
        %599 = vmatprep.subr.mxu0 0.0
        %600 = vmatpush1.msra.mxu0 0.0
        %601 = vmatprep.subr.mxu0 0.0
        %602 = vmatpush1.msra.mxu0 0.0
        %603 = vmatprep.subr.mxu0 0.0
        %604 = vmatpush1.msra.mxu0 0.0
        %605 = vmatprep.subr.mxu0 0.0
        %606 = vmatpush1.msra.mxu0 0.0
        %607 = vmatprep.subr.mxu0 0.0
        %608 = vmatpush1.msra.mxu0 0.0
        %609 = vmatprep.subr.mxu0 0.0
        %610 = vmatpush1.msra.mxu0 0.0
        %611 = vmatprep.mubr.f32.mxu0 0.0
        %612 = vmatmul.mubr.f32.gmra.mrb[0].mxu0 %v545
        %v613 = vpop.f32.mrb[0].mxu0
        %v614 = vadd.f32 %v541, %v613
        %v615 = vpop.f32.mrb[0].mxu0
        %616 = vdwg.mxu0
        %vm617 = vcmask 64512
        %618 = vst.msk [vmem:[#allocation2] sm:$0xff] %vm617, %v614
        %620 = vrot.lane.b32.xlu0 %v614, 120
        %v621 = vpop.permute.xlu0 %620
        %s623 = scalar_lea.vmem [#allocation2], 8
        %624 = vst.msk [vmem:[%s623] sm:$0xff] %vm617, %v621
        %625 = vrot.lane.b32.xlu0 %v614, 112
        %v626 = vpop.permute.xlu0 %625
        %s628 = scalar_lea.vmem [#allocation2], 16
        %629 = vst.msk [vmem:[%s628] sm:$0xff] %vm617, %v626
        %630 = vrot.lane.b32.xlu0 %v614, 104
        %v631 = vpop.permute.xlu0 %630
        %s633 = scalar_lea.vmem [#allocation2], 24
        %634 = vst.msk [vmem:[%s633] sm:$0xff] %vm617, %v631
        %vm635 = vcmask 7168
        %636 = vst.msk [vmem:[#allocation5] sm:$0xff] %vm635, -inf
        %637 = vst.msk [vmem:[#allocation5 + $0x8] sm:$0xff] %vm635, -inf
        %638 = vst.msk [vmem:[#allocation5 + $0x10] sm:$0xff] %vm635, -inf
        %639 = vst.msk [vmem:[#allocation5 + $0x18] sm:$0xff] %vm635, -inf
        %640 = vst.msk [vmem:[#allocation6] sm:$0xff] %vm635, 0.0
        %641 = vst.msk [vmem:[#allocation6 + $0x8] sm:$0xff] %vm635, 0.0
        %642 = vst.msk [vmem:[#allocation6 + $0x10] sm:$0xff] %vm635, 0.0
        %643 = vst.msk [vmem:[#allocation6 + $0x18] sm:$0xff] %vm635, 0.0
        %644 = vst.msk [vmem:[#allocation7] sm:$0xff] %vm617, 0.0
        %645 = vst.msk [vmem:[#allocation7 + $0x8] sm:$0xff] %vm617, 0.0
        %646 = vst.msk [vmem:[#allocation7 + $0x10] sm:$0xff] %vm617, 0.0
        %647 = vst.msk [vmem:[#allocation7 + $0x18] sm:$0xff] %vm617, 0.0
      $region76: #{lxrt_x_layer_forward.5} parent=71 // pred_fallthru
        _
      %v648 = vld [vmem:[%s513] sm:$0xff]
      %v649 = vld [vmem:[%s5] sm:$0xff]
      %v650 = vld [vmem:[%s5 + $0x8] sm:$0xff]
      %v651 = vld [vmem:[%s5 + $0x10] sm:$0xff]
      %v652 = vld [vmem:[%s5 + $0x18] sm:$0xff]
      %v653 = vld [vmem:[%s6] sm:$0x1]
      %v655 = vlaneseq
      %v656 = vshrl.u32 %v655, 7
      %v657 = vsub.s32 0, %v656
      %v658 = vrot.slane %v653, %v657
      %vm660 = vcmask 261120
      %v662 = vsel %vm660, %v648, 0
      %664 = vmatprep.subr.mxu0 0.0
      %665 = vmatpush1.msra.mxu0 %v649
      %666 = vmatprep.subr.mxu0 0.0
      %667 = vmatpush1.msra.mxu0 %v650
      %668 = vmatprep.subr.mxu0 0.0
      %669 = vmatpush1.msra.mxu0 %v651
      %670 = vmatprep.subr.mxu0 0.0
      %671 = vmatpush1.msra.mxu0 %v652
      %672 = vmatprep.subr.mxu0 0.0
      %673 = vmatpush1.msra.mxu0 0.0
      %674 = vmatprep.subr.mxu0 0.0
      %675 = vmatpush1.msra.mxu0 0.0
      %676 = vmatprep.subr.mxu0 0.0
      %677 = vmatpush1.msra.mxu0 0.0
      %678 = vmatprep.subr.mxu0 0.0
      %679 = vmatpush1.msra.mxu0 0.0
      %680 = vmatprep.subr.mxu0 0.0
      %681 = vmatpush1.msra.mxu0 0.0
      %682 = vmatprep.subr.mxu0 0.0
      %683 = vmatpush1.msra.mxu0 0.0
      %684 = vmatprep.subr.mxu0 0.0
      %685 = vmatpush1.msra.mxu0 0.0
      %686 = vmatprep.subr.mxu0 0.0
      %687 = vmatpush1.msra.mxu0 0.0
      %688 = vmatprep.subr.mxu0 0.0
      %689 = vmatpush1.msra.mxu0 0.0
      %690 = vmatprep.subr.mxu0 0.0
      %691 = vmatpush1.msra.mxu0 0.0
      %692 = vmatprep.subr.mxu0 0.0
      %693 = vmatpush1.msra.mxu0 0.0
      %694 = vmatprep.subr.mxu0 0.0
      %695 = vmatpush1.msra.mxu0 0.0
      %696 = vmatprep.subr.mxu0 0.0
      %697 = vmatpush1.msra.mxu0 0.0
      %698 = vmatprep.subr.mxu0 0.0
      %699 = vmatpush1.msra.mxu0 0.0
      %700 = vmatprep.subr.mxu0 0.0
      %701 = vmatpush1.msra.mxu0 0.0
      %702 = vmatprep.subr.mxu0 0.0
      %703 = vmatpush1.msra.mxu0 0.0
      %704 = vmatprep.subr.mxu0 0.0
      %705 = vmatpush1.msra.mxu0 0.0
      %706 = vmatprep.subr.mxu0 0.0
      %707 = vmatpush1.msra.mxu0 0.0
      %708 = vmatprep.subr.mxu0 0.0
      %709 = vmatpush1.msra.mxu0 0.0
      %710 = vmatprep.subr.mxu0 0.0
      %711 = vmatpush1.msra.mxu0 0.0
      %712 = vmatprep.subr.mxu0 0.0
      %713 = vmatpush1.msra.mxu0 0.0
      %714 = vmatprep.subr.mxu0 0.0
      %715 = vmatpush1.msra.mxu0 0.0
      %716 = vmatprep.subr.mxu0 0.0
      %717 = vmatpush1.msra.mxu0 0.0
      %718 = vmatprep.subr.mxu0 0.0
      %719 = vmatpush1.msra.mxu0 0.0
      %720 = vmatprep.subr.mxu0 0.0
      %721 = vmatpush1.msra.mxu0 0.0
      %722 = vmatprep.subr.mxu0 0.0
      %723 = vmatpush1.msra.mxu0 0.0
      %724 = vmatprep.subr.mxu0 0.0
      %725 = vmatpush1.msra.mxu0 0.0
      %726 = vmatprep.subr.mxu0 0.0
      %727 = vmatpush1.msra.mxu0 0.0
      %728 = vmatprep.mubr.f32.mxu0 0.0
      %729 = vmatmul.mubr.f32.gmra.mrb[0].mxu0 %v662
      %v730 = vpop.f32.mrb[0].mxu0
      %v731 = vadd.f32 %v658, %v730
      %v732 = vpop.f32.mrb[0].mxu0
      %733 = vdwg.mxu0
      %v734 = vld [vmem:[%s7] sm:$0xff]
      %v735 = vld [vmem:[%s7 + $0x8] sm:$0xff]
      %v736 = vld [vmem:[%s7 + $0x10] sm:$0xff]
      %v737 = vld [vmem:[%s7 + $0x18] sm:$0xff]
      %v738 = vld [vmem:[%s8] sm:$0x1]
      %v740 = vlaneseq
      %v741 = vshrl.u32 %v740, 7
      %v742 = vsub.s32 0, %v741
      %v743 = vrot.slane %v738, %v742
      %745 = vmatprep.subr.mxu0 0.0
      %746 = vmatpush1.msra.mxu0 %v734
      %747 = vmatprep.subr.mxu0 0.0
      %748 = vmatpush1.msra.mxu0 %v735
      %749 = vmatprep.subr.mxu0 0.0
      %750 = vmatpush1.msra.mxu0 %v736
      %751 = vmatprep.subr.mxu0 0.0
      %752 = vmatpush1.msra.mxu0 %v737
      %753 = vmatprep.subr.mxu0 0.0
      %754 = vmatpush1.msra.mxu0 0.0
      %755 = vmatprep.subr.mxu0 0.0
      %756 = vmatpush1.msra.mxu0 0.0
      %757 = vmatprep.subr.mxu0 0.0
      %758 = vmatpush1.msra.mxu0 0.0
      %759 = vmatprep.subr.mxu0 0.0
      %760 = vmatpush1.msra.mxu0 0.0
      %761 = vmatprep.subr.mxu0 0.0
      %762 = vmatpush1.msra.mxu0 0.0
      %763 = vmatprep.subr.mxu0 0.0
      %764 = vmatpush1.msra.mxu0 0.0
      %765 = vmatprep.subr.mxu0 0.0
      %766 = vmatpush1.msra.mxu0 0.0
      %767 = vmatprep.subr.mxu0 0.0
      %768 = vmatpush1.msra.mxu0 0.0
      %769 = vmatprep.subr.mxu0 0.0
      %770 = vmatpush1.msra.mxu0 0.0
      %771 = vmatprep.subr.mxu0 0.0
      %772 = vmatpush1.msra.mxu0 0.0
      %773 = vmatprep.subr.mxu0 0.0
      %774 = vmatpush1.msra.mxu0 0.0
      %775 = vmatprep.subr.mxu0 0.0
      %776 = vmatpush1.msra.mxu0 0.0
      %777 = vmatprep.subr.mxu0 0.0
      %778 = vmatpush1.msra.mxu0 0.0
      %779 = vmatprep.subr.mxu0 0.0
      %780 = vmatpush1.msra.mxu0 0.0
      %781 = vmatprep.subr.mxu0 0.0
      %782 = vmatpush1.msra.mxu0 0.0
      %783 = vmatprep.subr.mxu0 0.0
      %784 = vmatpush1.msra.mxu0 0.0
      %785 = vmatprep.subr.mxu0 0.0
      %786 = vmatpush1.msra.mxu0 0.0
      %787 = vmatprep.subr.mxu0 0.0
      %788 = vmatpush1.msra.mxu0 0.0
      %789 = vmatprep.subr.mxu0 0.0
      %790 = vmatpush1.msra.mxu0 0.0
      %791 = vmatprep.subr.mxu0 0.0
      %792 = vmatpush1.msra.mxu0 0.0
      %793 = vmatprep.subr.mxu0 0.0
      %794 = vmatpush1.msra.mxu0 0.0
      %795 = vmatprep.subr.mxu0 0.0
      %796 = vmatpush1.msra.mxu0 0.0
      %797 = vmatprep.subr.mxu0 0.0
      %798 = vmatpush1.msra.mxu0 0.0
      %799 = vmatprep.subr.mxu0 0.0
      %800 = vmatpush1.msra.mxu0 0.0
      %801 = vmatprep.subr.mxu0 0.0
      %802 = vmatpush1.msra.mxu0 0.0
      %803 = vmatprep.subr.mxu0 0.0
      %804 = vmatpush1.msra.mxu0 0.0
      %805 = vmatprep.subr.mxu0 0.0
      %806 = vmatpush1.msra.mxu0 0.0
      %807 = vmatprep.subr.mxu0 0.0
      %808 = vmatpush1.msra.mxu0 0.0
      %809 = vmatprep.mubr.f32.mxu0 0.0
      %810 = vmatmul.mubr.f32.gmra.mrb[0].mxu0 %v662
      %v811 = vpop.f32.mrb[0].mxu0
      %v812 = vadd.f32 %v743, %v811
      %v813 = vpop.f32.mrb[0].mxu0
      %814 = vdwg.mxu0
      %vm815 = vcmask 64512
      %816 = vst.msk [vmem:[#allocation3] sm:$0xff] %vm815, %v731
      %817 = vst.msk [vmem:[#allocation4] sm:$0xff] %vm815, %v812
      %819 = vrot.lane.b32.xlu0 %v731, 120
      %v820 = vpop.permute.xlu0 %819
      %s822 = scalar_lea.vmem [#allocation3], 8
      %823 = vst.msk [vmem:[%s822] sm:$0xff] %vm815, %v820
      %825 = vrot.lane.b32.xlu0 %v812, 120
      %v826 = vpop.permute.xlu0 %825
      %s828 = scalar_lea.vmem [#allocation4], 8
      %829 = vst.msk [vmem:[%s828] sm:$0xff] %vm815, %v826
      %830 = vrot.lane.b32.xlu0 %v731, 112
      %v831 = vpop.permute.xlu0 %830
      %s833 = scalar_lea.vmem [#allocation3], 16
      %834 = vst.msk [vmem:[%s833] sm:$0xff] %vm815, %v831
      %835 = vrot.lane.b32.xlu0 %v812, 112
      %v836 = vpop.permute.xlu0 %835
      %s838 = scalar_lea.vmem [#allocation4], 16
      %839 = vst.msk [vmem:[%s838] sm:$0xff] %vm815, %v836
      %840 = vrot.lane.b32.xlu0 %v731, 104
      %v841 = vpop.permute.xlu0 %840
      %s843 = scalar_lea.vmem [#allocation3], 24
      %844 = vst.msk [vmem:[%s843] sm:$0xff] %vm815, %v841
      %845 = vrot.lane.b32.xlu0 %v812, 104
      %v846 = vpop.permute.xlu0 %845
      %s848 = scalar_lea.vmem [#allocation4], 24
      %849 = vst.msk [vmem:[%s848] sm:$0xff] %vm815, %v846
      %v850 = vld [vmem:[#allocation2] sm:$0xff]
      %v851 = vld [vmem:[#allocation2 + $0x8] sm:$0xff]
      %v852 = vld [vmem:[#allocation2 + $0x10] sm:$0xff]
      %v853 = vld [vmem:[#allocation2 + $0x18] sm:$0xff]
      %v854 = vld [vmem:[#allocation3] sm:$0xff]
      %v855 = vld [vmem:[#allocation3 + $0x8] sm:$0xff]
      %v856 = vld [vmem:[#allocation3 + $0x10] sm:$0xff]
      %v857 = vld [vmem:[#allocation3 + $0x18] sm:$0xff]
      %v859 = vsel %vm815, %v850, 0
      %v862 = vsel %vm815, %v854, 0
      %864 = vmatprep.subr.mxu0 0.0
      %865 = vmatpush1.xpose.msra.mxu0 %v862
      %866 = vmatprep.subr.mxu0 0.0
      %867 = vmatpush1.xpose.msra.mxu0 0.0
      %868 = vmatprep.subr.mxu0 0.0
      %869 = vmatpush1.xpose.msra.mxu0 0.0
      %870 = vmatprep.subr.mxu0 0.0
      %871 = vmatpush1.xpose.msra.mxu0 0.0
      %872 = vmatprep.subr.mxu0 0.0
      %873 = vmatpush1.xpose.msra.mxu0 0.0
      %874 = vmatprep.subr.mxu0 0.0
      %875 = vmatpush1.xpose.msra.mxu0 0.0
      %876 = vmatprep.subr.mxu0 0.0
      %877 = vmatpush1.xpose.msra.mxu0 0.0
      %878 = vmatprep.subr.mxu0 0.0
      %879 = vmatpush1.xpose.msra.mxu0 0.0
      %880 = vmatprep.subr.mxu0 0.0
      %881 = vmatpush1.xpose.msra.mxu0 0.0
      %882 = vmatprep.subr.mxu0 0.0
      %883 = vmatpush1.xpose.msra.mxu0 0.0
      %884 = vmatprep.subr.mxu0 0.0
      %885 = vmatpush1.xpose.msra.mxu0 0.0
      %886 = vmatprep.subr.mxu0 0.0
      %887 = vmatpush1.xpose.msra.mxu0 0.0
      %888 = vmatprep.subr.mxu0 0.0
      %889 = vmatpush1.xpose.msra.mxu0 0.0
      %890 = vmatprep.subr.mxu0 0.0
      %891 = vmatpush1.xpose.msra.mxu0 0.0
      %892 = vmatprep.subr.mxu0 0.0
      %893 = vmatpush1.xpose.msra.mxu0 0.0
      %894 = vmatprep.subr.mxu0 0.0
      %895 = vmatpush1.xpose.msra.mxu0 0.0
      %896 = vmatprep.subr.mxu0 0.0
      %897 = vmatpush1.xpose.msra.mxu0 0.0
      %898 = vmatprep.subr.mxu0 0.0
      %899 = vmatpush1.xpose.msra.mxu0 0.0
      %900 = vmatprep.subr.mxu0 0.0
      %901 = vmatpush1.xpose.msra.mxu0 0.0
      %902 = vmatprep.subr.mxu0 0.0
      %903 = vmatpush1.xpose.msra.mxu0 0.0
      %904 = vmatprep.subr.mxu0 0.0
      %905 = vmatpush1.xpose.msra.mxu0 0.0
      %906 = vmatprep.subr.mxu0 0.0
      %907 = vmatpush1.xpose.msra.mxu0 0.0
      %908 = vmatprep.subr.mxu0 0.0
      %909 = vmatpush1.xpose.msra.mxu0 0.0
      %910 = vmatprep.subr.mxu0 0.0
      %911 = vmatpush1.xpose.msra.mxu0 0.0
      %912 = vmatprep.subr.mxu0 0.0
      %913 = vmatpush1.xpose.msra.mxu0 0.0
      %914 = vmatprep.subr.mxu0 0.0
      %915 = vmatpush1.xpose.msra.mxu0 0.0
      %916 = vmatprep.subr.mxu0 0.0
      %917 = vmatpush1.xpose.msra.mxu0 0.0
      %918 = vmatprep.subr.mxu0 0.0
      %919 = vmatpush1.xpose.msra.mxu0 0.0
      %920 = vmatprep.subr.mxu0 0.0
      %921 = vmatpush1.xpose.msra.mxu0 0.0
      %922 = vmatprep.subr.mxu0 0.0
      %923 = vmatpush1.xpose.msra.mxu0 0.0
      %924 = vmatprep.subr.mxu0 0.0
      %925 = vmatpush1.xpose.msra.mxu0 0.0
      %926 = vmatprep.subr.mxu0 0.0
      %927 = vmatpush1.xpose.msra.mxu0 0.0
      %928 = vmatprep.mubr.f32.mxu0 0.0
      %929 = vmatmul.mubr.f32.gmra.mrb[0].mxu0 %v859
      %v930 = vpop.f32.mrb[0].mxu0
      %v931 = vadd.f32 0.0, %v930
      %v932 = vpop.f32.mrb[0].mxu0
      %933 = vdwg.mxu0
      %v935 = vsel %vm815, %v851, 0
      %v938 = vsel %vm815, %v855, 0
      %940 = vmatprep.subr.mxu0 0.0
      %941 = vmatpush1.xpose.msra.mxu0 %v938
      %942 = vmatprep.subr.mxu0 0.0
      %943 = vmatpush1.xpose.msra.mxu0 0.0
      %944 = vmatprep.subr.mxu0 0.0
      %945 = vmatpush1.xpose.msra.mxu0 0.0
      %946 = vmatprep.subr.mxu0 0.0
      %947 = vmatpush1.xpose.msra.mxu0 0.0
      %948 = vmatprep.subr.mxu0 0.0
      %949 = vmatpush1.xpose.msra.mxu0 0.0
      %950 = vmatprep.subr.mxu0 0.0
      %951 = vmatpush1.xpose.msra.mxu0 0.0
      %952 = vmatprep.subr.mxu0 0.0
      %953 = vmatpush1.xpose.msra.mxu0 0.0
      %954 = vmatprep.subr.mxu0 0.0
      %955 = vmatpush1.xpose.msra.mxu0 0.0
      %956 = vmatprep.subr.mxu0 0.0
      %957 = vmatpush1.xpose.msra.mxu0 0.0
      %958 = vmatprep.subr.mxu0 0.0
      %959 = vmatpush1.xpose.msra.mxu0 0.0
      %960 = vmatprep.subr.mxu0 0.0
      %961 = vmatpush1.xpose.msra.mxu0 0.0
      %962 = vmatprep.subr.mxu0 0.0
      %963 = vmatpush1.xpose.msra.mxu0 0.0
      %964 = vmatprep.subr.mxu0 0.0
      %965 = vmatpush1.xpose.msra.mxu0 0.0
      %966 = vmatprep.subr.mxu0 0.0
      %967 = vmatpush1.xpose.msra.mxu0 0.0
      %968 = vmatprep.subr.mxu0 0.0
      %969 = vmatpush1.xpose.msra.mxu0 0.0
      %970 = vmatprep.subr.mxu0 0.0
      %971 = vmatpush1.xpose.msra.mxu0 0.0
      %972 = vmatprep.subr.mxu0 0.0
      %973 = vmatpush1.xpose.msra.mxu0 0.0
      %974 = vmatprep.subr.mxu0 0.0
      %975 = vmatpush1.xpose.msra.mxu0 0.0
      %976 = vmatprep.subr.mxu0 0.0
      %977 = vmatpush1.xpose.msra.mxu0 0.0
      %978 = vmatprep.subr.mxu0 0.0
      %979 = vmatpush1.xpose.msra.mxu0 0.0
      %980 = vmatprep.subr.mxu0 0.0
      %981 = vmatpush1.xpose.msra.mxu0 0.0
      %982 = vmatprep.subr.mxu0 0.0
      %983 = vmatpush1.xpose.msra.mxu0 0.0
      %984 = vmatprep.subr.mxu0 0.0
      %985 = vmatpush1.xpose.msra.mxu0 0.0
      %986 = vmatprep.subr.mxu0 0.0
      %987 = vmatpush1.xpose.msra.mxu0 0.0
      %988 = vmatprep.subr.mxu0 0.0
      %989 = vmatpush1.xpose.msra.mxu0 0.0
      %990 = vmatprep.subr.mxu0 0.0
      %991 = vmatpush1.xpose.msra.mxu0 0.0
      %992 = vmatprep.subr.mxu0 0.0
      %993 = vmatpush1.xpose.msra.mxu0 0.0
      %994 = vmatprep.subr.mxu0 0.0
      %995 = vmatpush1.xpose.msra.mxu0 0.0
      %996 = vmatprep.subr.mxu0 0.0
      %997 = vmatpush1.xpose.msra.mxu0 0.0
      %998 = vmatprep.subr.mxu0 0.0
      %999 = vmatpush1.xpose.msra.mxu0 0.0
      %1000 = vmatprep.subr.mxu0 0.0
      %1001 = vmatpush1.xpose.msra.mxu0 0.0
      %1002 = vmatprep.subr.mxu0 0.0
      %1003 = vmatpush1.xpose.msra.mxu0 0.0
      %1004 = vmatprep.mubr.f32.mxu0 0.0
      %1005 = vmatmul.mubr.f32.gmra.mrb[0].mxu0 %v935
      %v1006 = vpop.f32.mrb[0].mxu0
      %v1007 = vadd.f32 0.0, %v1006
      %v1008 = vpop.f32.mrb[0].mxu0
      %1009 = vdwg.mxu0
      %v1011 = vsel %vm815, %v852, 0
      %v1014 = vsel %vm815, %v856, 0
      %1016 = vmatprep.subr.mxu0 0.0
      %1017 = vmatpush1.xpose.msra.mxu0 %v1014
      %1018 = vmatprep.subr.mxu0 0.0
      %1019 = vmatpush1.xpose.msra.mxu0 0.0
      %1020 = vmatprep.subr.mxu0 0.0
      %1021 = vmatpush1.xpose.msra.mxu0 0.0
      %1022 = vmatprep.subr.mxu0 0.0
      %1023 = vmatpush1.xpose.msra.mxu0 0.0
      %1024 = vmatprep.subr.mxu0 0.0
      %1025 = vmatpush1.xpose.msra.mxu0 0.0
      %1026 = vmatprep.subr.mxu0 0.0
      %1027 = vmatpush1.xpose.msra.mxu0 0.0
      %1028 = vmatprep.subr.mxu0 0.0
      %1029 = vmatpush1.xpose.msra.mxu0 0.0
      %1030 = vmatprep.subr.mxu0 0.0
      %1031 = vmatpush1.xpose.msra.mxu0 0.0
      %1032 = vmatprep.subr.mxu0 0.0
      %1033 = vmatpush1.xpose.msra.mxu0 0.0
      %1034 = vmatprep.subr.mxu0 0.0
      %1035 = vmatpush1.xpose.msra.mxu0 0.0
      %1036 = vmatprep.subr.mxu0 0.0
      %1037 = vmatpush1.xpose.msra.mxu0 0.0
      %1038 = vmatprep.subr.mxu0 0.0
      %1039 = vmatpush1.xpose.msra.mxu0 0.0
      %1040 = vmatprep.subr.mxu0 0.0
      %1041 = vmatpush1.xpose.msra.mxu0 0.0
      %1042 = vmatprep.subr.mxu0 0.0
      %1043 = vmatpush1.xpose.msra.mxu0 0.0
      %1044 = vmatprep.subr.mxu0 0.0
      %1045 = vmatpush1.xpose.msra.mxu0 0.0
      %1046 = vmatprep.subr.mxu0 0.0
      %1047 = vmatpush1.xpose.msra.mxu0 0.0
      %1048 = vmatprep.subr.mxu0 0.0
      %1049 = vmatpush1.xpose.msra.mxu0 0.0
      %1050 = vmatprep.subr.mxu0 0.0
      %1051 = vmatpush1.xpose.msra.mxu0 0.0
      %1052 = vmatprep.subr.mxu0 0.0
      %1053 = vmatpush1.xpose.msra.mxu0 0.0
      %1054 = vmatprep.subr.mxu0 0.0
      %1055 = vmatpush1.xpose.msra.mxu0 0.0
      %1056 = vmatprep.subr.mxu0 0.0
      %1057 = vmatpush1.xpose.msra.mxu0 0.0
      %1058 = vmatprep.subr.mxu0 0.0
      %1059 = vmatpush1.xpose.msra.mxu0 0.0
      %1060 = vmatprep.subr.mxu0 0.0
      %1061 = vmatpush1.xpose.msra.mxu0 0.0
      %1062 = vmatprep.subr.mxu0 0.0
      %1063 = vmatpush1.xpose.msra.mxu0 0.0
      %1064 = vmatprep.subr.mxu0 0.0
      %1065 = vmatpush1.xpose.msra.mxu0 0.0
      %1066 = vmatprep.subr.mxu0 0.0
      %1067 = vmatpush1.xpose.msra.mxu0 0.0
      %1068 = vmatprep.subr.mxu0 0.0
      %1069 = vmatpush1.xpose.msra.mxu0 0.0
      %1070 = vmatprep.subr.mxu0 0.0
      %1071 = vmatpush1.xpose.msra.mxu0 0.0
      %1072 = vmatprep.subr.mxu0 0.0
      %1073 = vmatpush1.xpose.msra.mxu0 0.0
      %1074 = vmatprep.subr.mxu0 0.0
      %1075 = vmatpush1.xpose.msra.mxu0 0.0
      %1076 = vmatprep.subr.mxu0 0.0
      %1077 = vmatpush1.xpose.msra.mxu0 0.0
      %1078 = vmatprep.subr.mxu0 0.0
      %1079 = vmatpush1.xpose.msra.mxu0 0.0
      %1080 = vmatprep.mubr.f32.mxu0 0.0
      %1081 = vmatmul.mubr.f32.gmra.mrb[0].mxu0 %v1011
      %v1082 = vpop.f32.mrb[0].mxu0
      %v1083 = vadd.f32 0.0, %v1082
      %v1084 = vpop.f32.mrb[0].mxu0
      %1085 = vdwg.mxu0
      %v1087 = vsel %vm815, %v853, 0
      %v1090 = vsel %vm815, %v857, 0
      %1092 = vmatprep.subr.mxu0 0.0
      %1093 = vmatpush1.xpose.msra.mxu0 %v1090
      %1094 = vmatprep.subr.mxu0 0.0
      %1095 = vmatpush1.xpose.msra.mxu0 0.0
      %1096 = vmatprep.subr.mxu0 0.0
      %1097 = vmatpush1.xpose.msra.mxu0 0.0
      %1098 = vmatprep.subr.mxu0 0.0
      %1099 = vmatpush1.xpose.msra.mxu0 0.0
      %1100 = vmatprep.subr.mxu0 0.0
      %1101 = vmatpush1.xpose.msra.mxu0 0.0
      %1102 = vmatprep.subr.mxu0 0.0
      %1103 = vmatpush1.xpose.msra.mxu0 0.0
      %1104 = vmatprep.subr.mxu0 0.0
      %1105 = vmatpush1.xpose.msra.mxu0 0.0
      %1106 = vmatprep.subr.mxu0 0.0
      %1107 = vmatpush1.xpose.msra.mxu0 0.0
      %1108 = vmatprep.subr.mxu0 0.0
      %1109 = vmatpush1.xpose.msra.mxu0 0.0
      %1110 = vmatprep.subr.mxu0 0.0
      %1111 = vmatpush1.xpose.msra.mxu0 0.0
      %1112 = vmatprep.subr.mxu0 0.0
      %1113 = vmatpush1.xpose.msra.mxu0 0.0
      %1114 = vmatprep.subr.mxu0 0.0
      %1115 = vmatpush1.xpose.msra.mxu0 0.0
      %1116 = vmatprep.subr.mxu0 0.0
      %1117 = vmatpush1.xpose.msra.mxu0 0.0
      %1118 = vmatprep.subr.mxu0 0.0
      %1119 = vmatpush1.xpose.msra.mxu0 0.0
      %1120 = vmatprep.subr.mxu0 0.0
      %1121 = vmatpush1.xpose.msra.mxu0 0.0
      %1122 = vmatprep.subr.mxu0 0.0
      %1123 = vmatpush1.xpose.msra.mxu0 0.0
      %1124 = vmatprep.subr.mxu0 0.0
      %1125 = vmatpush1.xpose.msra.mxu0 0.0
      %1126 = vmatprep.subr.mxu0 0.0
      %1127 = vmatpush1.xpose.msra.mxu0 0.0
      %1128 = vmatprep.subr.mxu0 0.0
      %1129 = vmatpush1.xpose.msra.mxu0 0.0
      %1130 = vmatprep.subr.mxu0 0.0
      %1131 = vmatpush1.xpose.msra.mxu0 0.0
      %1132 = vmatprep.subr.mxu0 0.0
      %1133 = vmatpush1.xpose.msra.mxu0 0.0
      %1134 = vmatprep.subr.mxu0 0.0
      %1135 = vmatpush1.xpose.msra.mxu0 0.0
      %1136 = vmatprep.subr.mxu0 0.0
      %1137 = vmatpush1.xpose.msra.mxu0 0.0
      %1138 = vmatprep.subr.mxu0 0.0
      %1139 = vmatpush1.xpose.msra.mxu0 0.0
      %1140 = vmatprep.subr.mxu0 0.0
      %1141 = vmatpush1.xpose.msra.mxu0 0.0
      %1142 = vmatprep.subr.mxu0 0.0
      %1143 = vmatpush1.xpose.msra.mxu0 0.0
      %1144 = vmatprep.subr.mxu0 0.0
      %1145 = vmatpush1.xpose.msra.mxu0 0.0
      %1146 = vmatprep.subr.mxu0 0.0
      %1147 = vmatpush1.xpose.msra.mxu0 0.0
      %1148 = vmatprep.subr.mxu0 0.0
      %1149 = vmatpush1.xpose.msra.mxu0 0.0
      %1150 = vmatprep.subr.mxu0 0.0
      %1151 = vmatpush1.xpose.msra.mxu0 0.0
      %1152 = vmatprep.subr.mxu0 0.0
      %1153 = vmatpush1.xpose.msra.mxu0 0.0
      %1154 = vmatprep.subr.mxu0 0.0
      %1155 = vmatpush1.xpose.msra.mxu0 0.0
      %1156 = vmatprep.mubr.f32.mxu0 0.0
      %1157 = vmatmul.mubr.f32.gmra.mrb[0].mxu0 %v1087
      %v1158 = vpop.f32.mrb[0].mxu0
      %v1159 = vadd.f32 0.0, %v1158
      %v1160 = vpop.f32.mrb[0].mxu0
      %1161 = vdwg.mxu0
      %v1162 = vmul.f32 %v931, 0.35355338
      %v1163 = vmul.f32 %v1007, 0.35355338
      %v1164 = vmul.f32 %v1083, 0.35355338
      %v1165 = vmul.f32 %v1159, 0.35355338
      %v1166 = vld [vmem:[%s519] sm:$0x1]
      %v1168 = vlaneseq
      %v1169 = vshrl.u32 %v1168, 7
      %v1170 = vsub.s32 0, %v1169
      %v1171 = vrot.slane %v1166, %v1170
      %v1173 = vadd.f32 %v1162, %v1171
      %v1174 = vadd.f32 %v1163, %v1171
      %v1175 = vadd.f32 %v1164, %v1171
      %v1176 = vadd.f32 %v1165, %v1171
      %v1177 = vld [vmem:[#allocation5] sm:$0xff]
      %v1178 = vld [vmem:[#allocation5 + $0x8] sm:$0xff]
      %v1179 = vld [vmem:[#allocation5 + $0x10] sm:$0xff]
      %v1180 = vld [vmem:[#allocation5 + $0x18] sm:$0xff]
      %v1181 = vsel %vm815, %v1173, -inf
      %1182 = vmax.xlane.f32.xlu0 %v1181
      %v1183 = vpop.xlane.xlu0 %1182
      %v1184 = vsel %vm815, %v1174, -inf
      %1185 = vmax.xlane.f32.xlu0 %v1184
      %v1186 = vpop.xlane.xlu0 %1185
      %v1187 = vsel %vm815, %v1175, -inf
      %1188 = vmax.xlane.f32.xlu0 %v1187
      %v1189 = vpop.xlane.xlu0 %1188
      %v1190 = vsel %vm815, %v1176, -inf
      %1191 = vmax.xlane.f32.xlu0 %v1190
      %v1192 = vpop.xlane.xlu0 %1191
      %v1193 = vmax.f32 %v1177, %v1183
      %v1194 = vmax.f32 %v1178, %v1186
      %v1195 = vmax.f32 %v1179, %v1189
      %v1196 = vmax.f32 %v1180, %v1192
      %v1197 = vsub.f32 %v1177, %v1193
      %v1198 = vsub.f32 %v1178, %v1194
      %v1199 = vsub.f32 %v1179, %v1195
      %v1200 = vsub.f32 %v1180, %v1196
      %v1201 = vmul.f32 %v1197, 1.442695
      %v1202 = vpow.pop %v1201
      %v1203 = vmul.f32 %v1198, 1.442695
      %v1204 = vpow.pop %v1203
      %v1205 = vmul.f32 %v1199, 1.442695
      %v1206 = vpow.pop %v1205
      %v1207 = vmul.f32 %v1200, 1.442695
      %v1208 = vpow.pop %v1207
      %1210 = vset.pattern.permute.xlu0 0
      %1211 = vperm.xlu0 %1210, %v1193
      %v1212 = vpop.permute.xlu0 %1211
      %1215 = vset.pattern.permute.xlu0 0
      %1216 = vperm.xlu0 %1215, %v1194
      %v1217 = vpop.permute.xlu0 %1216
      %1220 = vset.pattern.permute.xlu0 0
      %1221 = vperm.xlu0 %1220, %v1195
      %v1222 = vpop.permute.xlu0 %1221
      %1225 = vset.pattern.permute.xlu0 0
      %1226 = vperm.xlu0 %1225, %v1196
      %v1227 = vpop.permute.xlu0 %1226
      %v1229 = vsub.f32 %v1173, %v1212
      %v1230 = vsub.f32 %v1174, %v1217
      %v1231 = vsub.f32 %v1175, %v1222
      %v1232 = vsub.f32 %v1176, %v1227
      %v1233 = vmul.f32 %v1229, 1.442695
      %v1234 = vpow.pop %v1233
      %v1235 = vmul.f32 %v1230, 1.442695
      %v1236 = vpow.pop %v1235
      %v1237 = vmul.f32 %v1231, 1.442695
      %v1238 = vpow.pop %v1237
      %v1239 = vmul.f32 %v1232, 1.442695
      %v1240 = vpow.pop %v1239
      %v1241 = vld [vmem:[#allocation6] sm:$0xff]
      %v1242 = vld [vmem:[#allocation6 + $0x8] sm:$0xff]
      %v1243 = vld [vmem:[#allocation6 + $0x10] sm:$0xff]
      %v1244 = vld [vmem:[#allocation6 + $0x18] sm:$0xff]
      %v1245 = vmul.f32 %v1202, %v1241
      %v1246 = vmul.f32 %v1204, %v1242
      %v1247 = vmul.f32 %v1206, %v1243
      %v1248 = vmul.f32 %v1208, %v1244
      %v1249 = vsel %vm815, %v1234, 0.0
      %1250 = vadd.xlane.f32.xlu0 %v1249
      %v1251 = vpop.xlane.xlu0 %1250
      %v1252 = vsel %vm815, %v1236, 0.0
      %1253 = vadd.xlane.f32.xlu0 %v1252
      %v1254 = vpop.xlane.xlu0 %1253
      %v1255 = vsel %vm815, %v1238, 0.0
      %1256 = vadd.xlane.f32.xlu0 %v1255
      %v1257 = vpop.xlane.xlu0 %1256
      %v1258 = vsel %vm815, %v1240, 0.0
      %1259 = vadd.xlane.f32.xlu0 %v1258
      %v1260 = vpop.xlane.xlu0 %1259
      %v1261 = vadd.f32 %v1245, %v1251
      %v1262 = vadd.f32 %v1246, %v1254
      %v1263 = vadd.f32 %v1247, %v1257
      %v1264 = vadd.f32 %v1248, %v1260
      %vm1265 = vcmask 7168
      %1266 = vst.msk [vmem:[#allocation6] sm:$0xff] %vm1265, %v1261
      %1267 = vst.msk [vmem:[#allocation6 + $0x8] sm:$0xff] %vm1265, %v1262
      %1268 = vst.msk [vmem:[#allocation6 + $0x10] sm:$0xff] %vm1265, %v1263
      %1269 = vst.msk [vmem:[#allocation6 + $0x18] sm:$0xff] %vm1265, %v1264
      %v1270 = vld [vmem:[#allocation4] sm:$0xff]
      %v1271 = vld [vmem:[#allocation4 + $0x8] sm:$0xff]
      %v1272 = vld [vmem:[#allocation4 + $0x10] sm:$0xff]
      %v1273 = vld [vmem:[#allocation4 + $0x18] sm:$0xff]
      %v1275 = vsel %vm815, %v1234, 0
      %1277 = vmatprep.subr.mxu0 0.0
      %1278 = vmatpush1.msra.mxu0 %v1270
      %1279 = vmatprep.subr.mxu0 0.0
      %1280 = vmatpush1.msra.mxu0 0.0
      %1281 = vmatprep.subr.mxu0 0.0
      %1282 = vmatpush1.msra.mxu0 0.0
      %1283 = vmatprep.subr.mxu0 0.0
      %1284 = vmatpush1.msra.mxu0 0.0
      %1285 = vmatprep.subr.mxu0 0.0
      %1286 = vmatpush1.msra.mxu0 0.0
      %1287 = vmatprep.subr.mxu0 0.0
      %1288 = vmatpush1.msra.mxu0 0.0
      %1289 = vmatprep.subr.mxu0 0.0
      %1290 = vmatpush1.msra.mxu0 0.0
      %1291 = vmatprep.subr.mxu0 0.0
      %1292 = vmatpush1.msra.mxu0 0.0
      %1293 = vmatprep.subr.mxu0 0.0
      %1294 = vmatpush1.msra.mxu0 0.0
      %1295 = vmatprep.subr.mxu0 0.0
      %1296 = vmatpush1.msra.mxu0 0.0
      %1297 = vmatprep.subr.mxu0 0.0
      %1298 = vmatpush1.msra.mxu0 0.0
      %1299 = vmatprep.subr.mxu0 0.0
      %1300 = vmatpush1.msra.mxu0 0.0
      %1301 = vmatprep.subr.mxu0 0.0
      %1302 = vmatpush1.msra.mxu0 0.0
      %1303 = vmatprep.subr.mxu0 0.0
      %1304 = vmatpush1.msra.mxu0 0.0
      %1305 = vmatprep.subr.mxu0 0.0
      %1306 = vmatpush1.msra.mxu0 0.0
      %1307 = vmatprep.subr.mxu0 0.0
      %1308 = vmatpush1.msra.mxu0 0.0
      %1309 = vmatprep.subr.mxu0 0.0
      %1310 = vmatpush1.msra.mxu0 0.0
      %1311 = vmatprep.subr.mxu0 0.0
      %1312 = vmatpush1.msra.mxu0 0.0
      %1313 = vmatprep.subr.mxu0 0.0
      %1314 = vmatpush1.msra.mxu0 0.0
      %1315 = vmatprep.subr.mxu0 0.0
      %1316 = vmatpush1.msra.mxu0 0.0
      %1317 = vmatprep.subr.mxu0 0.0
      %1318 = vmatpush1.msra.mxu0 0.0
      %1319 = vmatprep.subr.mxu0 0.0
      %1320 = vmatpush1.msra.mxu0 0.0
      %1321 = vmatprep.subr.mxu0 0.0
      %1322 = vmatpush1.msra.mxu0 0.0
      %1323 = vmatprep.subr.mxu0 0.0
      %1324 = vmatpush1.msra.mxu0 0.0
      %1325 = vmatprep.subr.mxu0 0.0
      %1326 = vmatpush1.msra.mxu0 0.0
      %1327 = vmatprep.subr.mxu0 0.0
      %1328 = vmatpush1.msra.mxu0 0.0
      %1329 = vmatprep.subr.mxu0 0.0
      %1330 = vmatpush1.msra.mxu0 0.0
      %1331 = vmatprep.subr.mxu0 0.0
      %1332 = vmatpush1.msra.mxu0 0.0
      %1333 = vmatprep.subr.mxu0 0.0
      %1334 = vmatpush1.msra.mxu0 0.0
      %1335 = vmatprep.subr.mxu0 0.0
      %1336 = vmatpush1.msra.mxu0 0.0
      %1337 = vmatprep.subr.mxu0 0.0
      %1338 = vmatpush1.msra.mxu0 0.0
      %1339 = vmatprep.subr.mxu0 0.0
      %1340 = vmatpush1.msra.mxu0 0.0
      %1341 = vmatprep.mubr.f32.mxu0 0.0
      %1342 = vmatmul.mubr.f32.gmra.mrb[0].mxu0 %v1275
      %v1343 = vpop.f32.mrb[0].mxu0
      %v1344 = vadd.f32 0.0, %v1343
      %v1345 = vpop.f32.mrb[0].mxu0
      %1346 = vdwg.mxu0
      %v1348 = vsel %vm815, %v1236, 0
      %1350 = vmatprep.subr.mxu0 0.0
      %1351 = vmatpush1.msra.mxu0 %v1271
      %1352 = vmatprep.subr.mxu0 0.0
      %1353 = vmatpush1.msra.mxu0 0.0
      %1354 = vmatprep.subr.mxu0 0.0
      %1355 = vmatpush1.msra.mxu0 0.0
      %1356 = vmatprep.subr.mxu0 0.0
      %1357 = vmatpush1.msra.mxu0 0.0
      %1358 = vmatprep.subr.mxu0 0.0
      %1359 = vmatpush1.msra.mxu0 0.0
      %1360 = vmatprep.subr.mxu0 0.0
      %1361 = vmatpush1.msra.mxu0 0.0
      %1362 = vmatprep.subr.mxu0 0.0
      %1363 = vmatpush1.msra.mxu0 0.0
      %1364 = vmatprep.subr.mxu0 0.0
      %1365 = vmatpush1.msra.mxu0 0.0
      %1366 = vmatprep.subr.mxu0 0.0
      %1367 = vmatpush1.msra.mxu0 0.0
      %1368 = vmatprep.subr.mxu0 0.0
      %1369 = vmatpush1.msra.mxu0 0.0
      %1370 = vmatprep.subr.mxu0 0.0
      %1371 = vmatpush1.msra.mxu0 0.0
      %1372 = vmatprep.subr.mxu0 0.0
      %1373 = vmatpush1.msra.mxu0 0.0
      %1374 = vmatprep.subr.mxu0 0.0
      %1375 = vmatpush1.msra.mxu0 0.0
      %1376 = vmatprep.subr.mxu0 0.0
      %1377 = vmatpush1.msra.mxu0 0.0
      %1378 = vmatprep.subr.mxu0 0.0
      %1379 = vmatpush1.msra.mxu0 0.0
      %1380 = vmatprep.subr.mxu0 0.0
      %1381 = vmatpush1.msra.mxu0 0.0
      %1382 = vmatprep.subr.mxu0 0.0
      %1383 = vmatpush1.msra.mxu0 0.0
      %1384 = vmatprep.subr.mxu0 0.0
      %1385 = vmatpush1.msra.mxu0 0.0
      %1386 = vmatprep.subr.mxu0 0.0
      %1387 = vmatpush1.msra.mxu0 0.0
      %1388 = vmatprep.subr.mxu0 0.0
      %1389 = vmatpush1.msra.mxu0 0.0
      %1390 = vmatprep.subr.mxu0 0.0
      %1391 = vmatpush1.msra.mxu0 0.0
      %1392 = vmatprep.subr.mxu0 0.0
      %1393 = vmatpush1.msra.mxu0 0.0
      %1394 = vmatprep.subr.mxu0 0.0
      %1395 = vmatpush1.msra.mxu0 0.0
      %1396 = vmatprep.subr.mxu0 0.0
      %1397 = vmatpush1.msra.mxu0 0.0
      %1398 = vmatprep.subr.mxu0 0.0
      %1399 = vmatpush1.msra.mxu0 0.0
      %1400 = vmatprep.subr.mxu0 0.0
      %1401 = vmatpush1.msra.mxu0 0.0
      %1402 = vmatprep.subr.mxu0 0.0
      %1403 = vmatpush1.msra.mxu0 0.0
      %1404 = vmatprep.subr.mxu0 0.0
      %1405 = vmatpush1.msra.mxu0 0.0
      %1406 = vmatprep.subr.mxu0 0.0
      %1407 = vmatpush1.msra.mxu0 0.0
      %1408 = vmatprep.subr.mxu0 0.0
      %1409 = vmatpush1.msra.mxu0 0.0
      %1410 = vmatprep.subr.mxu0 0.0
      %1411 = vmatpush1.msra.mxu0 0.0
      %1412 = vmatprep.subr.mxu0 0.0
      %1413 = vmatpush1.msra.mxu0 0.0
      %1414 = vmatprep.mubr.f32.mxu0 0.0
      %1415 = vmatmul.mubr.f32.gmra.mrb[0].mxu0 %v1348
      %v1416 = vpop.f32.mrb[0].mxu0
      %v1417 = vadd.f32 0.0, %v1416
      %v1418 = vpop.f32.mrb[0].mxu0
      %1419 = vdwg.mxu0
      %v1421 = vsel %vm815, %v1238, 0
      %1423 = vmatprep.subr.mxu0 0.0
      %1424 = vmatpush1.msra.mxu0 %v1272
      %1425 = vmatprep.subr.mxu0 0.0
      %1426 = vmatpush1.msra.mxu0 0.0
      %1427 = vmatprep.subr.mxu0 0.0
      %1428 = vmatpush1.msra.mxu0 0.0
      %1429 = vmatprep.subr.mxu0 0.0
      %1430 = vmatpush1.msra.mxu0 0.0
      %1431 = vmatprep.subr.mxu0 0.0
      %1432 = vmatpush1.msra.mxu0 0.0
      %1433 = vmatprep.subr.mxu0 0.0
      %1434 = vmatpush1.msra.mxu0 0.0
      %1435 = vmatprep.subr.mxu0 0.0
      %1436 = vmatpush1.msra.mxu0 0.0
      %1437 = vmatprep.subr.mxu0 0.0
      %1438 = vmatpush1.msra.mxu0 0.0
      %1439 = vmatprep.subr.mxu0 0.0
      %1440 = vmatpush1.msra.mxu0 0.0
      %1441 = vmatprep.subr.mxu0 0.0
      %1442 = vmatpush1.msra.mxu0 0.0
      %1443 = vmatprep.subr.mxu0 0.0
      %1444 = vmatpush1.msra.mxu0 0.0
      %1445 = vmatprep.subr.mxu0 0.0
      %1446 = vmatpush1.msra.mxu0 0.0
      %1447 = vmatprep.subr.mxu0 0.0
      %1448 = vmatpush1.msra.mxu0 0.0
      %1449 = vmatprep.subr.mxu0 0.0
      %1450 = vmatpush1.msra.mxu0 0.0
      %1451 = vmatprep.subr.mxu0 0.0
      %1452 = vmatpush1.msra.mxu0 0.0
      %1453 = vmatprep.subr.mxu0 0.0
      %1454 = vmatpush1.msra.mxu0 0.0
      %1455 = vmatprep.subr.mxu0 0.0
      %1456 = vmatpush1.msra.mxu0 0.0
      %1457 = vmatprep.subr.mxu0 0.0
      %1458 = vmatpush1.msra.mxu0 0.0
      %1459 = vmatprep.subr.mxu0 0.0
      %1460 = vmatpush1.msra.mxu0 0.0
      %1461 = vmatprep.subr.mxu0 0.0
      %1462 = vmatpush1.msra.mxu0 0.0
      %1463 = vmatprep.subr.mxu0 0.0
      %1464 = vmatpush1.msra.mxu0 0.0
      %1465 = vmatprep.subr.mxu0 0.0
      %1466 = vmatpush1.msra.mxu0 0.0
      %1467 = vmatprep.subr.mxu0 0.0
      %1468 = vmatpush1.msra.mxu0 0.0
      %1469 = vmatprep.subr.mxu0 0.0
      %1470 = vmatpush1.msra.mxu0 0.0
      %1471 = vmatprep.subr.mxu0 0.0
      %1472 = vmatpush1.msra.mxu0 0.0
      %1473 = vmatprep.subr.mxu0 0.0
      %1474 = vmatpush1.msra.mxu0 0.0
      %1475 = vmatprep.subr.mxu0 0.0
      %1476 = vmatpush1.msra.mxu0 0.0
      %1477 = vmatprep.subr.mxu0 0.0
      %1478 = vmatpush1.msra.mxu0 0.0
      %1479 = vmatprep.subr.mxu0 0.0
      %1480 = vmatpush1.msra.mxu0 0.0
      %1481 = vmatprep.subr.mxu0 0.0
      %1482 = vmatpush1.msra.mxu0 0.0
      %1483 = vmatprep.subr.mxu0 0.0
      %1484 = vmatpush1.msra.mxu0 0.0
      %1485 = vmatprep.subr.mxu0 0.0
      %1486 = vmatpush1.msra.mxu0 0.0
      %1487 = vmatprep.mubr.f32.mxu0 0.0
      %1488 = vmatmul.mubr.f32.gmra.mrb[0].mxu0 %v1421
      %v1489 = vpop.f32.mrb[0].mxu0
      %v1490 = vadd.f32 0.0, %v1489
      %v1491 = vpop.f32.mrb[0].mxu0
      %1492 = vdwg.mxu0
      %v1494 = vsel %vm815, %v1240, 0
      %1496 = vmatprep.subr.mxu0 0.0
      %1497 = vmatpush1.msra.mxu0 %v1273
      %1498 = vmatprep.subr.mxu0 0.0
      %1499 = vmatpush1.msra.mxu0 0.0
      %1500 = vmatprep.subr.mxu0 0.0
      %1501 = vmatpush1.msra.mxu0 0.0
      %1502 = vmatprep.subr.mxu0 0.0
      %1503 = vmatpush1.msra.mxu0 0.0
      %1504 = vmatprep.subr.mxu0 0.0
      %1505 = vmatpush1.msra.mxu0 0.0
      %1506 = vmatprep.subr.mxu0 0.0
      %1507 = vmatpush1.msra.mxu0 0.0
      %1508 = vmatprep.subr.mxu0 0.0
      %1509 = vmatpush1.msra.mxu0 0.0
      %1510 = vmatprep.subr.mxu0 0.0
      %1511 = vmatpush1.msra.mxu0 0.0
      %1512 = vmatprep.subr.mxu0 0.0
      %1513 = vmatpush1.msra.mxu0 0.0
      %1514 = vmatprep.subr.mxu0 0.0
      %1515 = vmatpush1.msra.mxu0 0.0
      %1516 = vmatprep.subr.mxu0 0.0
      %1517 = vmatpush1.msra.mxu0 0.0
      %1518 = vmatprep.subr.mxu0 0.0
      %1519 = vmatpush1.msra.mxu0 0.0
      %1520 = vmatprep.subr.mxu0 0.0
      %1521 = vmatpush1.msra.mxu0 0.0
      %1522 = vmatprep.subr.mxu0 0.0
      %1523 = vmatpush1.msra.mxu0 0.0
      %1524 = vmatprep.subr.mxu0 0.0
      %1525 = vmatpush1.msra.mxu0 0.0
      %1526 = vmatprep.subr.mxu0 0.0
      %1527 = vmatpush1.msra.mxu0 0.0
      %1528 = vmatprep.subr.mxu0 0.0
      %1529 = vmatpush1.msra.mxu0 0.0
      %1530 = vmatprep.subr.mxu0 0.0
      %1531 = vmatpush1.msra.mxu0 0.0
      %1532 = vmatprep.subr.mxu0 0.0
      %1533 = vmatpush1.msra.mxu0 0.0
      %1534 = vmatprep.subr.mxu0 0.0
      %1535 = vmatpush1.msra.mxu0 0.0
      %1536 = vmatprep.subr.mxu0 0.0
      %1537 = vmatpush1.msra.mxu0 0.0
      %1538 = vmatprep.subr.mxu0 0.0
      %1539 = vmatpush1.msra.mxu0 0.0
      %1540 = vmatprep.subr.mxu0 0.0
      %1541 = vmatpush1.msra.mxu0 0.0
      %1542 = vmatprep.subr.mxu0 0.0
      %1543 = vmatpush1.msra.mxu0 0.0
      %1544 = vmatprep.subr.mxu0 0.0
      %1545 = vmatpush1.msra.mxu0 0.0
      %1546 = vmatprep.subr.mxu0 0.0
      %1547 = vmatpush1.msra.mxu0 0.0
      %1548 = vmatprep.subr.mxu0 0.0
      %1549 = vmatpush1.msra.mxu0 0.0
      %1550 = vmatprep.subr.mxu0 0.0
      %1551 = vmatpush1.msra.mxu0 0.0
      %1552 = vmatprep.subr.mxu0 0.0
      %1553 = vmatpush1.msra.mxu0 0.0
      %1554 = vmatprep.subr.mxu0 0.0
      %1555 = vmatpush1.msra.mxu0 0.0
      %1556 = vmatprep.subr.mxu0 0.0
      %1557 = vmatpush1.msra.mxu0 0.0
      %1558 = vmatprep.subr.mxu0 0.0
      %1559 = vmatpush1.msra.mxu0 0.0
      %1560 = vmatprep.mubr.f32.mxu0 0.0
      %1561 = vmatmul.mubr.f32.gmra.mrb[0].mxu0 %v1494
      %v1562 = vpop.f32.mrb[0].mxu0
      %v1563 = vadd.f32 0.0, %v1562
      %v1564 = vpop.f32.mrb[0].mxu0
      %1565 = vdwg.mxu0
      %v1566 = vld [vmem:[#allocation7] sm:$0xff]
      %v1567 = vld [vmem:[#allocation7 + $0x8] sm:$0xff]
      %v1568 = vld [vmem:[#allocation7 + $0x10] sm:$0xff]
      %v1569 = vld [vmem:[#allocation7 + $0x18] sm:$0xff]
      %1571 = vset.pattern.permute.xlu0 0
      %1572 = vperm.xlu0 %1571, %v1202
      %v1573 = vpop.permute.xlu0 %1572
      %1576 = vset.pattern.permute.xlu0 0
      %1577 = vperm.xlu0 %1576, %v1204
      %v1578 = vpop.permute.xlu0 %1577
      %1581 = vset.pattern.permute.xlu0 0
      %1582 = vperm.xlu0 %1581, %v1206
      %v1583 = vpop.permute.xlu0 %1582
      %1586 = vset.pattern.permute.xlu0 0
      %1587 = vperm.xlu0 %1586, %v1208
      %v1588 = vpop.permute.xlu0 %1587
      %v1590 = vmul.f32 %v1573, %v1566
      %v1591 = vmul.f32 %v1578, %v1567
      %v1592 = vmul.f32 %v1583, %v1568
      %v1593 = vmul.f32 %v1588, %v1569
      %v1594 = vadd.f32 %v1590, %v1344
      %v1595 = vadd.f32 %v1591, %v1417
      %v1596 = vadd.f32 %v1592, %v1490
      %v1597 = vadd.f32 %v1593, %v1563
      %1598 = vst.msk [vmem:[#allocation7] sm:$0xff] %vm815, %v1594
      %1599 = vst.msk [vmem:[#allocation7 + $0x8] sm:$0xff] %vm815, %v1595
      %1600 = vst.msk [vmem:[#allocation7 + $0x10] sm:$0xff] %vm815, %v1596
      %1601 = vst.msk [vmem:[#allocation7 + $0x18] sm:$0xff] %vm815, %v1597
      %1602 = vst.msk [vmem:[#allocation5] sm:$0xff] %vm1265, %v1193
      %1603 = vst.msk [vmem:[#allocation5 + $0x8] sm:$0xff] %vm1265, %v1194
      %1604 = vst.msk [vmem:[#allocation5 + $0x10] sm:$0xff] %vm1265, %v1195
      %1605 = vst.msk [vmem:[#allocation5 + $0x18] sm:$0xff] %vm1265, %v1196
      // Predicated region
      $region77: #{lxrt_x_layer_forward.5} parent=71 // pred_check
        %p1606 = pneg %p527
      $region78: #{lxrt_x_layer_forward.5} parent=71 // pred_check_branch
        %1608 = sbr.rel (%p1606) target = $region80
      $region79: #{lxrt_x_layer_forward.5} parent=71 // pred_region
        %v1609 = vld [vmem:[#allocation6] sm:$0xff]
        %v1610 = vrcp.pop %v1609
        %v1611 = vld [vmem:[#allocation7] sm:$0xff]
        %1613 = vset.pattern.permute.xlu0 0
        %1614 = vperm.xlu0 %1613, %v1610
        %v1615 = vpop.permute.xlu0 %1614
        %v1617 = vmul.f32 %v1611, %v1615
        %s1618 = scalar_lea.vmem [#allocation6], 8
        %v1619 = vld [vmem:[%s1618] sm:$0xff]
        %v1620 = vrcp.pop %v1619
        %s1621 = scalar_lea.vmem [#allocation7], 8
        %v1622 = vld [vmem:[%s1621] sm:$0xff]
        %1624 = vset.pattern.permute.xlu0 0
        %1625 = vperm.xlu0 %1624, %v1620
        %v1626 = vpop.permute.xlu0 %1625
        %v1628 = vmul.f32 %v1622, %v1626
        %s1629 = scalar_lea.vmem [#allocation6], 16
        %v1630 = vld [vmem:[%s1629] sm:$0xff]
        %v1631 = vrcp.pop %v1630
        %s1632 = scalar_lea.vmem [#allocation7], 16
        %v1633 = vld [vmem:[%s1632] sm:$0xff]
        %1635 = vset.pattern.permute.xlu0 0
        %1636 = vperm.xlu0 %1635, %v1631
        %v1637 = vpop.permute.xlu0 %1636
        %v1639 = vmul.f32 %v1633, %v1637
        %s1640 = scalar_lea.vmem [#allocation6], 24
        %v1641 = vld [vmem:[%s1640] sm:$0xff]
        %v1642 = vrcp.pop %v1641
        %s1643 = scalar_lea.vmem [#allocation7], 24
        %v1644 = vld [vmem:[%s1643] sm:$0xff]
        %1646 = vset.pattern.permute.xlu0 0
        %1647 = vperm.xlu0 %1646, %v1642
        %v1648 = vpop.permute.xlu0 %1647
        %v1650 = vmul.f32 %v1644, %v1648
        %1652 = vrot.lane.b32.xlu0 %v1628, 8
        %v1653 = vpop.permute.xlu0 %1652
        %1656 = vrot.lane.b32.xlu0 %v1639, 16
        %v1657 = vpop.permute.xlu0 %1656
        %1660 = vrot.lane.b32.xlu0 %v1650, 24
        %v1661 = vpop.permute.xlu0 %1660
        %v1663 = vsel %vm815, %v1617, %v1653
        %vm1664 = vcmask 130048
        %v1665 = vsel %vm1664, %v1663, %v1657
        %vm1666 = vcmask 195584
        %v1667 = vsel %vm1666, %v1665, %v1661
        %v1668 = vld [vmem:[%s9] sm:$0xff]
        %v1669 = vld [vmem:[%s9 + $0x8] sm:$0xff]
        %v1670 = vld [vmem:[%s9 + $0x10] sm:$0xff]
        %v1671 = vld [vmem:[%s9 + $0x18] sm:$0xff]
        %v1672 = vld [vmem:[%s10] sm:$0x1]
        %v1674 = vlaneseq
        %v1675 = vshrl.u32 %v1674, 7
        %v1676 = vsub.s32 0, %v1675
        %v1677 = vrot.slane %v1672, %v1676
        %v1680 = vsel %vm660, %v1667, 0
        %1682 = vmatprep.subr.mxu0 0.0
        %1683 = vmatpush1.msra.mxu0 %v1668
        %1684 = vmatprep.subr.mxu0 0.0
        %1685 = vmatpush1.msra.mxu0 %v1669
        %1686 = vmatprep.subr.mxu0 0.0
        %1687 = vmatpush1.msra.mxu0 %v1670
        %1688 = vmatprep.subr.mxu0 0.0
        %1689 = vmatpush1.msra.mxu0 %v1671
        %1690 = vmatprep.subr.mxu0 0.0
        %1691 = vmatpush1.msra.mxu0 0.0
        %1692 = vmatprep.subr.mxu0 0.0
        %1693 = vmatpush1.msra.mxu0 0.0
        %1694 = vmatprep.subr.mxu0 0.0
        %1695 = vmatpush1.msra.mxu0 0.0
        %1696 = vmatprep.subr.mxu0 0.0
        %1697 = vmatpush1.msra.mxu0 0.0
        %1698 = vmatprep.subr.mxu0 0.0
        %1699 = vmatpush1.msra.mxu0 0.0
        %1700 = vmatprep.subr.mxu0 0.0
        %1701 = vmatpush1.msra.mxu0 0.0
        %1702 = vmatprep.subr.mxu0 0.0
        %1703 = vmatpush1.msra.mxu0 0.0
        %1704 = vmatprep.subr.mxu0 0.0
        %1705 = vmatpush1.msra.mxu0 0.0
        %1706 = vmatprep.subr.mxu0 0.0
        %1707 = vmatpush1.msra.mxu0 0.0
        %1708 = vmatprep.subr.mxu0 0.0
        %1709 = vmatpush1.msra.mxu0 0.0
        %1710 = vmatprep.subr.mxu0 0.0
        %1711 = vmatpush1.msra.mxu0 0.0
        %1712 = vmatprep.subr.mxu0 0.0
        %1713 = vmatpush1.msra.mxu0 0.0
        %1714 = vmatprep.subr.mxu0 0.0
        %1715 = vmatpush1.msra.mxu0 0.0
        %1716 = vmatprep.subr.mxu0 0.0
        %1717 = vmatpush1.msra.mxu0 0.0
        %1718 = vmatprep.subr.mxu0 0.0
        %1719 = vmatpush1.msra.mxu0 0.0
        %1720 = vmatprep.subr.mxu0 0.0
        %1721 = vmatpush1.msra.mxu0 0.0
        %1722 = vmatprep.subr.mxu0 0.0
        %1723 = vmatpush1.msra.mxu0 0.0
        %1724 = vmatprep.subr.mxu0 0.0
        %1725 = vmatpush1.msra.mxu0 0.0
        %1726 = vmatprep.subr.mxu0 0.0
        %1727 = vmatpush1.msra.mxu0 0.0
        %1728 = vmatprep.subr.mxu0 0.0
        %1729 = vmatpush1.msra.mxu0 0.0
        %1730 = vmatprep.subr.mxu0 0.0
        %1731 = vmatpush1.msra.mxu0 0.0
        %1732 = vmatprep.subr.mxu0 0.0
        %1733 = vmatpush1.msra.mxu0 0.0
        %1734 = vmatprep.subr.mxu0 0.0
        %1735 = vmatpush1.msra.mxu0 0.0
        %1736 = vmatprep.subr.mxu0 0.0
        %1737 = vmatpush1.msra.mxu0 0.0
        %1738 = vmatprep.subr.mxu0 0.0
        %1739 = vmatpush1.msra.mxu0 0.0
        %1740 = vmatprep.subr.mxu0 0.0
        %1741 = vmatpush1.msra.mxu0 0.0
        %1742 = vmatprep.subr.mxu0 0.0
        %1743 = vmatpush1.msra.mxu0 0.0
        %1744 = vmatprep.subr.mxu0 0.0
        %1745 = vmatpush1.msra.mxu0 0.0
        %1746 = vmatprep.mubr.f32.mxu0 0.0
        %1747 = vmatmul.mubr.f32.gmra.mrb[0].mxu0 %v1680
        %v1748 = vpop.f32.mrb[0].mxu0
        %v1749 = vadd.f32 %v1677, %v1748
        %v1750 = vpop.f32.mrb[0].mxu0
        %1751 = vdwg.mxu0
        %v1752 = vld [vmem:[%s506] sm:$0xff]
        %v1753 = vadd.f32 %v1749, %v1752
        %v1754 = vld [vmem:[%s11] sm:$0x1]
        %v1755 = vld [vmem:[%s12] sm:$0x1]
        %v1756 = vsel %vm660, %v1753, 0.0
        %1757 = vadd.xlane.f32.xlu0 %v1756
        %v1758 = vpop.xlane.xlu0 %1757
        %v1759 = vrcp.pop 32.0
        %v1760 = vmul.f32 %v1758, %v1759
        %v1761 = vsub.f32 %v1753, %v1760
        %v1762 = vmul.f32 %v1761, %v1761
        %v1763 = vsel %vm660, %v1762, 0.0
        %1764 = vadd.xlane.f32.xlu0 %v1763
        %v1765 = vpop.xlane.xlu0 %1764
        %v1766 = vmul.f32 %v1765, %v1759
        %v1767 = vadd.f32 %v1766, 1e-12
        %v1768 = vrsqrt.pop %v1767
        %v1769 = vmul.f32 %v1761, %v1768
        %v1771 = vlaneseq
        %v1772 = vshrl.u32 %v1771, 7
        %v1773 = vsub.s32 0, %v1772
        %v1774 = vrot.slane %v1754, %v1773
        %v1776 = vmul.f32 %v1769, %v1774
        %v1778 = vlaneseq
        %v1779 = vshrl.u32 %v1778, 7
        %v1780 = vsub.s32 0, %v1779
        %v1781 = vrot.slane %v1755, %v1780
        %v1783 = vadd.f32 %v1776, %v1781
        %1784 = vst.msk [vmem:[%s526] sm:$0xff] %vm660, %v1783
      $region80: #{lxrt_x_layer_forward.5} parent=71 // pred_fallthru
        _
      %p1785 = scmp.lt.s32.totalorder %s29, 3
      %s1786 = scalar_select %p1785, %s29, 3
      %p1787 = scmp.lt.s32.totalorder %s30, 0
      %s1788 = scalar_select %p1787, %s30, 0
      %s1789 = sadd.s32 %s1788, %s1786
      %s1790 = smul.addr %s1789, 8
      %s1791 = scalar_lea.vmem %s13, %s1790
      // Predicated region
      $region81: #{lxrt_x_layer_forward.5} parent=71 // pred_check
        %p1792 = pneg %p357
      $region82: #{lxrt_x_layer_forward.5} parent=71 // pred_check_branch
        %1794 = sbr.rel (%p1792) target = $region84
      $region83: #{lxrt_x_layer_forward.5} parent=71 // pred_region
        _
      $region84: #{lxrt_x_layer_forward.5} parent=71 // pred_fallthru
        _
    $region72: #{lxrt_x_layer_forward.5} parent=5 // pred_fallthru
      _
    %p1795 = scmp.le.s32.totalorder 2, %s19
    // Predicated region
    $region85: #{lxrt_x_layer_forward.5} parent=5 // pred_check
      %p1796 = pneg %p1795
    $region86: #{lxrt_x_layer_forward.5} parent=5 // pred_check_branch
      %1798 = sbr.rel (%p1796) target = $region88
    $region87: #{lxrt_x_layer_forward.5} parent=5 // pred_region
      %s1799 = ssub.s32 %s19, 2
      // Predicated region
      $region89: #{lxrt_x_layer_forward.5} parent=87 // pred_check
        %p1800 = pneg %p363
      $region90: #{lxrt_x_layer_forward.5} parent=87 // pred_check_branch
        %1802 = sbr.rel (%p1800) target = $region92
      $region91: #{lxrt_x_layer_forward.5} parent=87 // pred_region
        %p1803 = scmp.lt.s32.totalorder %s32, 3
        %s1804 = scalar_select %p1803, %s32, 3
        %p1805 = scmp.lt.s32.totalorder %s33, 0
        %s1806 = scalar_select %p1805, %s33, 0
        %s1807 = sadd.s32 %s1806, %s1804
        %s1808 = smul.addr %s1807, 8
        %s1809 = scalar_lea.vmem %s13, %s1808
      $region92: #{lxrt_x_layer_forward.5} parent=87 // pred_fallthru
        _
    $region88: #{lxrt_x_layer_forward.5} parent=5 // pred_fallthru
      _
  $region6: #{lxrt_x_layer_forward.5} parent=0 // loop_footer
    %s23 = sadd.s32 1, %s19
  $region7: #{lxrt_x_layer_forward.5} parent=0 // loop_footer_branch
    %18 = sbr.rel target = $region3
  $region8: #{lxrt_x_layer_forward.5} parent=0 // loop_exit
    _

// kernel: lxrt_x_layer_forward.6
$region0: #{lxrt_x_layer_forward.6}
  #allocation0 [shape = 'u32[]', space=smem, size = 0x4, offset = 0x4, fixed_abs, tag = 'smem constant byte address 0x4 - core index']
  #allocation1 [shape = 'u32[144,128]{1,0:T(1,128)}', space=vmem, size = 0x12000, scoped, tag = 'internal scratch']
  #allocation2 [shape = 'f32[4,8,8]{2,1,0:T(8,128)}', space=vmem, size = 0x4000, scoped, tag = 'scratch operand']
  #allocation3 [shape = 'f32[4,8,8]{2,1,0:T(8,128)}', space=vmem, size = 0x4000, scoped, tag = 'scratch operand']
  #allocation4 [shape = 'f32[4,8,8]{2,1,0:T(8,128)}', space=vmem, size = 0x4000, scoped, tag = 'scratch operand']
  #allocation5 [shape = 'f32[4,8,1]{2,1,0:T(8,128)}', space=vmem, size = 0x4000, scoped, tag = 'scratch operand']
  #allocation6 [shape = 'f32[4,8,1]{2,1,0:T(8,128)}', space=vmem, size = 0x4000, scoped, tag = 'scratch operand']
  #allocation7 [shape = 'f32[4,8,8]{2,1,0:T(8,128)}', space=vmem, size = 0x4000, scoped, tag = 'scratch operand']
  %s0 = inlined_call_operand.vmem [shape: f32[2,8,32], index: 0, kind: input, shape index: {}, may-alias: {0,1}]
  %s1 = inlined_call_operand.vmem [shape: f32[2,8,32], index: 1, kind: input, shape index: {}, may-alias: {0,1}]
  %s2 = inlined_call_operand.vmem [shape: f32[2,1,8], index: 2, kind: input, shape index: {}]
  %s3 = inlined_call_operand.vmem [shape: f32[32,32], index: 3, kind: input, shape index: {}]
  %s4 = inlined_call_operand.vmem [shape: f32[1,32], index: 4, kind: input, shape index: {}]
  %s5 = inlined_call_operand.vmem [shape: f32[32,32], index: 5, kind: input, shape index: {}]
  %s6 = inlined_call_operand.vmem [shape: f32[1,32], index: 6, kind: input, shape index: {}]
  %s7 = inlined_call_operand.vmem [shape: f32[32,32], index: 7, kind: input, shape index: {}]
  %s8 = inlined_call_operand.vmem [shape: f32[1,32], index: 8, kind: input, shape index: {}]
  %s9 = inlined_call_operand.vmem [shape: f32[32,32], index: 9, kind: input, shape index: {}]
  %s10 = inlined_call_operand.vmem [shape: f32[1,32], index: 10, kind: input, shape index: {}]
  %s11 = inlined_call_operand.vmem [shape: f32[1,32], index: 11, kind: input, shape index: {}]
  %s12 = inlined_call_operand.vmem [shape: f32[1,32], index: 12, kind: input, shape index: {}]
  %s13 = inlined_call_operand.vmem [shape: f32[2,8,32], index: 13, kind: output, shape index: {}]
  %s14 = sld [smem:[#allocation0]]
  $region93: #{lxrt_x_layer_forward.6} parent=0
    _
  %s16 = ssub.s32 1, %s14
  %s17 = scalar_select 0, %s16, %s14
  loop: start=0, step=1, limit=4
  $region2: #{lxrt_x_layer_forward.6} parent=0 // loop_pre_header
    _
  $region3: #{lxrt_x_layer_forward.6} parent=0 // loop_header
    %s19 = sphi 0, %s23
    %p20 = scmp.ge.s32.totalorder %s19, 4
    %s26 = sphi 0, %s45
    %s27 = sphi 0, %s41
    %s28 = sphi 0, %s37
    %s29 = sphi 0, %s26
    %s30 = sphi 0, %s27
    %s31 = sphi 0, %s28
    %s32 = sphi 0, %s29
    %s33 = sphi 0, %s30
    %s34 = sphi 0, %s31
    %s50 = sphi 0, %s52
    %s53 = sphi 0, %s50
    %s54 = sphi 0, %s53
    %s70 = sphi 0, %s54
    %s78 = sphi 0, %s80
    %s81 = sphi 0, %s78
    %s82 = sphi 0, %s81
    %s98 = sphi 0, %s82
    %s106 = sphi 0, %s108
    %s109 = sphi 0, %s106
    %s110 = sphi 0, %s109
    %s126 = sphi 0, %s110
    %s130 = sphi 0, %s130
    %s132 = sphi 0, %s130
    %s133 = sphi 0, %s132
    %s147 = sphi 0, %s133
    %s151 = sphi 0, %s151
    %s153 = sphi 0, %s151
    %s154 = sphi 0, %s153
    %s168 = sphi 0, %s154
    %s172 = sphi 0, %s172
    %s174 = sphi 0, %s172
    %s175 = sphi 0, %s174
    %s189 = sphi 0, %s175
    %s193 = sphi 0, %s193
    %s195 = sphi 0, %s193
    %s196 = sphi 0, %s195
    %s210 = sphi 0, %s196
    %s214 = sphi 0, %s214
    %s216 = sphi 0, %s214
    %s217 = sphi 0, %s216
    %s231 = sphi 0, %s217
    %s235 = sphi 0, %s235
    %s237 = sphi 0, %s235
    %s238 = sphi 0, %s237
    %s252 = sphi 0, %s238
    %s256 = sphi 0, %s256
    %s258 = sphi 0, %s256
    %s259 = sphi 0, %s258
    %s273 = sphi 0, %s259
    %s277 = sphi 0, %s277
    %s279 = sphi 0, %s277
    %s280 = sphi 0, %s279
    %s294 = sphi 0, %s280
    %s298 = sphi 0, %s298
    %s300 = sphi 0, %s298
    %s301 = sphi 0, %s300
    %s315 = sphi 0, %s301
    %s319 = sphi 0, %s319
    %s321 = sphi 0, %s319
    %s322 = sphi 0, %s321
    %s336 = sphi 0, %s322
    %s344 = sphi 0, %s346
    %s347 = sphi 0, %s344
    %s348 = sphi 0, %s347
    %s364 = sphi 0, %s348
  $region4: #{lxrt_x_layer_forward.6} parent=0 // loop_header_branch
    %22 = sbr.rel (%p20) target = $region8
  $region5: #{lxrt_x_layer_forward.6} parent=0 // loop_body
    %s24 = ssub.s32 %s19, 1
    %s25 = ssub.s32 %s19, 2
    %s35 = sadd.s32 1, %s28
    %p36 = scmp.ge.s32.totalorder %s35, 1
    %s37 = scalar_select %p36, 0, %s35
    %s38 = sadd.s32 1, %s27
    %s39 = scalar_select %p36, %s38, %s27
    %p40 = scmp.ge.s32.totalorder %s39, 1
    %s41 = scalar_select %p40, 0, %s39
    %s42 = sadd.s32 1, %s26
    %s43 = scalar_select %p40, %s42, %s26
    %p44 = scmp.ge.s32.totalorder %s43, 2
    %s45 = scalar_select %p44, 0, %s43
    %s46 = ssub.s32 %s26, %s45
    %s47 = ssub.s32 %s27, %s41
    %s48 = sor.u32 %s46, %s47
    %p49 = scmp.eq.s32.totalorder %s48, 0
    %s51 = sadd.s32 %s50, 1
    %s52 = scalar_select %p49, %s50, %s51
    %p55 = pneg %p49
    %p56 = scmp.eq.s32.totalorder %s19, 1
    %p57 = por %p55, %p56
    %p58 = scmp.ne.s32.totalorder %s50, %s53
    %p59 = scmp.eq.s32.totalorder %s19, 0
    %p60 = por %p58, %p59
    %p61 = scmp.ne.s32.totalorder %s50, %s53
    %p62 = scmp.eq.s32.totalorder %s24, 1
    %p63 = por %p61, %p62
    %p64 = scmp.ne.s32.totalorder %s53, %s54
    %p65 = scmp.eq.s32.totalorder %s24, 0
    %p66 = por %p64, %p65
    %p67 = scmp.ne.s32.totalorder %s53, %s54
    %p68 = scmp.eq.s32.totalorder %s25, 1
    %p69 = por %p67, %p68
    %p71 = scmp.ne.s32.totalorder %s54, %s70
    %p72 = scmp.eq.s32.totalorder %s25, 0
    %p73 = por %p71, %p72
    %s74 = ssub.s32 %s26, %s45
    %s75 = ssub.s32 %s28, %s37
    %s76 = sor.u32 %s74, %s75
    %p77 = scmp.eq.s32.totalorder %s76, 0
    %s79 = sadd.s32 %s78, 1
    %s80 = scalar_select %p77, %s78, %s79
    %p83 = pneg %p77
    %p84 = scmp.eq.s32.totalorder %s19, 1
    %p85 = por %p83, %p84
    %p86 = scmp.ne.s32.totalorder %s78, %s81
    %p87 = scmp.eq.s32.totalorder %s19, 0
    %p88 = por %p86, %p87
    %p89 = scmp.ne.s32.totalorder %s78, %s81
    %p90 = scmp.eq.s32.totalorder %s24, 1
    %p91 = por %p89, %p90
    %p92 = scmp.ne.s32.totalorder %s81, %s82
    %p93 = scmp.eq.s32.totalorder %s24, 0
    %p94 = por %p92, %p93
    %p95 = scmp.ne.s32.totalorder %s81, %s82
    %p96 = scmp.eq.s32.totalorder %s25, 1
    %p97 = por %p95, %p96
    %p99 = scmp.ne.s32.totalorder %s82, %s98
    %p100 = scmp.eq.s32.totalorder %s25, 0
    %p101 = por %p99, %p100
    %s102 = ssub.s32 %s26, %s45
    %s103 = ssub.s32 %s28, %s37
    %s104 = sor.u32 %s102, %s103
    %p105 = scmp.eq.s32.totalorder %s104, 0
    %s107 = sadd.s32 %s106, 1
    %s108 = scalar_select %p105, %s106, %s107
    %p111 = pneg %p105
    %p112 = scmp.eq.s32.totalorder %s19, 1
    %p113 = por %p111, %p112
    %p114 = scmp.ne.s32.totalorder %s106, %s109
    %p115 = scmp.eq.s32.totalorder %s19, 0
    %p116 = por %p114, %p115
    %p117 = scmp.ne.s32.totalorder %s106, %s109
    %p118 = scmp.eq.s32.totalorder %s24, 1
    %p119 = por %p117, %p118
    %p120 = scmp.ne.s32.totalorder %s109, %s110
    %p121 = scmp.eq.s32.totalorder %s24, 0
    %p122 = por %p120, %p121
    %p123 = scmp.ne.s32.totalorder %s109, %s110
    %p124 = scmp.eq.s32.totalorder %s25, 1
    %p125 = por %p123, %p124
    %p127 = scmp.ne.s32.totalorder %s110, %s126
    %p128 = scmp.eq.s32.totalorder %s25, 0
    %p129 = por %p127, %p128
    %s131 = sadd.s32 %s130, 1
    %p134 = scmp.eq.s32.totalorder %s19, 1
    %p135 = scmp.ne.s32.totalorder %s130, %s132
    %p136 = scmp.eq.s32.totalorder %s19, 0
    %p137 = por %p135, %p136
    %p138 = scmp.ne.s32.totalorder %s130, %s132
    %p139 = scmp.eq.s32.totalorder %s24, 1
    %p140 = por %p138, %p139
    %p141 = scmp.ne.s32.totalorder %s132, %s133
    %p142 = scmp.eq.s32.totalorder %s24, 0
    %p143 = por %p141, %p142
    %p144 = scmp.ne.s32.totalorder %s132, %s133
    %p145 = scmp.eq.s32.totalorder %s25, 1
    %p146 = por %p144, %p145
    %p148 = scmp.ne.s32.totalorder %s133, %s147
    %p149 = scmp.eq.s32.totalorder %s25, 0
    %p150 = por %p148, %p149
    %s152 = sadd.s32 %s151, 1
    %p155 = scmp.eq.s32.totalorder %s19, 1
    %p156 = scmp.ne.s32.totalorder %s151, %s153
    %p157 = scmp.eq.s32.totalorder %s19, 0
    %p158 = por %p156, %p157
    %p159 = scmp.ne.s32.totalorder %s151, %s153
    %p160 = scmp.eq.s32.totalorder %s24, 1
    %p161 = por %p159, %p160
    %p162 = scmp.ne.s32.totalorder %s153, %s154
    %p163 = scmp.eq.s32.totalorder %s24, 0
    %p164 = por %p162, %p163
    %p165 = scmp.ne.s32.totalorder %s153, %s154
    %p166 = scmp.eq.s32.totalorder %s25, 1
    %p167 = por %p165, %p166
    %p169 = scmp.ne.s32.totalorder %s154, %s168
    %p170 = scmp.eq.s32.totalorder %s25, 0
    %p171 = por %p169, %p170
    %s173 = sadd.s32 %s172, 1
    %p176 = scmp.eq.s32.totalorder %s19, 1
    %p177 = scmp.ne.s32.totalorder %s172, %s174
    %p178 = scmp.eq.s32.totalorder %s19, 0
    %p179 = por %p177, %p178
    %p180 = scmp.ne.s32.totalorder %s172, %s174
    %p181 = scmp.eq.s32.totalorder %s24, 1
    %p182 = por %p180, %p181
    %p183 = scmp.ne.s32.totalorder %s174, %s175
    %p184 = scmp.eq.s32.totalorder %s24, 0
    %p185 = por %p183, %p184
    %p186 = scmp.ne.s32.totalorder %s174, %s175
    %p187 = scmp.eq.s32.totalorder %s25, 1
    %p188 = por %p186, %p187
    %p190 = scmp.ne.s32.totalorder %s175, %s189
    %p191 = scmp.eq.s32.totalorder %s25, 0
    %p192 = por %p190, %p191
    %s194 = sadd.s32 %s193, 1
    %p197 = scmp.eq.s32.totalorder %s19, 1
    %p198 = scmp.ne.s32.totalorder %s193, %s195
    %p199 = scmp.eq.s32.totalorder %s19, 0
    %p200 = por %p198, %p199
    %p201 = scmp.ne.s32.totalorder %s193, %s195
    %p202 = scmp.eq.s32.totalorder %s24, 1
    %p203 = por %p201, %p202
    %p204 = scmp.ne.s32.totalorder %s195, %s196
    %p205 = scmp.eq.s32.totalorder %s24, 0
    %p206 = por %p204, %p205
    %p207 = scmp.ne.s32.totalorder %s195, %s196
    %p208 = scmp.eq.s32.totalorder %s25, 1
    %p209 = por %p207, %p208
    %p211 = scmp.ne.s32.totalorder %s196, %s210
    %p212 = scmp.eq.s32.totalorder %s25, 0
    %p213 = por %p211, %p212
    %s215 = sadd.s32 %s214, 1
    %p218 = scmp.eq.s32.totalorder %s19, 1
    %p219 = scmp.ne.s32.totalorder %s214, %s216
    %p220 = scmp.eq.s32.totalorder %s19, 0
    %p221 = por %p219, %p220
    %p222 = scmp.ne.s32.totalorder %s214, %s216
    %p223 = scmp.eq.s32.totalorder %s24, 1
    %p224 = por %p222, %p223
    %p225 = scmp.ne.s32.totalorder %s216, %s217
    %p226 = scmp.eq.s32.totalorder %s24, 0
    %p227 = por %p225, %p226
    %p228 = scmp.ne.s32.totalorder %s216, %s217
    %p229 = scmp.eq.s32.totalorder %s25, 1
    %p230 = por %p228, %p229
    %p232 = scmp.ne.s32.totalorder %s217, %s231
    %p233 = scmp.eq.s32.totalorder %s25, 0
    %p234 = por %p232, %p233
    %s236 = sadd.s32 %s235, 1
    %p239 = scmp.eq.s32.totalorder %s19, 1
    %p240 = scmp.ne.s32.totalorder %s235, %s237
    %p241 = scmp.eq.s32.totalorder %s19, 0
    %p242 = por %p240, %p241
    %p243 = scmp.ne.s32.totalorder %s235, %s237
    %p244 = scmp.eq.s32.totalorder %s24, 1
    %p245 = por %p243, %p244
    %p246 = scmp.ne.s32.totalorder %s237, %s238
    %p247 = scmp.eq.s32.totalorder %s24, 0
    %p248 = por %p246, %p247
    %p249 = scmp.ne.s32.totalorder %s237, %s238
    %p250 = scmp.eq.s32.totalorder %s25, 1
    %p251 = por %p249, %p250
    %p253 = scmp.ne.s32.totalorder %s238, %s252
    %p254 = scmp.eq.s32.totalorder %s25, 0
    %p255 = por %p253, %p254
    %s257 = sadd.s32 %s256, 1
    %p260 = scmp.eq.s32.totalorder %s19, 1
    %p261 = scmp.ne.s32.totalorder %s256, %s258
    %p262 = scmp.eq.s32.totalorder %s19, 0
    %p263 = por %p261, %p262
    %p264 = scmp.ne.s32.totalorder %s256, %s258
    %p265 = scmp.eq.s32.totalorder %s24, 1
    %p266 = por %p264, %p265
    %p267 = scmp.ne.s32.totalorder %s258, %s259
    %p268 = scmp.eq.s32.totalorder %s24, 0
    %p269 = por %p267, %p268
    %p270 = scmp.ne.s32.totalorder %s258, %s259
    %p271 = scmp.eq.s32.totalorder %s25, 1
    %p272 = por %p270, %p271
    %p274 = scmp.ne.s32.totalorder %s259, %s273
    %p275 = scmp.eq.s32.totalorder %s25, 0
    %p276 = por %p274, %p275
    %s278 = sadd.s32 %s277, 1
    %p281 = scmp.eq.s32.totalorder %s19, 1
    %p282 = scmp.ne.s32.totalorder %s277, %s279
    %p283 = scmp.eq.s32.totalorder %s19, 0
    %p284 = por %p282, %p283
    %p285 = scmp.ne.s32.totalorder %s277, %s279
    %p286 = scmp.eq.s32.totalorder %s24, 1
    %p287 = por %p285, %p286
    %p288 = scmp.ne.s32.totalorder %s279, %s280
    %p289 = scmp.eq.s32.totalorder %s24, 0
    %p290 = por %p288, %p289
    %p291 = scmp.ne.s32.totalorder %s279, %s280
    %p292 = scmp.eq.s32.totalorder %s25, 1
    %p293 = por %p291, %p292
    %p295 = scmp.ne.s32.totalorder %s280, %s294
    %p296 = scmp.eq.s32.totalorder %s25, 0
    %p297 = por %p295, %p296
    %s299 = sadd.s32 %s298, 1
    %p302 = scmp.eq.s32.totalorder %s19, 1
    %p303 = scmp.ne.s32.totalorder %s298, %s300
    %p304 = scmp.eq.s32.totalorder %s19, 0
    %p305 = por %p303, %p304
    %p306 = scmp.ne.s32.totalorder %s298, %s300
    %p307 = scmp.eq.s32.totalorder %s24, 1
    %p308 = por %p306, %p307
    %p309 = scmp.ne.s32.totalorder %s300, %s301
    %p310 = scmp.eq.s32.totalorder %s24, 0
    %p311 = por %p309, %p310
    %p312 = scmp.ne.s32.totalorder %s300, %s301
    %p313 = scmp.eq.s32.totalorder %s25, 1
    %p314 = por %p312, %p313
    %p316 = scmp.ne.s32.totalorder %s301, %s315
    %p317 = scmp.eq.s32.totalorder %s25, 0
    %p318 = por %p316, %p317
    %s320 = sadd.s32 %s319, 1
    %p323 = scmp.eq.s32.totalorder %s19, 1
    %p324 = scmp.ne.s32.totalorder %s319, %s321
    %p325 = scmp.eq.s32.totalorder %s19, 0
    %p326 = por %p324, %p325
    %p327 = scmp.ne.s32.totalorder %s319, %s321
    %p328 = scmp.eq.s32.totalorder %s24, 1
    %p329 = por %p327, %p328
    %p330 = scmp.ne.s32.totalorder %s321, %s322
    %p331 = scmp.eq.s32.totalorder %s24, 0
    %p332 = por %p330, %p331
    %p333 = scmp.ne.s32.totalorder %s321, %s322
    %p334 = scmp.eq.s32.totalorder %s25, 1
    %p335 = por %p333, %p334
    %p337 = scmp.ne.s32.totalorder %s322, %s336
    %p338 = scmp.eq.s32.totalorder %s25, 0
    %p339 = por %p337, %p338
    %s340 = ssub.s32 %s26, %s45
    %s341 = ssub.s32 %s27, %s41
    %s342 = sor.u32 %s340, %s341
    %p343 = scmp.eq.s32.totalorder %s342, 0
    %s345 = sadd.s32 %s344, 1
    %s346 = scalar_select %p343, %s344, %s345
    %p349 = pneg %p343
    %p350 = scmp.eq.s32.totalorder %s19, 1
    %p351 = por %p349, %p350
    %p352 = scmp.ne.s32.totalorder %s344, %s347
    %p353 = scmp.eq.s32.totalorder %s19, 0
    %p354 = por %p352, %p353
    %p355 = scmp.ne.s32.totalorder %s344, %s347
    %p356 = scmp.eq.s32.totalorder %s24, 1
    %p357 = por %p355, %p356
    %p358 = scmp.ne.s32.totalorder %s347, %s348
    %p359 = scmp.eq.s32.totalorder %s24, 0
    %p360 = por %p358, %p359
    %p361 = scmp.ne.s32.totalorder %s347, %s348
    %p362 = scmp.eq.s32.totalorder %s25, 1
    %p363 = por %p361, %p362
    %p365 = scmp.ne.s32.totalorder %s348, %s364
    %p366 = scmp.eq.s32.totalorder %s25, 0
    %p367 = por %p365, %p366
    %p368 = scmp.le.s32.totalorder 1, %s19
    %p369 = scmp.lt.s32.totalorder %s19, 3
    %p370 = pnand %p368, %p369
    %p371 = pneg %p370
    // Predicated region
    $region9: #{lxrt_x_layer_forward.6} parent=5 // pred_check
      _
    $region10: #{lxrt_x_layer_forward.6} parent=5 // pred_check_branch
      %373 = sbr.rel (%p370) target = $region12
    $region11: #{lxrt_x_layer_forward.6} parent=5 // pred_region
      %s374 = ssub.s32 %s19, 1
      // Predicated region
      $region13: #{lxrt_x_layer_forward.6} parent=11 // pred_check
        %p375 = pneg %p143
      $region14: #{lxrt_x_layer_forward.6} parent=11 // pred_check_branch
        %377 = sbr.rel (%p375) target = $region16
      $region15: #{lxrt_x_layer_forward.6} parent=11 // pred_region
        _
      $region16: #{lxrt_x_layer_forward.6} parent=11 // pred_fallthru
        _
      // Predicated region
      $region17: #{lxrt_x_layer_forward.6} parent=11 // pred_check
        %p378 = pneg %p164
      $region18: #{lxrt_x_layer_forward.6} parent=11 // pred_check_branch
        %380 = sbr.rel (%p378) target = $region20
      $region19: #{lxrt_x_layer_forward.6} parent=11 // pred_region
        _
      $region20: #{lxrt_x_layer_forward.6} parent=11 // pred_fallthru
        _
      // Predicated region
      $region21: #{lxrt_x_layer_forward.6} parent=11 // pred_check
        %p381 = pneg %p185
      $region22: #{lxrt_x_layer_forward.6} parent=11 // pred_check_branch
        %383 = sbr.rel (%p381) target = $region24
      $region23: #{lxrt_x_layer_forward.6} parent=11 // pred_region
        _
      $region24: #{lxrt_x_layer_forward.6} parent=11 // pred_fallthru
        _
      // Predicated region
      $region25: #{lxrt_x_layer_forward.6} parent=11 // pred_check
        %p384 = pneg %p206
      $region26: #{lxrt_x_layer_forward.6} parent=11 // pred_check_branch
        %386 = sbr.rel (%p384) target = $region28
      $region27: #{lxrt_x_layer_forward.6} parent=11 // pred_region
        _
      $region28: #{lxrt_x_layer_forward.6} parent=11 // pred_fallthru
        _
      // Predicated region
      $region29: #{lxrt_x_layer_forward.6} parent=11 // pred_check
        %p387 = pneg %p227
      $region30: #{lxrt_x_layer_forward.6} parent=11 // pred_check_branch
        %389 = sbr.rel (%p387) target = $region32
      $region31: #{lxrt_x_layer_forward.6} parent=11 // pred_region
        _
      $region32: #{lxrt_x_layer_forward.6} parent=11 // pred_fallthru
        _
      // Predicated region
      $region33: #{lxrt_x_layer_forward.6} parent=11 // pred_check
        %p390 = pneg %p248
      $region34: #{lxrt_x_layer_forward.6} parent=11 // pred_check_branch
        %392 = sbr.rel (%p390) target = $region36
      $region35: #{lxrt_x_layer_forward.6} parent=11 // pred_region
        _
      $region36: #{lxrt_x_layer_forward.6} parent=11 // pred_fallthru
        _
      // Predicated region
      $region37: #{lxrt_x_layer_forward.6} parent=11 // pred_check
        %p393 = pneg %p269
      $region38: #{lxrt_x_layer_forward.6} parent=11 // pred_check_branch
        %395 = sbr.rel (%p393) target = $region40
      $region39: #{lxrt_x_layer_forward.6} parent=11 // pred_region
        _
      $region40: #{lxrt_x_layer_forward.6} parent=11 // pred_fallthru
        _
      // Predicated region
      $region41: #{lxrt_x_layer_forward.6} parent=11 // pred_check
        %p396 = pneg %p290
      $region42: #{lxrt_x_layer_forward.6} parent=11 // pred_check_branch
        %398 = sbr.rel (%p396) target = $region44
      $region43: #{lxrt_x_layer_forward.6} parent=11 // pred_region
        _
      $region44: #{lxrt_x_layer_forward.6} parent=11 // pred_fallthru
        _
      // Predicated region
      $region45: #{lxrt_x_layer_forward.6} parent=11 // pred_check
        %p399 = pneg %p311
      $region46: #{lxrt_x_layer_forward.6} parent=11 // pred_check_branch
        %401 = sbr.rel (%p399) target = $region48
      $region47: #{lxrt_x_layer_forward.6} parent=11 // pred_region
        _
      $region48: #{lxrt_x_layer_forward.6} parent=11 // pred_fallthru
        _
      // Predicated region
      $region49: #{lxrt_x_layer_forward.6} parent=11 // pred_check
        %p402 = pneg %p332
      $region50: #{lxrt_x_layer_forward.6} parent=11 // pred_check_branch
        %404 = sbr.rel (%p402) target = $region52
      $region51: #{lxrt_x_layer_forward.6} parent=11 // pred_region
        _
      $region52: #{lxrt_x_layer_forward.6} parent=11 // pred_fallthru
        _
    $region12: #{lxrt_x_layer_forward.6} parent=5 // pred_fallthru
      _
    %p405 = scmp.lt.s32.totalorder %s19, 2
    // Predicated region
    $region53: #{lxrt_x_layer_forward.6} parent=5 // pred_check
      %p406 = pneg %p405
    $region54: #{lxrt_x_layer_forward.6} parent=5 // pred_check_branch
      %408 = sbr.rel (%p406) target = $region56
    $region55: #{lxrt_x_layer_forward.6} parent=5 // pred_region
      // Predicated region
      $region57: #{lxrt_x_layer_forward.6} parent=55 // pred_check
        %p409 = pneg %p60
      $region58: #{lxrt_x_layer_forward.6} parent=55 // pred_check_branch
        %411 = sbr.rel (%p409) target = $region60
      $region59: #{lxrt_x_layer_forward.6} parent=55 // pred_region
        %p412 = scmp.lt.s32.totalorder %s26, 1
        %s413 = scalar_select %p412, %s26, 1
        %p414 = scmp.lt.s32.totalorder %s27, 0
        %s415 = scalar_select %p414, %s27, 0
        %s416 = sadd.s32 %s415, %s413
        %s417 = smul.addr %s416, 8
        %s418 = scalar_lea.vmem %s0, %s417
      $region60: #{lxrt_x_layer_forward.6} parent=55 // pred_fallthru
        _
      // Predicated region
      $region61: #{lxrt_x_layer_forward.6} parent=55 // pred_check
        %p419 = pneg %p88
      $region62: #{lxrt_x_layer_forward.6} parent=55 // pred_check_branch
        %421 = sbr.rel (%p419) target = $region64
      $region63: #{lxrt_x_layer_forward.6} parent=55 // pred_region
        %p422 = scmp.lt.s32.totalorder %s26, 1
        %s423 = scalar_select %p422, %s26, 1
        %p424 = scmp.lt.s32.totalorder %s28, 0
        %s425 = scalar_select %p424, %s28, 0
        %s426 = sadd.s32 %s425, %s423
        %s427 = smul.addr %s426, 8
        %s428 = scalar_lea.vmem %s1, %s427
      $region64: #{lxrt_x_layer_forward.6} parent=55 // pred_fallthru
        _
      // Predicated region
      $region65: #{lxrt_x_layer_forward.6} parent=55 // pred_check
        %p429 = pneg %p116
      $region66: #{lxrt_x_layer_forward.6} parent=55 // pred_check_branch
        %431 = sbr.rel (%p429) target = $region68
      $region67: #{lxrt_x_layer_forward.6} parent=55 // pred_region
        %p432 = scmp.lt.s32.totalorder %s26, 1
        %s433 = scalar_select %p432, %s26, 1
        %p434 = scmp.lt.s32.totalorder %s28, 0
        %s435 = scalar_select %p434, %s28, 0
        %s436 = sadd.s32 %s435, %s433
        %s437 = scalar_lea.vmem %s2, %s436
      $region68: #{lxrt_x_layer_forward.6} parent=55 // pred_fallthru
        _
    $region56: #{lxrt_x_layer_forward.6} parent=5 // pred_fallthru
      _
    %p438 = scmp.le.s32.totalorder 1, %s19
    %p439 = scmp.lt.s32.totalorder %s19, 3
    %p440 = pnand %p438, %p439
    %p441 = pneg %p440
    // Predicated region
    $region69: #{lxrt_x_layer_forward.6} parent=5 // pred_check
      _
    $region70: #{lxrt_x_layer_forward.6} parent=5 // pred_check_branch
      %443 = sbr.rel (%p440) target = $region72
    $region71: #{lxrt_x_layer_forward.6} parent=5 // pred_region
      %s444 = ssub.s32 %s19, 1
      %p445 = scmp.lt.s32.totalorder %s29, 1
      %s446 = scalar_select %p445, %s29, 1
      %p447 = scmp.lt.s32.totalorder %s30, 0
      %s448 = scalar_select %p447, %s30, 0
      %s449 = sadd.s32 %s448, %s446
      %s450 = smul.addr %s449, 8
      %s451 = scalar_lea.vmem %s0, %s450
      %p452 = pneg %p66
      %p453 = pneg %p63
      %p454 = scmp.lt.s32.totalorder %s29, 1
      %s455 = scalar_select %p454, %s29, 1
      %p456 = scmp.lt.s32.totalorder %s31, 0
      %s457 = scalar_select %p456, %s31, 0
      %s458 = sadd.s32 %s457, %s455
      %s459 = smul.addr %s458, 8
      %s460 = scalar_lea.vmem %s1, %s459
      %p461 = pneg %p94
      %p462 = pneg %p91
      %p463 = scmp.lt.s32.totalorder %s29, 1
      %s464 = scalar_select %p463, %s29, 1
      %p465 = scmp.lt.s32.totalorder %s31, 0
      %s466 = scalar_select %p465, %s31, 0
      %s467 = sadd.s32 %s466, %s464
      %s468 = scalar_lea.vmem %s2, %s467
      %p469 = pneg %p122
      %p470 = pneg %p119
      %p471 = pneg %p143
      %p472 = pneg %p140
      %p473 = pneg %p164
      %p474 = pneg %p161
      %p475 = pneg %p185
      %p476 = pneg %p182
      %p477 = pneg %p206
      %p478 = pneg %p203
      %p479 = pneg %p227
      %p480 = pneg %p224
      %p481 = pneg %p248
      %p482 = pneg %p245
      %p483 = pneg %p269
      %p484 = pneg %p266
      %p485 = pneg %p290
      %p486 = pneg %p287
      %p487 = pneg %p311
      %p488 = pneg %p308
      %p489 = pneg %p332
      %p490 = pneg %p329
      %p491 = pneg %p360
      %p492 = pneg %p357
      %p493 = scmp.lt.s32.totalorder %s29, 1
      %s494 = scalar_select %p493, %s29, 1
      %p495 = scmp.lt.s32.totalorder %s30, 0
      %s496 = scalar_select %p495, %s30, 0
      %s497 = sadd.s32 %s496, %s494
      %s498 = smul.addr %s497, 8
      %s499 = scalar_lea.vmem %s13, %s498
      %p500 = scmp.lt.s32.totalorder %s29, 1
      %s501 = scalar_select %p500, %s29, 1
      %p502 = scmp.lt.s32.totalorder %s30, 0
      %s503 = scalar_select %p502, %s30, 0
      %s504 = sadd.s32 %s503, %s501
      %s505 = smul.addr %s504, 8
      %s506 = scalar_lea.vmem %s0, %s505
      %p507 = scmp.lt.s32.totalorder %s29, 1
      %s508 = scalar_select %p507, %s29, 1
      %p509 = scmp.lt.s32.totalorder %s31, 0
      %s510 = scalar_select %p509, %s31, 0
      %s511 = sadd.s32 %s510, %s508
      %s512 = smul.addr %s511, 8
      %s513 = scalar_lea.vmem %s1, %s512
      %p514 = scmp.lt.s32.totalorder %s29, 1
      %s515 = scalar_select %p514, %s29, 1
      %p516 = scmp.lt.s32.totalorder %s31, 0
      %s517 = scalar_select %p516, %s31, 0
      %s518 = sadd.s32 %s517, %s515
      %s519 = scalar_lea.vmem %s2, %s518
      %p520 = scmp.lt.s32.totalorder %s29, 1
      %s521 = scalar_select %p520, %s29, 1
      %p522 = scmp.lt.s32.totalorder %s30, 0
      %s523 = scalar_select %p522, %s30, 0
      %s524 = sadd.s32 %s523, %s521
      %s525 = smul.addr %s524, 8
      %s526 = scalar_lea.vmem %s13, %s525
      %p527 = scmp.eq.s32.totalorder %s31, 0
      // Predicated region
      $region73: #{lxrt_x_layer_forward.6} parent=71 // pred_check
        %p528 = pneg %p527
      $region74: #{lxrt_x_layer_forward.6} parent=71 // pred_check_branch
        %530 = sbr.rel (%p528) target = $region76
      $region75: #{lxrt_x_layer_forward.6} parent=71 // pred_region
        %v531 = vld [vmem:[%s506] sm:$0xff]
        %v532 = vld [vmem:[%s3] sm:$0xff]
        %v533 = vld [vmem:[%s3 + $0x8] sm:$0xff]
        %v534 = vld [vmem:[%s3 + $0x10] sm:$0xff]
        %v535 = vld [vmem:[%s3 + $0x18] sm:$0xff]
        %v536 = vld [vmem:[%s4] sm:$0x1]
        %v538 = vlaneseq
        %v539 = vshrl.u32 %v538, 7
        %v540 = vsub.s32 0, %v539
        %v541 = vrot.slane %v536, %v540
        %vm543 = vcmask 261120
        %v545 = vsel %vm543, %v531, 0
        %547 = vmatprep.subr.mxu0 0.0
        %548 = vmatpush1.msra.mxu0 %v532
        %549 = vmatprep.subr.mxu0 0.0
        %550 = vmatpush1.msra.mxu0 %v533
        %551 = vmatprep.subr.mxu0 0.0
        %552 = vmatpush1.msra.mxu0 %v534
        %553 = vmatprep.subr.mxu0 0.0
        %554 = vmatpush1.msra.mxu0 %v535
        %555 = vmatprep.subr.mxu0 0.0
        %556 = vmatpush1.msra.mxu0 0.0
        %557 = vmatprep.subr.mxu0 0.0
        %558 = vmatpush1.msra.mxu0 0.0
        %559 = vmatprep.subr.mxu0 0.0
        %560 = vmatpush1.msra.mxu0 0.0
        %561 = vmatprep.subr.mxu0 0.0
        %562 = vmatpush1.msra.mxu0 0.0
        %563 = vmatprep.subr.mxu0 0.0
        %564 = vmatpush1.msra.mxu0 0.0
        %565 = vmatprep.subr.mxu0 0.0
        %566 = vmatpush1.msra.mxu0 0.0
        %567 = vmatprep.subr.mxu0 0.0
        %568 = vmatpush1.msra.mxu0 0.0
        %569 = vmatprep.subr.mxu0 0.0
        %570 = vmatpush1.msra.mxu0 0.0
        %571 = vmatprep.subr.mxu0 0.0
        %572 = vmatpush1.msra.mxu0 0.0
        %573 = vmatprep.subr.mxu0 0.0
        %574 = vmatpush1.msra.mxu0 0.0
        %575 = vmatprep.subr.mxu0 0.0
        %576 = vmatpush1.msra.mxu0 0.0
        %577 = vmatprep.subr.mxu0 0.0
        %578 = vmatpush1.msra.mxu0 0.0
        %579 = vmatprep.subr.mxu0 0.0
        %580 = vmatpush1.msra.mxu0 0.0
        %581 = vmatprep.subr.mxu0 0.0
        %582 = vmatpush1.msra.mxu0 0.0
        %583 = vmatprep.subr.mxu0 0.0
        %584 = vmatpush1.msra.mxu0 0.0
        %585 = vmatprep.subr.mxu0 0.0
        %586 = vmatpush1.msra.mxu0 0.0
        %587 = vmatprep.subr.mxu0 0.0
        %588 = vmatpush1.msra.mxu0 0.0
        %589 = vmatprep.subr.mxu0 0.0
        %590 = vmatpush1.msra.mxu0 0.0
        %591 = vmatprep.subr.mxu0 0.0
        %592 = vmatpush1.msra.mxu0 0.0
        %593 = vmatprep.subr.mxu0 0.0
        %594 = vmatpush1.msra.mxu0 0.0
        %595 = vmatprep.subr.mxu0 0.0
        %596 = vmatpush1.msra.mxu0 0.0
        %597 = vmatprep.subr.mxu0 0.0
        %598 = vmatpush1.msra.mxu0 0.0
        %599 = vmatprep.subr.mxu0 0.0
        %600 = vmatpush1.msra.mxu0 0.0
        %601 = vmatprep.subr.mxu0 0.0
        %602 = vmatpush1.msra.mxu0 0.0
        %603 = vmatprep.subr.mxu0 0.0
        %604 = vmatpush1.msra.mxu0 0.0
        %605 = vmatprep.subr.mxu0 0.0
        %606 = vmatpush1.msra.mxu0 0.0
        %607 = vmatprep.subr.mxu0 0.0
        %608 = vmatpush1.msra.mxu0 0.0
        %609 = vmatprep.subr.mxu0 0.0
        %610 = vmatpush1.msra.mxu0 0.0
        %611 = vmatprep.mubr.f32.mxu0 0.0
        %612 = vmatmul.mubr.f32.gmra.mrb[0].mxu0 %v545
        %v613 = vpop.f32.mrb[0].mxu0
        %v614 = vadd.f32 %v541, %v613
        %v615 = vpop.f32.mrb[0].mxu0
        %616 = vdwg.mxu0
        %vm617 = vcmask 64512
        %618 = vst.msk [vmem:[#allocation2] sm:$0xff] %vm617, %v614
        %620 = vrot.lane.b32.xlu0 %v614, 120
        %v621 = vpop.permute.xlu0 %620
        %s623 = scalar_lea.vmem [#allocation2], 8
        %624 = vst.msk [vmem:[%s623] sm:$0xff] %vm617, %v621
        %625 = vrot.lane.b32.xlu0 %v614, 112
        %v626 = vpop.permute.xlu0 %625
        %s628 = scalar_lea.vmem [#allocation2], 16
        %629 = vst.msk [vmem:[%s628] sm:$0xff] %vm617, %v626
        %630 = vrot.lane.b32.xlu0 %v614, 104
        %v631 = vpop.permute.xlu0 %630
        %s633 = scalar_lea.vmem [#allocation2], 24
        %634 = vst.msk [vmem:[%s633] sm:$0xff] %vm617, %v631
        %vm635 = vcmask 7168
        %636 = vst.msk [vmem:[#allocation5] sm:$0xff] %vm635, -inf
        %637 = vst.msk [vmem:[#allocation5 + $0x8] sm:$0xff] %vm635, -inf
        %638 = vst.msk [vmem:[#allocation5 + $0x10] sm:$0xff] %vm635, -inf
        %639 = vst.msk [vmem:[#allocation5 + $0x18] sm:$0xff] %vm635, -inf
        %640 = vst.msk [vmem:[#allocation6] sm:$0xff] %vm635, 0.0
        %641 = vst.msk [vmem:[#allocation6 + $0x8] sm:$0xff] %vm635, 0.0
        %642 = vst.msk [vmem:[#allocation6 + $0x10] sm:$0xff] %vm635, 0.0
        %643 = vst.msk [vmem:[#allocation6 + $0x18] sm:$0xff] %vm635, 0.0
        %644 = vst.msk [vmem:[#allocation7] sm:$0xff] %vm617, 0.0
        %645 = vst.msk [vmem:[#allocation7 + $0x8] sm:$0xff] %vm617, 0.0
        %646 = vst.msk [vmem:[#allocation7 + $0x10] sm:$0xff] %vm617, 0.0
        %647 = vst.msk [vmem:[#allocation7 + $0x18] sm:$0xff] %vm617, 0.0
      $region76: #{lxrt_x_layer_forward.6} parent=71 // pred_fallthru
        _
      %v648 = vld [vmem:[%s513] sm:$0xff]
      %v649 = vld [vmem:[%s5] sm:$0xff]
      %v650 = vld [vmem:[%s5 + $0x8] sm:$0xff]
      %v651 = vld [vmem:[%s5 + $0x10] sm:$0xff]
      %v652 = vld [vmem:[%s5 + $0x18] sm:$0xff]
      %v653 = vld [vmem:[%s6] sm:$0x1]
      %v655 = vlaneseq
      %v656 = vshrl.u32 %v655, 7
      %v657 = vsub.s32 0, %v656
      %v658 = vrot.slane %v653, %v657
      %vm660 = vcmask 261120
      %v662 = vsel %vm660, %v648, 0
      %664 = vmatprep.subr.mxu0 0.0
      %665 = vmatpush1.msra.mxu0 %v649
      %666 = vmatprep.subr.mxu0 0.0
      %667 = vmatpush1.msra.mxu0 %v650
      %668 = vmatprep.subr.mxu0 0.0
      %669 = vmatpush1.msra.mxu0 %v651
      %670 = vmatprep.subr.mxu0 0.0
      %671 = vmatpush1.msra.mxu0 %v652
      %672 = vmatprep.subr.mxu0 0.0
      %673 = vmatpush1.msra.mxu0 0.0
      %674 = vmatprep.subr.mxu0 0.0
      %675 = vmatpush1.msra.mxu0 0.0
      %676 = vmatprep.subr.mxu0 0.0
      %677 = vmatpush1.msra.mxu0 0.0
      %678 = vmatprep.subr.mxu0 0.0
      %679 = vmatpush1.msra.mxu0 0.0
      %680 = vmatprep.subr.mxu0 0.0
      %681 = vmatpush1.msra.mxu0 0.0
      %682 = vmatprep.subr.mxu0 0.0
      %683 = vmatpush1.msra.mxu0 0.0
      %684 = vmatprep.subr.mxu0 0.0
      %685 = vmatpush1.msra.mxu0 0.0
      %686 = vmatprep.subr.mxu0 0.0
      %687 = vmatpush1.msra.mxu0 0.0
      %688 = vmatprep.subr.mxu0 0.0
      %689 = vmatpush1.msra.mxu0 0.0
      %690 = vmatprep.subr.mxu0 0.0
      %691 = vmatpush1.msra.mxu0 0.0
      %692 = vmatprep.subr.mxu0 0.0
      %693 = vmatpush1.msra.mxu0 0.0
      %694 = vmatprep.subr.mxu0 0.0
      %695 = vmatpush1.msra.mxu0 0.0
      %696 = vmatprep.subr.mxu0 0.0
      %697 = vmatpush1.msra.mxu0 0.0
      %698 = vmatprep.subr.mxu0 0.0
      %699 = vmatpush1.msra.mxu0 0.0
      %700 = vmatprep.subr.mxu0 0.0
      %701 = vmatpush1.msra.mxu0 0.0
      %702 = vmatprep.subr.mxu0 0.0
      %703 = vmatpush1.msra.mxu0 0.0
      %704 = vmatprep.subr.mxu0 0.0
      %705 = vmatpush1.msra.mxu0 0.0
      %706 = vmatprep.subr.mxu0 0.0
      %707 = vmatpush1.msra.mxu0 0.0
      %708 = vmatprep.subr.mxu0 0.0
      %709 = vmatpush1.msra.mxu0 0.0
      %710 = vmatprep.subr.mxu0 0.0
      %711 = vmatpush1.msra.mxu0 0.0
      %712 = vmatprep.subr.mxu0 0.0
      %713 = vmatpush1.msra.mxu0 0.0
      %714 = vmatprep.subr.mxu0 0.0
      %715 = vmatpush1.msra.mxu0 0.0
      %716 = vmatprep.subr.mxu0 0.0
      %717 = vmatpush1.msra.mxu0 0.0
      %718 = vmatprep.subr.mxu0 0.0
      %719 = vmatpush1.msra.mxu0 0.0
      %720 = vmatprep.subr.mxu0 0.0
      %721 = vmatpush1.msra.mxu0 0.0
      %722 = vmatprep.subr.mxu0 0.0
      %723 = vmatpush1.msra.mxu0 0.0
      %724 = vmatprep.subr.mxu0 0.0
      %725 = vmatpush1.msra.mxu0 0.0
      %726 = vmatprep.subr.mxu0 0.0
      %727 = vmatpush1.msra.mxu0 0.0
      %728 = vmatprep.mubr.f32.mxu0 0.0
      %729 = vmatmul.mubr.f32.gmra.mrb[0].mxu0 %v662
      %v730 = vpop.f32.mrb[0].mxu0
      %v731 = vadd.f32 %v658, %v730
      %v732 = vpop.f32.mrb[0].mxu0
      %733 = vdwg.mxu0
      %v734 = vld [vmem:[%s7] sm:$0xff]
      %v735 = vld [vmem:[%s7 + $0x8] sm:$0xff]
      %v736 = vld [vmem:[%s7 + $0x10] sm:$0xff]
      %v737 = vld [vmem:[%s7 + $0x18] sm:$0xff]
      %v738 = vld [vmem:[%s8] sm:$0x1]
      %v740 = vlaneseq
      %v741 = vshrl.u32 %v740, 7
      %v742 = vsub.s32 0, %v741
      %v743 = vrot.slane %v738, %v742
      %745 = vmatprep.subr.mxu0 0.0
      %746 = vmatpush1.msra.mxu0 %v734
      %747 = vmatprep.subr.mxu0 0.0
      %748 = vmatpush1.msra.mxu0 %v735
      %749 = vmatprep.subr.mxu0 0.0
      %750 = vmatpush1.msra.mxu0 %v736
      %751 = vmatprep.subr.mxu0 0.0
      %752 = vmatpush1.msra.mxu0 %v737
      %753 = vmatprep.subr.mxu0 0.0
      %754 = vmatpush1.msra.mxu0 0.0
      %755 = vmatprep.subr.mxu0 0.0
      %756 = vmatpush1.msra.mxu0 0.0
      %757 = vmatprep.subr.mxu0 0.0
      %758 = vmatpush1.msra.mxu0 0.0
      %759 = vmatprep.subr.mxu0 0.0
      %760 = vmatpush1.msra.mxu0 0.0
      %761 = vmatprep.subr.mxu0 0.0
      %762 = vmatpush1.msra.mxu0 0.0
      %763 = vmatprep.subr.mxu0 0.0
      %764 = vmatpush1.msra.mxu0 0.0
      %765 = vmatprep.subr.mxu0 0.0
      %766 = vmatpush1.msra.mxu0 0.0
      %767 = vmatprep.subr.mxu0 0.0
      %768 = vmatpush1.msra.mxu0 0.0
      %769 = vmatprep.subr.mxu0 0.0
      %770 = vmatpush1.msra.mxu0 0.0
      %771 = vmatprep.subr.mxu0 0.0
      %772 = vmatpush1.msra.mxu0 0.0
      %773 = vmatprep.subr.mxu0 0.0
      %774 = vmatpush1.msra.mxu0 0.0
      %775 = vmatprep.subr.mxu0 0.0
      %776 = vmatpush1.msra.mxu0 0.0
      %777 = vmatprep.subr.mxu0 0.0
      %778 = vmatpush1.msra.mxu0 0.0
      %779 = vmatprep.subr.mxu0 0.0
      %780 = vmatpush1.msra.mxu0 0.0
      %781 = vmatprep.subr.mxu0 0.0
      %782 = vmatpush1.msra.mxu0 0.0
      %783 = vmatprep.subr.mxu0 0.0
      %784 = vmatpush1.msra.mxu0 0.0
      %785 = vmatprep.subr.mxu0 0.0
      %786 = vmatpush1.msra.mxu0 0.0
      %787 = vmatprep.subr.mxu0 0.0
      %788 = vmatpush1.msra.mxu0 0.0
      %789 = vmatprep.subr.mxu0 0.0
      %790 = vmatpush1.msra.mxu0 0.0
      %791 = vmatprep.subr.mxu0 0.0
      %792 = vmatpush1.msra.mxu0 0.0
      %793 = vmatprep.subr.mxu0 0.0
      %794 = vmatpush1.msra.mxu0 0.0
      %795 = vmatprep.subr.mxu0 0.0
      %796 = vmatpush1.msra.mxu0 0.0
      %797 = vmatprep.subr.mxu0 0.0
      %798 = vmatpush1.msra.mxu0 0.0
      %799 = vmatprep.subr.mxu0 0.0
      %800 = vmatpush1.msra.mxu0 0.0
      %801 = vmatprep.subr.mxu0 0.0
      %802 = vmatpush1.msra.mxu0 0.0
      %803 = vmatprep.subr.mxu0 0.0
      %804 = vmatpush1.msra.mxu0 0.0
      %805 = vmatprep.subr.mxu0 0.0
      %806 = vmatpush1.msra.mxu0 0.0
      %807 = vmatprep.subr.mxu0 0.0
      %808 = vmatpush1.msra.mxu0 0.0
      %809 = vmatprep.mubr.f32.mxu0 0.0
      %810 = vmatmul.mubr.f32.gmra.mrb[0].mxu0 %v662
      %v811 = vpop.f32.mrb[0].mxu0
      %v812 = vadd.f32 %v743, %v811
      %v813 = vpop.f32.mrb[0].mxu0
      %814 = vdwg.mxu0
      %vm815 = vcmask 64512
      %816 = vst.msk [vmem:[#allocation3] sm:$0xff] %vm815, %v731
      %817 = vst.msk [vmem:[#allocation4] sm:$0xff] %vm815, %v812
      %819 = vrot.lane.b32.xlu0 %v731, 120
      %v820 = vpop.permute.xlu0 %819
      %s822 = scalar_lea.vmem [#allocation3], 8
      %823 = vst.msk [vmem:[%s822] sm:$0xff] %vm815, %v820
      %825 = vrot.lane.b32.xlu0 %v812, 120
      %v826 = vpop.permute.xlu0 %825
      %s828 = scalar_lea.vmem [#allocation4], 8
      %829 = vst.msk [vmem:[%s828] sm:$0xff] %vm815, %v826
      %830 = vrot.lane.b32.xlu0 %v731, 112
      %v831 = vpop.permute.xlu0 %830
      %s833 = scalar_lea.vmem [#allocation3], 16
      %834 = vst.msk [vmem:[%s833] sm:$0xff] %vm815, %v831
      %835 = vrot.lane.b32.xlu0 %v812, 112
      %v836 = vpop.permute.xlu0 %835
      %s838 = scalar_lea.vmem [#allocation4], 16
      %839 = vst.msk [vmem:[%s838] sm:$0xff] %vm815, %v836
      %840 = vrot.lane.b32.xlu0 %v731, 104
      %v841 = vpop.permute.xlu0 %840
      %s843 = scalar_lea.vmem [#allocation3], 24
      %844 = vst.msk [vmem:[%s843] sm:$0xff] %vm815, %v841
      %845 = vrot.lane.b32.xlu0 %v812, 104
      %v846 = vpop.permute.xlu0 %845
      %s848 = scalar_lea.vmem [#allocation4], 24
      %849 = vst.msk [vmem:[%s848] sm:$0xff] %vm815, %v846
      %v850 = vld [vmem:[#allocation2] sm:$0xff]
      %v851 = vld [vmem:[#allocation2 + $0x8] sm:$0xff]
      %v852 = vld [vmem:[#allocation2 + $0x10] sm:$0xff]
      %v853 = vld [vmem:[#allocation2 + $0x18] sm:$0xff]
      %v854 = vld [vmem:[#allocation3] sm:$0xff]
      %v855 = vld [vmem:[#allocation3 + $0x8] sm:$0xff]
      %v856 = vld [vmem:[#allocation3 + $0x10] sm:$0xff]
      %v857 = vld [vmem:[#allocation3 + $0x18] sm:$0xff]
      %v859 = vsel %vm815, %v850, 0
      %v862 = vsel %vm815, %v854, 0
      %864 = vmatprep.subr.mxu0 0.0
      %865 = vmatpush1.xpose.msra.mxu0 %v862
      %866 = vmatprep.subr.mxu0 0.0
      %867 = vmatpush1.xpose.msra.mxu0 0.0
      %868 = vmatprep.subr.mxu0 0.0
      %869 = vmatpush1.xpose.msra.mxu0 0.0
      %870 = vmatprep.subr.mxu0 0.0
      %871 = vmatpush1.xpose.msra.mxu0 0.0
      %872 = vmatprep.subr.mxu0 0.0
      %873 = vmatpush1.xpose.msra.mxu0 0.0
      %874 = vmatprep.subr.mxu0 0.0
      %875 = vmatpush1.xpose.msra.mxu0 0.0
      %876 = vmatprep.subr.mxu0 0.0
      %877 = vmatpush1.xpose.msra.mxu0 0.0
      %878 = vmatprep.subr.mxu0 0.0
      %879 = vmatpush1.xpose.msra.mxu0 0.0
      %880 = vmatprep.subr.mxu0 0.0
      %881 = vmatpush1.xpose.msra.mxu0 0.0
      %882 = vmatprep.subr.mxu0 0.0
      %883 = vmatpush1.xpose.msra.mxu0 0.0
      %884 = vmatprep.subr.mxu0 0.0
      %885 = vmatpush1.xpose.msra.mxu0 0.0
      %886 = vmatprep.subr.mxu0 0.0
      %887 = vmatpush1.xpose.msra.mxu0 0.0
      %888 = vmatprep.subr.mxu0 0.0
      %889 = vmatpush1.xpose.msra.mxu0 0.0
      %890 = vmatprep.subr.mxu0 0.0
      %891 = vmatpush1.xpose.msra.mxu0 0.0
      %892 = vmatprep.subr.mxu0 0.0
      %893 = vmatpush1.xpose.msra.mxu0 0.0
      %894 = vmatprep.subr.mxu0 0.0
      %895 = vmatpush1.xpose.msra.mxu0 0.0
      %896 = vmatprep.subr.mxu0 0.0
      %897 = vmatpush1.xpose.msra.mxu0 0.0
      %898 = vmatprep.subr.mxu0 0.0
      %899 = vmatpush1.xpose.msra.mxu0 0.0
      %900 = vmatprep.subr.mxu0 0.0
      %901 = vmatpush1.xpose.msra.mxu0 0.0
      %902 = vmatprep.subr.mxu0 0.0
      %903 = vmatpush1.xpose.msra.mxu0 0.0
      %904 = vmatprep.subr.mxu0 0.0
      %905 = vmatpush1.xpose.msra.mxu0 0.0
      %906 = vmatprep.subr.mxu0 0.0
      %907 = vmatpush1.xpose.msra.mxu0 0.0
      %908 = vmatprep.subr.mxu0 0.0
      %909 = vmatpush1.xpose.msra.mxu0 0.0
      %910 = vmatprep.subr.mxu0 0.0
      %911 = vmatpush1.xpose.msra.mxu0 0.0
      %912 = vmatprep.subr.mxu0 0.0
      %913 = vmatpush1.xpose.msra.mxu0 0.0
      %914 = vmatprep.subr.mxu0 0.0
      %915 = vmatpush1.xpose.msra.mxu0 0.0
      %916 = vmatprep.subr.mxu0 0.0
      %917 = vmatpush1.xpose.msra.mxu0 0.0
      %918 = vmatprep.subr.mxu0 0.0
      %919 = vmatpush1.xpose.msra.mxu0 0.0
      %920 = vmatprep.subr.mxu0 0.0
      %921 = vmatpush1.xpose.msra.mxu0 0.0
      %922 = vmatprep.subr.mxu0 0.0
      %923 = vmatpush1.xpose.msra.mxu0 0.0
      %924 = vmatprep.subr.mxu0 0.0
      %925 = vmatpush1.xpose.msra.mxu0 0.0
      %926 = vmatprep.subr.mxu0 0.0
      %927 = vmatpush1.xpose.msra.mxu0 0.0
      %928 = vmatprep.mubr.f32.mxu0 0.0
      %929 = vmatmul.mubr.f32.gmra.mrb[0].mxu0 %v859
      %v930 = vpop.f32.mrb[0].mxu0
      %v931 = vadd.f32 0.0, %v930
      %v932 = vpop.f32.mrb[0].mxu0
      %933 = vdwg.mxu0
      %v935 = vsel %vm815, %v851, 0
      %v938 = vsel %vm815, %v855, 0
      %940 = vmatprep.subr.mxu0 0.0
      %941 = vmatpush1.xpose.msra.mxu0 %v938
      %942 = vmatprep.subr.mxu0 0.0
      %943 = vmatpush1.xpose.msra.mxu0 0.0
      %944 = vmatprep.subr.mxu0 0.0
      %945 = vmatpush1.xpose.msra.mxu0 0.0
      %946 = vmatprep.subr.mxu0 0.0
      %947 = vmatpush1.xpose.msra.mxu0 0.0
      %948 = vmatprep.subr.mxu0 0.0
      %949 = vmatpush1.xpose.msra.mxu0 0.0
      %950 = vmatprep.subr.mxu0 0.0
      %951 = vmatpush1.xpose.msra.mxu0 0.0
      %952 = vmatprep.subr.mxu0 0.0
      %953 = vmatpush1.xpose.msra.mxu0 0.0
      %954 = vmatprep.subr.mxu0 0.0
      %955 = vmatpush1.xpose.msra.mxu0 0.0
      %956 = vmatprep.subr.mxu0 0.0
      %957 = vmatpush1.xpose.msra.mxu0 0.0
      %958 = vmatprep.subr.mxu0 0.0
      %959 = vmatpush1.xpose.msra.mxu0 0.0
      %960 = vmatprep.subr.mxu0 0.0
      %961 = vmatpush1.xpose.msra.mxu0 0.0
      %962 = vmatprep.subr.mxu0 0.0
      %963 = vmatpush1.xpose.msra.mxu0 0.0
      %964 = vmatprep.subr.mxu0 0.0
      %965 = vmatpush1.xpose.msra.mxu0 0.0
      %966 = vmatprep.subr.mxu0 0.0
      %967 = vmatpush1.xpose.msra.mxu0 0.0
      %968 = vmatprep.subr.mxu0 0.0
      %969 = vmatpush1.xpose.msra.mxu0 0.0
      %970 = vmatprep.subr.mxu0 0.0
      %971 = vmatpush1.xpose.msra.mxu0 0.0
      %972 = vmatprep.subr.mxu0 0.0
      %973 = vmatpush1.xpose.msra.mxu0 0.0
      %974 = vmatprep.subr.mxu0 0.0
      %975 = vmatpush1.xpose.msra.mxu0 0.0
      %976 = vmatprep.subr.mxu0 0.0
      %977 = vmatpush1.xpose.msra.mxu0 0.0
      %978 = vmatprep.subr.mxu0 0.0
      %979 = vmatpush1.xpose.msra.mxu0 0.0
      %980 = vmatprep.subr.mxu0 0.0
      %981 = vmatpush1.xpose.msra.mxu0 0.0
      %982 = vmatprep.subr.mxu0 0.0
      %983 = vmatpush1.xpose.msra.mxu0 0.0
      %984 = vmatprep.subr.mxu0 0.0
      %985 = vmatpush1.xpose.msra.mxu0 0.0
      %986 = vmatprep.subr.mxu0 0.0
      %987 = vmatpush1.xpose.msra.mxu0 0.0
      %988 = vmatprep.subr.mxu0 0.0
      %989 = vmatpush1.xpose.msra.mxu0 0.0
      %990 = vmatprep.subr.mxu0 0.0
      %991 = vmatpush1.xpose.msra.mxu0 0.0
      %992 = vmatprep.subr.mxu0 0.0
      %993 = vmatpush1.xpose.msra.mxu0 0.0
      %994 = vmatprep.subr.mxu0 0.0
      %995 = vmatpush1.xpose.msra.mxu0 0.0
      %996 = vmatprep.subr.mxu0 0.0
      %997 = vmatpush1.xpose.msra.mxu0 0.0
      %998 = vmatprep.subr.mxu0 0.0
      %999 = vmatpush1.xpose.msra.mxu0 0.0
      %1000 = vmatprep.subr.mxu0 0.0
      %1001 = vmatpush1.xpose.msra.mxu0 0.0
      %1002 = vmatprep.subr.mxu0 0.0
      %1003 = vmatpush1.xpose.msra.mxu0 0.0
      %1004 = vmatprep.mubr.f32.mxu0 0.0
      %1005 = vmatmul.mubr.f32.gmra.mrb[0].mxu0 %v935
      %v1006 = vpop.f32.mrb[0].mxu0
      %v1007 = vadd.f32 0.0, %v1006
      %v1008 = vpop.f32.mrb[0].mxu0
      %1009 = vdwg.mxu0
      %v1011 = vsel %vm815, %v852, 0
      %v1014 = vsel %vm815, %v856, 0
      %1016 = vmatprep.subr.mxu0 0.0
      %1017 = vmatpush1.xpose.msra.mxu0 %v1014
      %1018 = vmatprep.subr.mxu0 0.0
      %1019 = vmatpush1.xpose.msra.mxu0 0.0
      %1020 = vmatprep.subr.mxu0 0.0
      %1021 = vmatpush1.xpose.msra.mxu0 0.0
      %1022 = vmatprep.subr.mxu0 0.0
      %1023 = vmatpush1.xpose.msra.mxu0 0.0
      %1024 = vmatprep.subr.mxu0 0.0
      %1025 = vmatpush1.xpose.msra.mxu0 0.0
      %1026 = vmatprep.subr.mxu0 0.0
      %1027 = vmatpush1.xpose.msra.mxu0 0.0
      %1028 = vmatprep.subr.mxu0 0.0
      %1029 = vmatpush1.xpose.msra.mxu0 0.0
      %1030 = vmatprep.subr.mxu0 0.0
      %1031 = vmatpush1.xpose.msra.mxu0 0.0
      %1032 = vmatprep.subr.mxu0 0.0
      %1033 = vmatpush1.xpose.msra.mxu0 0.0
      %1034 = vmatprep.subr.mxu0 0.0
      %1035 = vmatpush1.xpose.msra.mxu0 0.0
      %1036 = vmatprep.subr.mxu0 0.0
      %1037 = vmatpush1.xpose.msra.mxu0 0.0
      %1038 = vmatprep.subr.mxu0 0.0
      %1039 = vmatpush1.xpose.msra.mxu0 0.0
      %1040 = vmatprep.subr.mxu0 0.0
      %1041 = vmatpush1.xpose.msra.mxu0 0.0
      %1042 = vmatprep.subr.mxu0 0.0
      %1043 = vmatpush1.xpose.msra.mxu0 0.0
      %1044 = vmatprep.subr.mxu0 0.0
      %1045 = vmatpush1.xpose.msra.mxu0 0.0
      %1046 = vmatprep.subr.mxu0 0.0
      %1047 = vmatpush1.xpose.msra.mxu0 0.0
      %1048 = vmatprep.subr.mxu0 0.0
      %1049 = vmatpush1.xpose.msra.mxu0 0.0
      %1050 = vmatprep.subr.mxu0 0.0
      %1051 = vmatpush1.xpose.msra.mxu0 0.0
      %1052 = vmatprep.subr.mxu0 0.0
      %1053 = vmatpush1.xpose.msra.mxu0 0.0
      %1054 = vmatprep.subr.mxu0 0.0
      %1055 = vmatpush1.xpose.msra.mxu0 0.0
      %1056 = vmatprep.subr.mxu0 0.0
      %1057 = vmatpush1.xpose.msra.mxu0 0.0
      %1058 = vmatprep.subr.mxu0 0.0
      %1059 = vmatpush1.xpose.msra.mxu0 0.0
      %1060 = vmatprep.subr.mxu0 0.0
      %1061 = vmatpush1.xpose.msra.mxu0 0.0
      %1062 = vmatprep.subr.mxu0 0.0
      %1063 = vmatpush1.xpose.msra.mxu0 0.0
      %1064 = vmatprep.subr.mxu0 0.0
      %1065 = vmatpush1.xpose.msra.mxu0 0.0
      %1066 = vmatprep.subr.mxu0 0.0
      %1067 = vmatpush1.xpose.msra.mxu0 0.0
      %1068 = vmatprep.subr.mxu0 0.0
      %1069 = vmatpush1.xpose.msra.mxu0 0.0
      %1070 = vmatprep.subr.mxu0 0.0
      %1071 = vmatpush1.xpose.msra.mxu0 0.0
      %1072 = vmatprep.subr.mxu0 0.0
      %1073 = vmatpush1.xpose.msra.mxu0 0.0
      %1074 = vmatprep.subr.mxu0 0.0
      %1075 = vmatpush1.xpose.msra.mxu0 0.0
      %1076 = vmatprep.subr.mxu0 0.0
      %1077 = vmatpush1.xpose.msra.mxu0 0.0
      %1078 = vmatprep.subr.mxu0 0.0
      %1079 = vmatpush1.xpose.msra.mxu0 0.0
      %1080 = vmatprep.mubr.f32.mxu0 0.0
      %1081 = vmatmul.mubr.f32.gmra.mrb[0].mxu0 %v1011
      %v1082 = vpop.f32.mrb[0].mxu0
      %v1083 = vadd.f32 0.0, %v1082
      %v1084 = vpop.f32.mrb[0].mxu0
      %1085 = vdwg.mxu0
      %v1087 = vsel %vm815, %v853, 0
      %v1090 = vsel %vm815, %v857, 0
      %1092 = vmatprep.subr.mxu0 0.0
      %1093 = vmatpush1.xpose.msra.mxu0 %v1090
      %1094 = vmatprep.subr.mxu0 0.0
      %1095 = vmatpush1.xpose.msra.mxu0 0.0
      %1096 = vmatprep.subr.mxu0 0.0
      %1097 = vmatpush1.xpose.msra.mxu0 0.0
      %1098 = vmatprep.subr.mxu0 0.0
      %1099 = vmatpush1.xpose.msra.mxu0 0.0
      %1100 = vmatprep.subr.mxu0 0.0
      %1101 = vmatpush1.xpose.msra.mxu0 0.0
      %1102 = vmatprep.subr.mxu0 0.0
      %1103 = vmatpush1.xpose.msra.mxu0 0.0
      %1104 = vmatprep.subr.mxu0 0.0
      %1105 = vmatpush1.xpose.msra.mxu0 0.0
      %1106 = vmatprep.subr.mxu0 0.0
      %1107 = vmatpush1.xpose.msra.mxu0 0.0
      %1108 = vmatprep.subr.mxu0 0.0
      %1109 = vmatpush1.xpose.msra.mxu0 0.0
      %1110 = vmatprep.subr.mxu0 0.0
      %1111 = vmatpush1.xpose.msra.mxu0 0.0
      %1112 = vmatprep.subr.mxu0 0.0
      %1113 = vmatpush1.xpose.msra.mxu0 0.0
      %1114 = vmatprep.subr.mxu0 0.0
      %1115 = vmatpush1.xpose.msra.mxu0 0.0
      %1116 = vmatprep.subr.mxu0 0.0
      %1117 = vmatpush1.xpose.msra.mxu0 0.0
      %1118 = vmatprep.subr.mxu0 0.0
      %1119 = vmatpush1.xpose.msra.mxu0 0.0
      %1120 = vmatprep.subr.mxu0 0.0
      %1121 = vmatpush1.xpose.msra.mxu0 0.0
      %1122 = vmatprep.subr.mxu0 0.0
      %1123 = vmatpush1.xpose.msra.mxu0 0.0
      %1124 = vmatprep.subr.mxu0 0.0
      %1125 = vmatpush1.xpose.msra.mxu0 0.0
      %1126 = vmatprep.subr.mxu0 0.0
      %1127 = vmatpush1.xpose.msra.mxu0 0.0
      %1128 = vmatprep.subr.mxu0 0.0
      %1129 = vmatpush1.xpose.msra.mxu0 0.0
      %1130 = vmatprep.subr.mxu0 0.0
      %1131 = vmatpush1.xpose.msra.mxu0 0.0
      %1132 = vmatprep.subr.mxu0 0.0
      %1133 = vmatpush1.xpose.msra.mxu0 0.0
      %1134 = vmatprep.subr.mxu0 0.0
      %1135 = vmatpush1.xpose.msra.mxu0 0.0
      %1136 = vmatprep.subr.mxu0 0.0
      %1137 = vmatpush1.xpose.msra.mxu0 0.0
      %1138 = vmatprep.subr.mxu0 0.0
      %1139 = vmatpush1.xpose.msra.mxu0 0.0
      %1140 = vmatprep.subr.mxu0 0.0
      %1141 = vmatpush1.xpose.msra.mxu0 0.0
      %1142 = vmatprep.subr.mxu0 0.0
      %1143 = vmatpush1.xpose.msra.mxu0 0.0
      %1144 = vmatprep.subr.mxu0 0.0
      %1145 = vmatpush1.xpose.msra.mxu0 0.0
      %1146 = vmatprep.subr.mxu0 0.0
      %1147 = vmatpush1.xpose.msra.mxu0 0.0
      %1148 = vmatprep.subr.mxu0 0.0
      %1149 = vmatpush1.xpose.msra.mxu0 0.0
      %1150 = vmatprep.subr.mxu0 0.0
      %1151 = vmatpush1.xpose.msra.mxu0 0.0
      %1152 = vmatprep.subr.mxu0 0.0
      %1153 = vmatpush1.xpose.msra.mxu0 0.0
      %1154 = vmatprep.subr.mxu0 0.0
      %1155 = vmatpush1.xpose.msra.mxu0 0.0
      %1156 = vmatprep.mubr.f32.mxu0 0.0
      %1157 = vmatmul.mubr.f32.gmra.mrb[0].mxu0 %v1087
      %v1158 = vpop.f32.mrb[0].mxu0
      %v1159 = vadd.f32 0.0, %v1158
      %v1160 = vpop.f32.mrb[0].mxu0
      %1161 = vdwg.mxu0
      %v1162 = vmul.f32 %v931, 0.35355338
      %v1163 = vmul.f32 %v1007, 0.35355338
      %v1164 = vmul.f32 %v1083, 0.35355338
      %v1165 = vmul.f32 %v1159, 0.35355338
      %v1166 = vld [vmem:[%s519] sm:$0x1]
      %v1168 = vlaneseq
      %v1169 = vshrl.u32 %v1168, 7
      %v1170 = vsub.s32 0, %v1169
      %v1171 = vrot.slane %v1166, %v1170
      %v1173 = vadd.f32 %v1162, %v1171
      %v1174 = vadd.f32 %v1163, %v1171
      %v1175 = vadd.f32 %v1164, %v1171
      %v1176 = vadd.f32 %v1165, %v1171
      %v1177 = vld [vmem:[#allocation5] sm:$0xff]
      %v1178 = vld [vmem:[#allocation5 + $0x8] sm:$0xff]
      %v1179 = vld [vmem:[#allocation5 + $0x10] sm:$0xff]
      %v1180 = vld [vmem:[#allocation5 + $0x18] sm:$0xff]
      %v1181 = vsel %vm815, %v1173, -inf
      %1182 = vmax.xlane.f32.xlu0 %v1181
      %v1183 = vpop.xlane.xlu0 %1182
      %v1184 = vsel %vm815, %v1174, -inf
      %1185 = vmax.xlane.f32.xlu0 %v1184
      %v1186 = vpop.xlane.xlu0 %1185
      %v1187 = vsel %vm815, %v1175, -inf
      %1188 = vmax.xlane.f32.xlu0 %v1187
      %v1189 = vpop.xlane.xlu0 %1188
      %v1190 = vsel %vm815, %v1176, -inf
      %1191 = vmax.xlane.f32.xlu0 %v1190
      %v1192 = vpop.xlane.xlu0 %1191
      %v1193 = vmax.f32 %v1177, %v1183
      %v1194 = vmax.f32 %v1178, %v1186
      %v1195 = vmax.f32 %v1179, %v1189
      %v1196 = vmax.f32 %v1180, %v1192
      %v1197 = vsub.f32 %v1177, %v1193
      %v1198 = vsub.f32 %v1178, %v1194
      %v1199 = vsub.f32 %v1179, %v1195
      %v1200 = vsub.f32 %v1180, %v1196
      %v1201 = vmul.f32 %v1197, 1.442695
      %v1202 = vpow.pop %v1201
      %v1203 = vmul.f32 %v1198, 1.442695
      %v1204 = vpow.pop %v1203
      %v1205 = vmul.f32 %v1199, 1.442695
      %v1206 = vpow.pop %v1205
      %v1207 = vmul.f32 %v1200, 1.442695
      %v1208 = vpow.pop %v1207
      %1210 = vset.pattern.permute.xlu0 0
      %1211 = vperm.xlu0 %1210, %v1193
      %v1212 = vpop.permute.xlu0 %1211
      %1215 = vset.pattern.permute.xlu0 0
      %1216 = vperm.xlu0 %1215, %v1194
      %v1217 = vpop.permute.xlu0 %1216
      %1220 = vset.pattern.permute.xlu0 0
      %1221 = vperm.xlu0 %1220, %v1195
      %v1222 = vpop.permute.xlu0 %1221
      %1225 = vset.pattern.permute.xlu0 0
      %1226 = vperm.xlu0 %1225, %v1196
      %v1227 = vpop.permute.xlu0 %1226
      %v1229 = vsub.f32 %v1173, %v1212
      %v1230 = vsub.f32 %v1174, %v1217
      %v1231 = vsub.f32 %v1175, %v1222
      %v1232 = vsub.f32 %v1176, %v1227
      %v1233 = vmul.f32 %v1229, 1.442695
      %v1234 = vpow.pop %v1233
      %v1235 = vmul.f32 %v1230, 1.442695
      %v1236 = vpow.pop %v1235
      %v1237 = vmul.f32 %v1231, 1.442695
      %v1238 = vpow.pop %v1237
      %v1239 = vmul.f32 %v1232, 1.442695
      %v1240 = vpow.pop %v1239
      %v1241 = vld [vmem:[#allocation6] sm:$0xff]
      %v1242 = vld [vmem:[#allocation6 + $0x8] sm:$0xff]
      %v1243 = vld [vmem:[#allocation6 + $0x10] sm:$0xff]
      %v1244 = vld [vmem:[#allocation6 + $0x18] sm:$0xff]
      %v1245 = vmul.f32 %v1202, %v1241
      %v1246 = vmul.f32 %v1204, %v1242
      %v1247 = vmul.f32 %v1206, %v1243
      %v1248 = vmul.f32 %v1208, %v1244
      %v1249 = vsel %vm815, %v1234, 0.0
      %1250 = vadd.xlane.f32.xlu0 %v1249
      %v1251 = vpop.xlane.xlu0 %1250
      %v1252 = vsel %vm815, %v1236, 0.0
      %1253 = vadd.xlane.f32.xlu0 %v1252
      %v1254 = vpop.xlane.xlu0 %1253
      %v1255 = vsel %vm815, %v1238, 0.0
      %1256 = vadd.xlane.f32.xlu0 %v1255
      %v1257 = vpop.xlane.xlu0 %1256
      %v1258 = vsel %vm815, %v1240, 0.0
      %1259 = vadd.xlane.f32.xlu0 %v1258
      %v1260 = vpop.xlane.xlu0 %1259
      %v1261 = vadd.f32 %v1245, %v1251
      %v1262 = vadd.f32 %v1246, %v1254
      %v1263 = vadd.f32 %v1247, %v1257
      %v1264 = vadd.f32 %v1248, %v1260
      %vm1265 = vcmask 7168
      %1266 = vst.msk [vmem:[#allocation6] sm:$0xff] %vm1265, %v1261
      %1267 = vst.msk [vmem:[#allocation6 + $0x8] sm:$0xff] %vm1265, %v1262
      %1268 = vst.msk [vmem:[#allocation6 + $0x10] sm:$0xff] %vm1265, %v1263
      %1269 = vst.msk [vmem:[#allocation6 + $0x18] sm:$0xff] %vm1265, %v1264
      %v1270 = vld [vmem:[#allocation4] sm:$0xff]
      %v1271 = vld [vmem:[#allocation4 + $0x8] sm:$0xff]
      %v1272 = vld [vmem:[#allocation4 + $0x10] sm:$0xff]
      %v1273 = vld [vmem:[#allocation4 + $0x18] sm:$0xff]
      %v1275 = vsel %vm815, %v1234, 0
      %1277 = vmatprep.subr.mxu0 0.0
      %1278 = vmatpush1.msra.mxu0 %v1270
      %1279 = vmatprep.subr.mxu0 0.0
      %1280 = vmatpush1.msra.mxu0 0.0
      %1281 = vmatprep.subr.mxu0 0.0
      %1282 = vmatpush1.msra.mxu0 0.0
      %1283 = vmatprep.subr.mxu0 0.0
      %1284 = vmatpush1.msra.mxu0 0.0
      %1285 = vmatprep.subr.mxu0 0.0
      %1286 = vmatpush1.msra.mxu0 0.0
      %1287 = vmatprep.subr.mxu0 0.0
      %1288 = vmatpush1.msra.mxu0 0.0
      %1289 = vmatprep.subr.mxu0 0.0
      %1290 = vmatpush1.msra.mxu0 0.0
      %1291 = vmatprep.subr.mxu0 0.0
      %1292 = vmatpush1.msra.mxu0 0.0
      %1293 = vmatprep.subr.mxu0 0.0
      %1294 = vmatpush1.msra.mxu0 0.0
      %1295 = vmatprep.subr.mxu0 0.0
      %1296 = vmatpush1.msra.mxu0 0.0
      %1297 = vmatprep.subr.mxu0 0.0
      %1298 = vmatpush1.msra.mxu0 0.0
      %1299 = vmatprep.subr.mxu0 0.0
      %1300 = vmatpush1.msra.mxu0 0.0
      %1301 = vmatprep.subr.mxu0 0.0
      %1302 = vmatpush1.msra.mxu0 0.0
      %1303 = vmatprep.subr.mxu0 0.0
      %1304 = vmatpush1.msra.mxu0 0.0
      %1305 = vmatprep.subr.mxu0 0.0
      %1306 = vmatpush1.msra.mxu0 0.0
      %1307 = vmatprep.subr.mxu0 0.0
      %1308 = vmatpush1.msra.mxu0 0.0
      %1309 = vmatprep.subr.mxu0 0.0
      %1310 = vmatpush1.msra.mxu0 0.0
      %1311 = vmatprep.subr.mxu0 0.0
      %1312 = vmatpush1.msra.mxu0 0.0
      %1313 = vmatprep.subr.mxu0 0.0
      %1314 = vmatpush1.msra.mxu0 0.0
      %1315 = vmatprep.subr.mxu0 0.0
      %1316 = vmatpush1.msra.mxu0 0.0
      %1317 = vmatprep.subr.mxu0 0.0
      %1318 = vmatpush1.msra.mxu0 0.0
      %1319 = vmatprep.subr.mxu0 0.0
      %1320 = vmatpush1.msra.mxu0 0.0
      %1321 = vmatprep.subr.mxu0 0.0
      %1322 = vmatpush1.msra.mxu0 0.0
      %1323 = vmatprep.subr.mxu0 0.0
      %1324 = vmatpush1.msra.mxu0 0.0
      %1325 = vmatprep.subr.mxu0 0.0
      %1326 = vmatpush1.msra.mxu0 0.0
      %1327 = vmatprep.subr.mxu0 0.0
      %1328 = vmatpush1.msra.mxu0 0.0
      %1329 = vmatprep.subr.mxu0 0.0
      %1330 = vmatpush1.msra.mxu0 0.0
      %1331 = vmatprep.subr.mxu0 0.0
      %1332 = vmatpush1.msra.mxu0 0.0
      %1333 = vmatprep.subr.mxu0 0.0
      %1334 = vmatpush1.msra.mxu0 0.0
      %1335 = vmatprep.subr.mxu0 0.0
      %1336 = vmatpush1.msra.mxu0 0.0
      %1337 = vmatprep.subr.mxu0 0.0
      %1338 = vmatpush1.msra.mxu0 0.0
      %1339 = vmatprep.subr.mxu0 0.0
      %1340 = vmatpush1.msra.mxu0 0.0
      %1341 = vmatprep.mubr.f32.mxu0 0.0
      %1342 = vmatmul.mubr.f32.gmra.mrb[0].mxu0 %v1275
      %v1343 = vpop.f32.mrb[0].mxu0
      %v1344 = vadd.f32 0.0, %v1343
      %v1345 = vpop.f32.mrb[0].mxu0
      %1346 = vdwg.mxu0
      %v1348 = vsel %vm815, %v1236, 0
      %1350 = vmatprep.subr.mxu0 0.0
      %1351 = vmatpush1.msra.mxu0 %v1271
      %1352 = vmatprep.subr.mxu0 0.0
      %1353 = vmatpush1.msra.mxu0 0.0
      %1354 = vmatprep.subr.mxu0 0.0
      %1355 = vmatpush1.msra.mxu0 0.0
      %1356 = vmatprep.subr.mxu0 0.0
      %1357 = vmatpush1.msra.mxu0 0.0
      %1358 = vmatprep.subr.mxu0 0.0
      %1359 = vmatpush1.msra.mxu0 0.0
      %1360 = vmatprep.subr.mxu0 0.0
      %1361 = vmatpush1.msra.mxu0 0.0
      %1362 = vmatprep.subr.mxu0 0.0
      %1363 = vmatpush1.msra.mxu0 0.0
      %1364 = vmatprep.subr.mxu0 0.0
      %1365 = vmatpush1.msra.mxu0 0.0
      %1366 = vmatprep.subr.mxu0 0.0
      %1367 = vmatpush1.msra.mxu0 0.0
      %1368 = vmatprep.subr.mxu0 0.0
      %1369 = vmatpush1.msra.mxu0 0.0
      %1370 = vmatprep.subr.mxu0 0.0
      %1371 = vmatpush1.msra.mxu0 0.0
      %1372 = vmatprep.subr.mxu0 0.0
      %1373 = vmatpush1.msra.mxu0 0.0
      %1374 = vmatprep.subr.mxu0 0.0
      %1375 = vmatpush1.msra.mxu0 0.0
      %1376 = vmatprep.subr.mxu0 0.0
      %1377 = vmatpush1.msra.mxu0 0.0
      %1378 = vmatprep.subr.mxu0 0.0
      %1379 = vmatpush1.msra.mxu0 0.0
      %1380 = vmatprep.subr.mxu0 0.0
      %1381 = vmatpush1.msra.mxu0 0.0
      %1382 = vmatprep.subr.mxu0 0.0
      %1383 = vmatpush1.msra.mxu0 0.0
      %1384 = vmatprep.subr.mxu0 0.0
      %1385 = vmatpush1.msra.mxu0 0.0
      %1386 = vmatprep.subr.mxu0 0.0
      %1387 = vmatpush1.msra.mxu0 0.0
      %1388 = vmatprep.subr.mxu0 0.0
      %1389 = vmatpush1.msra.mxu0 0.0
      %1390 = vmatprep.subr.mxu0 0.0
      %1391 = vmatpush1.msra.mxu0 0.0
      %1392 = vmatprep.subr.mxu0 0.0
      %1393 = vmatpush1.msra.mxu0 0.0
      %1394 = vmatprep.subr.mxu0 0.0
      %1395 = vmatpush1.msra.mxu0 0.0
      %1396 = vmatprep.subr.mxu0 0.0
      %1397 = vmatpush1.msra.mxu0 0.0
      %1398 = vmatprep.subr.mxu0 0.0
      %1399 = vmatpush1.msra.mxu0 0.0
      %1400 = vmatprep.subr.mxu0 0.0
      %1401 = vmatpush1.msra.mxu0 0.0
      %1402 = vmatprep.subr.mxu0 0.0
      %1403 = vmatpush1.msra.mxu0 0.0
      %1404 = vmatprep.subr.mxu0 0.0
      %1405 = vmatpush1.msra.mxu0 0.0
      %1406 = vmatprep.subr.mxu0 0.0
      %1407 = vmatpush1.msra.mxu0 0.0
      %1408 = vmatprep.subr.mxu0 0.0
      %1409 = vmatpush1.msra.mxu0 0.0
      %1410 = vmatprep.subr.mxu0 0.0
      %1411 = vmatpush1.msra.mxu0 0.0
      %1412 = vmatprep.subr.mxu0 0.0
      %1413 = vmatpush1.msra.mxu0 0.0
      %1414 = vmatprep.mubr.f32.mxu0 0.0
      %1415 = vmatmul.mubr.f32.gmra.mrb[0].mxu0 %v1348
      %v1416 = vpop.f32.mrb[0].mxu0
      %v1417 = vadd.f32 0.0, %v1416
      %v1418 = vpop.f32.mrb[0].mxu0
      %1419 = vdwg.mxu0
      %v1421 = vsel %vm815, %v1238, 0
      %1423 = vmatprep.subr.mxu0 0.0
      %1424 = vmatpush1.msra.mxu0 %v1272
      %1425 = vmatprep.subr.mxu0 0.0
      %1426 = vmatpush1.msra.mxu0 0.0
      %1427 = vmatprep.subr.mxu0 0.0
      %1428 = vmatpush1.msra.mxu0 0.0
      %1429 = vmatprep.subr.mxu0 0.0
      %1430 = vmatpush1.msra.mxu0 0.0
      %1431 = vmatprep.subr.mxu0 0.0
      %1432 = vmatpush1.msra.mxu0 0.0
      %1433 = vmatprep.subr.mxu0 0.0
      %1434 = vmatpush1.msra.mxu0 0.0
      %1435 = vmatprep.subr.mxu0 0.0
      %1436 = vmatpush1.msra.mxu0 0.0
      %1437 = vmatprep.subr.mxu0 0.0
      %1438 = vmatpush1.msra.mxu0 0.0
      %1439 = vmatprep.subr.mxu0 0.0
      %1440 = vmatpush1.msra.mxu0 0.0
      %1441 = vmatprep.subr.mxu0 0.0
      %1442 = vmatpush1.msra.mxu0 0.0
      %1443 = vmatprep.subr.mxu0 0.0
      %1444 = vmatpush1.msra.mxu0 0.0
      %1445 = vmatprep.subr.mxu0 0.0
      %1446 = vmatpush1.msra.mxu0 0.0
      %1447 = vmatprep.subr.mxu0 0.0
      %1448 = vmatpush1.msra.mxu0 0.0
      %1449 = vmatprep.subr.mxu0 0.0
      %1450 = vmatpush1.msra.mxu0 0.0
      %1451 = vmatprep.subr.mxu0 0.0
      %1452 = vmatpush1.msra.mxu0 0.0
      %1453 = vmatprep.subr.mxu0 0.0
      %1454 = vmatpush1.msra.mxu0 0.0
      %1455 = vmatprep.subr.mxu0 0.0
      %1456 = vmatpush1.msra.mxu0 0.0
      %1457 = vmatprep.subr.mxu0 0.0
      %1458 = vmatpush1.msra.mxu0 0.0
      %1459 = vmatprep.subr.mxu0 0.0
      %1460 = vmatpush1.msra.mxu0 0.0
      %1461 = vmatprep.subr.mxu0 0.0
      %1462 = vmatpush1.msra.mxu0 0.0
      %1463 = vmatprep.subr.mxu0 0.0
      %1464 = vmatpush1.msra.mxu0 0.0
      %1465 = vmatprep.subr.mxu0 0.0
      %1466 = vmatpush1.msra.mxu0 0.0
      %1467 = vmatprep.subr.mxu0 0.0
      %1468 = vmatpush1.msra.mxu0 0.0
      %1469 = vmatprep.subr.mxu0 0.0
      %1470 = vmatpush1.msra.mxu0 0.0
      %1471 = vmatprep.subr.mxu0 0.0
      %1472 = vmatpush1.msra.mxu0 0.0
      %1473 = vmatprep.subr.mxu0 0.0
      %1474 = vmatpush1.msra.mxu0 0.0
      %1475 = vmatprep.subr.mxu0 0.0
      %1476 = vmatpush1.msra.mxu0 0.0
      %1477 = vmatprep.subr.mxu0 0.0
      %1478 = vmatpush1.msra.mxu0 0.0
      %1479 = vmatprep.subr.mxu0 0.0
      %1480 = vmatpush1.msra.mxu0 0.0
      %1481 = vmatprep.subr.mxu0 0.0
      %1482 = vmatpush1.msra.mxu0 0.0
      %1483 = vmatprep.subr.mxu0 0.0
      %1484 = vmatpush1.msra.mxu0 0.0
      %1485 = vmatprep.subr.mxu0 0.0
      %1486 = vmatpush1.msra.mxu0 0.0
      %1487 = vmatprep.mubr.f32.mxu0 0.0
      %1488 = vmatmul.mubr.f32.gmra.mrb[0].mxu0 %v1421
      %v1489 = vpop.f32.mrb[0].mxu0
      %v1490 = vadd.f32 0.0, %v1489
      %v1491 = vpop.f32.mrb[0].mxu0
      %1492 = vdwg.mxu0
      %v1494 = vsel %vm815, %v1240, 0
      %1496 = vmatprep.subr.mxu0 0.0
      %1497 = vmatpush1.msra.mxu0 %v1273
      %1498 = vmatprep.subr.mxu0 0.0
      %1499 = vmatpush1.msra.mxu0 0.0
      %1500 = vmatprep.subr.mxu0 0.0
      %1501 = vmatpush1.msra.mxu0 0.0
      %1502 = vmatprep.subr.mxu0 0.0
      %1503 = vmatpush1.msra.mxu0 0.0
      %1504 = vmatprep.subr.mxu0 0.0
      %1505 = vmatpush1.msra.mxu0 0.0
      %1506 = vmatprep.subr.mxu0 0.0
      %1507 = vmatpush1.msra.mxu0 0.0
      %1508 = vmatprep.subr.mxu0 0.0
      %1509 = vmatpush1.msra.mxu0 0.0
      %1510 = vmatprep.subr.mxu0 0.0
      %1511 = vmatpush1.msra.mxu0 0.0
      %1512 = vmatprep.subr.mxu0 0.0
      %1513 = vmatpush1.msra.mxu0 0.0
      %1514 = vmatprep.subr.mxu0 0.0
      %1515 = vmatpush1.msra.mxu0 0.0
      %1516 = vmatprep.subr.mxu0 0.0
      %1517 = vmatpush1.msra.mxu0 0.0
      %1518 = vmatprep.subr.mxu0 0.0
      %1519 = vmatpush1.msra.mxu0 0.0
      %1520 = vmatprep.subr.mxu0 0.0
      %1521 = vmatpush1.msra.mxu0 0.0
      %1522 = vmatprep.subr.mxu0 0.0
      %1523 = vmatpush1.msra.mxu0 0.0
      %1524 = vmatprep.subr.mxu0 0.0
      %1525 = vmatpush1.msra.mxu0 0.0
      %1526 = vmatprep.subr.mxu0 0.0
      %1527 = vmatpush1.msra.mxu0 0.0
      %1528 = vmatprep.subr.mxu0 0.0
      %1529 = vmatpush1.msra.mxu0 0.0
      %1530 = vmatprep.subr.mxu0 0.0
      %1531 = vmatpush1.msra.mxu0 0.0
      %1532 = vmatprep.subr.mxu0 0.0
      %1533 = vmatpush1.msra.mxu0 0.0
      %1534 = vmatprep.subr.mxu0 0.0
      %1535 = vmatpush1.msra.mxu0 0.0
      %1536 = vmatprep.subr.mxu0 0.0
      %1537 = vmatpush1.msra.mxu0 0.0
      %1538 = vmatprep.subr.mxu0 0.0
      %1539 = vmatpush1.msra.mxu0 0.0
      %1540 = vmatprep.subr.mxu0 0.0
      %1541 = vmatpush1.msra.mxu0 0.0
      %1542 = vmatprep.subr.mxu0 0.0
      %1543 = vmatpush1.msra.mxu0 0.0
      %1544 = vmatprep.subr.mxu0 0.0
      %1545 = vmatpush1.msra.mxu0 0.0
      %1546 = vmatprep.subr.mxu0 0.0
      %1547 = vmatpush1.msra.mxu0 0.0
      %1548 = vmatprep.subr.mxu0 0.0
      %1549 = vmatpush1.msra.mxu0 0.0
      %1550 = vmatprep.subr.mxu0 0.0
      %1551 = vmatpush1.msra.mxu0 0.0
      %1552 = vmatprep.subr.mxu0 0.0
      %1553 = vmatpush1.msra.mxu0 0.0
      %1554 = vmatprep.subr.mxu0 0.0
      %1555 = vmatpush1.msra.mxu0 0.0
      %1556 = vmatprep.subr.mxu0 0.0
      %1557 = vmatpush1.msra.mxu0 0.0
      %1558 = vmatprep.subr.mxu0 0.0
      %1559 = vmatpush1.msra.mxu0 0.0
      %1560 = vmatprep.mubr.f32.mxu0 0.0
      %1561 = vmatmul.mubr.f32.gmra.mrb[0].mxu0 %v1494
      %v1562 = vpop.f32.mrb[0].mxu0
      %v1563 = vadd.f32 0.0, %v1562
      %v1564 = vpop.f32.mrb[0].mxu0
      %1565 = vdwg.mxu0
      %v1566 = vld [vmem:[#allocation7] sm:$0xff]
      %v1567 = vld [vmem:[#allocation7 + $0x8] sm:$0xff]
      %v1568 = vld [vmem:[#allocation7 + $0x10] sm:$0xff]
      %v1569 = vld [vmem:[#allocation7 + $0x18] sm:$0xff]
      %1571 = vset.pattern.permute.xlu0 0
      %1572 = vperm.xlu0 %1571, %v1202
      %v1573 = vpop.permute.xlu0 %1572
      %1576 = vset.pattern.permute.xlu0 0
      %1577 = vperm.xlu0 %1576, %v1204
      %v1578 = vpop.permute.xlu0 %1577
      %1581 = vset.pattern.permute.xlu0 0
      %1582 = vperm.xlu0 %1581, %v1206
      %v1583 = vpop.permute.xlu0 %1582
      %1586 = vset.pattern.permute.xlu0 0
      %1587 = vperm.xlu0 %1586, %v1208
      %v1588 = vpop.permute.xlu0 %1587
      %v1590 = vmul.f32 %v1573, %v1566
      %v1591 = vmul.f32 %v1578, %v1567
      %v1592 = vmul.f32 %v1583, %v1568
      %v1593 = vmul.f32 %v1588, %v1569
      %v1594 = vadd.f32 %v1590, %v1344
      %v1595 = vadd.f32 %v1591, %v1417
      %v1596 = vadd.f32 %v1592, %v1490
      %v1597 = vadd.f32 %v1593, %v1563
      %1598 = vst.msk [vmem:[#allocation7] sm:$0xff] %vm815, %v1594
      %1599 = vst.msk [vmem:[#allocation7 + $0x8] sm:$0xff] %vm815, %v1595
      %1600 = vst.msk [vmem:[#allocation7 + $0x10] sm:$0xff] %vm815, %v1596
      %1601 = vst.msk [vmem:[#allocation7 + $0x18] sm:$0xff] %vm815, %v1597
      %1602 = vst.msk [vmem:[#allocation5] sm:$0xff] %vm1265, %v1193
      %1603 = vst.msk [vmem:[#allocation5 + $0x8] sm:$0xff] %vm1265, %v1194
      %1604 = vst.msk [vmem:[#allocation5 + $0x10] sm:$0xff] %vm1265, %v1195
      %1605 = vst.msk [vmem:[#allocation5 + $0x18] sm:$0xff] %vm1265, %v1196
      // Predicated region
      $region77: #{lxrt_x_layer_forward.6} parent=71 // pred_check
        %p1606 = pneg %p527
      $region78: #{lxrt_x_layer_forward.6} parent=71 // pred_check_branch
        %1608 = sbr.rel (%p1606) target = $region80
      $region79: #{lxrt_x_layer_forward.6} parent=71 // pred_region
        %v1609 = vld [vmem:[#allocation6] sm:$0xff]
        %v1610 = vrcp.pop %v1609
        %v1611 = vld [vmem:[#allocation7] sm:$0xff]
        %1613 = vset.pattern.permute.xlu0 0
        %1614 = vperm.xlu0 %1613, %v1610
        %v1615 = vpop.permute.xlu0 %1614
        %v1617 = vmul.f32 %v1611, %v1615
        %s1618 = scalar_lea.vmem [#allocation6], 8
        %v1619 = vld [vmem:[%s1618] sm:$0xff]
        %v1620 = vrcp.pop %v1619
        %s1621 = scalar_lea.vmem [#allocation7], 8
        %v1622 = vld [vmem:[%s1621] sm:$0xff]
        %1624 = vset.pattern.permute.xlu0 0
        %1625 = vperm.xlu0 %1624, %v1620
        %v1626 = vpop.permute.xlu0 %1625
        %v1628 = vmul.f32 %v1622, %v1626
        %s1629 = scalar_lea.vmem [#allocation6], 16
        %v1630 = vld [vmem:[%s1629] sm:$0xff]
        %v1631 = vrcp.pop %v1630
        %s1632 = scalar_lea.vmem [#allocation7], 16
        %v1633 = vld [vmem:[%s1632] sm:$0xff]
        %1635 = vset.pattern.permute.xlu0 0
        %1636 = vperm.xlu0 %1635, %v1631
        %v1637 = vpop.permute.xlu0 %1636
        %v1639 = vmul.f32 %v1633, %v1637
        %s1640 = scalar_lea.vmem [#allocation6], 24
        %v1641 = vld [vmem:[%s1640] sm:$0xff]
        %v1642 = vrcp.pop %v1641
        %s1643 = scalar_lea.vmem [#allocation7], 24
        %v1644 = vld [vmem:[%s1643] sm:$0xff]
        %1646 = vset.pattern.permute.xlu0 0
        %1647 = vperm.xlu0 %1646, %v1642
        %v1648 = vpop.permute.xlu0 %1647
        %v1650 = vmul.f32 %v1644, %v1648
        %1652 = vrot.lane.b32.xlu0 %v1628, 8
        %v1653 = vpop.permute.xlu0 %1652
        %1656 = vrot.lane.b32.xlu0 %v1639, 16
        %v1657 = vpop.permute.xlu0 %1656
        %1660 = vrot.lane.b32.xlu0 %v1650, 24
        %v1661 = vpop.permute.xlu0 %1660
        %v1663 = vsel %vm815, %v1617, %v1653
        %vm1664 = vcmask 130048
        %v1665 = vsel %vm1664, %v1663, %v1657
        %vm1666 = vcmask 195584
        %v1667 = vsel %vm1666, %v1665, %v1661
        %v1668 = vld [vmem:[%s9] sm:$0xff]
        %v1669 = vld [vmem:[%s9 + $0x8] sm:$0xff]
        %v1670 = vld [vmem:[%s9 + $0x10] sm:$0xff]
        %v1671 = vld [vmem:[%s9 + $0x18] sm:$0xff]
        %v1672 = vld [vmem:[%s10] sm:$0x1]
        %v1674 = vlaneseq
        %v1675 = vshrl.u32 %v1674, 7
        %v1676 = vsub.s32 0, %v1675
        %v1677 = vrot.slane %v1672, %v1676
        %v1680 = vsel %vm660, %v1667, 0
        %1682 = vmatprep.subr.mxu0 0.0
        %1683 = vmatpush1.msra.mxu0 %v1668
        %1684 = vmatprep.subr.mxu0 0.0
        %1685 = vmatpush1.msra.mxu0 %v1669
        %1686 = vmatprep.subr.mxu0 0.0
        %1687 = vmatpush1.msra.mxu0 %v1670
        %1688 = vmatprep.subr.mxu0 0.0
        %1689 = vmatpush1.msra.mxu0 %v1671
        %1690 = vmatprep.subr.mxu0 0.0
        %1691 = vmatpush1.msra.mxu0 0.0
        %1692 = vmatprep.subr.mxu0 0.0
        %1693 = vmatpush1.msra.mxu0 0.0
        %1694 = vmatprep.subr.mxu0 0.0
        %1695 = vmatpush1.msra.mxu0 0.0
        %1696 = vmatprep.subr.mxu0 0.0
        %1697 = vmatpush1.msra.mxu0 0.0
        %1698 = vmatprep.subr.mxu0 0.0
        %1699 = vmatpush1.msra.mxu0 0.0
        %1700 = vmatprep.subr.mxu0 0.0
        %1701 = vmatpush1.msra.mxu0 0.0
        %1702 = vmatprep.subr.mxu0 0.0
        %1703 = vmatpush1.msra.mxu0 0.0
        %1704 = vmatprep.subr.mxu0 0.0
        %1705 = vmatpush1.msra.mxu0 0.0
        %1706 = vmatprep.subr.mxu0 0.0
        %1707 = vmatpush1.msra.mxu0 0.0
        %1708 = vmatprep.subr.mxu0 0.0
        %1709 = vmatpush1.msra.mxu0 0.0
        %1710 = vmatprep.subr.mxu0 0.0
        %1711 = vmatpush1.msra.mxu0 0.0
        %1712 = vmatprep.subr.mxu0 0.0
        %1713 = vmatpush1.msra.mxu0 0.0
        %1714 = vmatprep.subr.mxu0 0.0
        %1715 = vmatpush1.msra.mxu0 0.0
        %1716 = vmatprep.subr.mxu0 0.0
        %1717 = vmatpush1.msra.mxu0 0.0
        %1718 = vmatprep.subr.mxu0 0.0
        %1719 = vmatpush1.msra.mxu0 0.0
        %1720 = vmatprep.subr.mxu0 0.0
        %1721 = vmatpush1.msra.mxu0 0.0
        %1722 = vmatprep.subr.mxu0 0.0
        %1723 = vmatpush1.msra.mxu0 0.0
        %1724 = vmatprep.subr.mxu0 0.0
        %1725 = vmatpush1.msra.mxu0 0.0
        %1726 = vmatprep.subr.mxu0 0.0
        %1727 = vmatpush1.msra.mxu0 0.0
        %1728 = vmatprep.subr.mxu0 0.0
        %1729 = vmatpush1.msra.mxu0 0.0
        %1730 = vmatprep.subr.mxu0 0.0
        %1731 = vmatpush1.msra.mxu0 0.0
        %1732 = vmatprep.subr.mxu0 0.0
        %1733 = vmatpush1.msra.mxu0 0.0
        %1734 = vmatprep.subr.mxu0 0.0
        %1735 = vmatpush1.msra.mxu0 0.0
        %1736 = vmatprep.subr.mxu0 0.0
        %1737 = vmatpush1.msra.mxu0 0.0
        %1738 = vmatprep.subr.mxu0 0.0
        %1739 = vmatpush1.msra.mxu0 0.0
        %1740 = vmatprep.subr.mxu0 0.0
        %1741 = vmatpush1.msra.mxu0 0.0
        %1742 = vmatprep.subr.mxu0 0.0
        %1743 = vmatpush1.msra.mxu0 0.0
        %1744 = vmatprep.subr.mxu0 0.0
        %1745 = vmatpush1.msra.mxu0 0.0
        %1746 = vmatprep.mubr.f32.mxu0 0.0
        %1747 = vmatmul.mubr.f32.gmra.mrb[0].mxu0 %v1680
        %v1748 = vpop.f32.mrb[0].mxu0
        %v1749 = vadd.f32 %v1677, %v1748
        %v1750 = vpop.f32.mrb[0].mxu0
        %1751 = vdwg.mxu0
        %v1752 = vld [vmem:[%s506] sm:$0xff]
        %v1753 = vadd.f32 %v1749, %v1752
        %v1754 = vld [vmem:[%s11] sm:$0x1]
        %v1755 = vld [vmem:[%s12] sm:$0x1]
        %v1756 = vsel %vm660, %v1753, 0.0
        %1757 = vadd.xlane.f32.xlu0 %v1756
        %v1758 = vpop.xlane.xlu0 %1757
        %v1759 = vrcp.pop 32.0
        %v1760 = vmul.f32 %v1758, %v1759
        %v1761 = vsub.f32 %v1753, %v1760
        %v1762 = vmul.f32 %v1761, %v1761
        %v1763 = vsel %vm660, %v1762, 0.0
        %1764 = vadd.xlane.f32.xlu0 %v1763
        %v1765 = vpop.xlane.xlu0 %1764
        %v1766 = vmul.f32 %v1765, %v1759
        %v1767 = vadd.f32 %v1766, 1e-12
        %v1768 = vrsqrt.pop %v1767
        %v1769 = vmul.f32 %v1761, %v1768
        %v1771 = vlaneseq
        %v1772 = vshrl.u32 %v1771, 7
        %v1773 = vsub.s32 0, %v1772
        %v1774 = vrot.slane %v1754, %v1773
        %v1776 = vmul.f32 %v1769, %v1774
        %v1778 = vlaneseq
        %v1779 = vshrl.u32 %v1778, 7
        %v1780 = vsub.s32 0, %v1779
        %v1781 = vrot.slane %v1755, %v1780
        %v1783 = vadd.f32 %v1776, %v1781
        %1784 = vst.msk [vmem:[%s526] sm:$0xff] %vm660, %v1783
      $region80: #{lxrt_x_layer_forward.6} parent=71 // pred_fallthru
        _
      %p1785 = scmp.lt.s32.totalorder %s29, 1
      %s1786 = scalar_select %p1785, %s29, 1
      %p1787 = scmp.lt.s32.totalorder %s30, 0
      %s1788 = scalar_select %p1787, %s30, 0
      %s1789 = sadd.s32 %s1788, %s1786
      %s1790 = smul.addr %s1789, 8
      %s1791 = scalar_lea.vmem %s13, %s1790
      // Predicated region
      $region81: #{lxrt_x_layer_forward.6} parent=71 // pred_check
        %p1792 = pneg %p357
      $region82: #{lxrt_x_layer_forward.6} parent=71 // pred_check_branch
        %1794 = sbr.rel (%p1792) target = $region84
      $region83: #{lxrt_x_layer_forward.6} parent=71 // pred_region
        _
      $region84: #{lxrt_x_layer_forward.6} parent=71 // pred_fallthru
        _
    $region72: #{lxrt_x_layer_forward.6} parent=5 // pred_fallthru
      _
    %p1795 = scmp.le.s32.totalorder 2, %s19
    // Predicated region
    $region85: #{lxrt_x_layer_forward.6} parent=5 // pred_check
      %p1796 = pneg %p1795
    $region86: #{lxrt_x_layer_forward.6} parent=5 // pred_check_branch
      %1798 = sbr.rel (%p1796) target = $region88
    $region87: #{lxrt_x_layer_forward.6} parent=5 // pred_region
      %s1799 = ssub.s32 %s19, 2
      // Predicated region
      $region89: #{lxrt_x_layer_forward.6} parent=87 // pred_check
        %p1800 = pneg %p363
      $region90: #{lxrt_x_layer_forward.6} parent=87 // pred_check_branch
        %1802 = sbr.rel (%p1800) target = $region92
      $region91: #{lxrt_x_layer_forward.6} parent=87 // pred_region
        %p1803 = scmp.lt.s32.totalorder %s32, 1
        %s1804 = scalar_select %p1803, %s32, 1
        %p1805 = scmp.lt.s32.totalorder %s33, 0
        %s1806 = scalar_select %p1805, %s33, 0
        %s1807 = sadd.s32 %s1806, %s1804
        %s1808 = smul.addr %s1807, 8
        %s1809 = scalar_lea.vmem %s13, %s1808
      $region92: #{lxrt_x_layer_forward.6} parent=87 // pred_fallthru
        _
    $region88: #{lxrt_x_layer_forward.6} parent=5 // pred_fallthru
      _
  $region6: #{lxrt_x_layer_forward.6} parent=0 // loop_footer
    %s23 = sadd.s32 1, %s19
  $region7: #{lxrt_x_layer_forward.6} parent=0 // loop_footer_branch
    %18 = sbr.rel target = $region3
  $region8: #{lxrt_x_layer_forward.6} parent=0 // loop_exit
    _

</llo_original>
